<compile_context>
chip_gen: v7x
topology: tpu7x:2x2x1
jax: 0.10.0
libtpu: 0.0.40
codegen_flags: <defaults>
</compile_context>

<pallas_src>
import jax
import jax.numpy as jnp
from jax import lax
from jax.experimental import pallas as pl
from jax.experimental.pallas import tpu as pltpu


def _make_kernel(H, W, Cin, P, Cout, has_ds):
    HW = H * W

    def kernel(*refs):
        if has_ds:
            (x_ref, w1_ref, s1_ref, b1_ref, w2_ref, s2_ref, b2_ref,
             w3_ref, s3_ref, b3_ref, wd_ref, sd_ref, bd_ref, out_ref) = refs
        else:
            (x_ref, w1_ref, s1_ref, b1_ref, w2_ref, s2_ref, b2_ref,
             w3_ref, s3_ref, b3_ref, out_ref) = refs
            wd_ref = sd_ref = bd_ref = None

        xf = x_ref[0]                                      # (H*W, Cin) bf16

        # ---- conv1 (1x1) + bn1 + relu ------------------------------------
        o1 = jnp.dot(xf, w1_ref[...], preferred_element_type=jnp.float32)
        o1 = jnp.maximum(o1 * s1_ref[...] + b1_ref[...], 0.0)   # (H*W, P) f32

        # ---- conv2 (3x3, stride 1, pad 1) + bn2 + relu --------------------
        # Pad only the 1-row halo (no full-buffer zero fill), build just two
        # column-shifted copies; the dy shift is an aligned row-window slice.
        o1_3d = o1.reshape(H, W, P)
        zrow = jnp.zeros((1, W, P), jnp.float32)
        o1p = jnp.concatenate([zrow, o1_3d, zrow], axis=0)        # (H+2, W, P)
        zcol = jnp.zeros((H + 2, 1, P), jnp.float32)
        col_p1 = jnp.concatenate([o1p[:, 1:, :], zcol], axis=1)   # value at w is o1p[., w+1, .]
        col_m1 = jnp.concatenate([zcol, o1p[:, :W - 1, :]], axis=1)  # value at w is o1p[., w-1, .]
        cols = (col_m1.astype(jnp.bfloat16).reshape((H + 2) * W, P),   # kx=0 -> dx=-1
                o1p.astype(jnp.bfloat16).reshape((H + 2) * W, P),      # kx=1 -> dx= 0
                col_p1.astype(jnp.bfloat16).reshape((H + 2) * W, P))   # kx=2 -> dx=+1

        acc = jnp.zeros((HW, P), jnp.float32)
        for ky in range(3):
            for kx in range(3):
                slab = cols[kx][ky * W:ky * W + HW, :]
                acc = acc + jnp.dot(slab, w2_ref[ky * 3 + kx],
                                    preferred_element_type=jnp.float32)
        o2 = jnp.maximum(acc * s2_ref[...] + b2_ref[...], 0.0)    # (H*W, P) f32

        # ---- conv3 (1x1) + bn3 --------------------------------------------
        o3 = jnp.dot(o2.astype(jnp.bfloat16), w3_ref[...],
                     preferred_element_type=jnp.float32)
        o3 = o3 * s3_ref[...] + b3_ref[...]

        # ---- shortcut -------------------------------------------------------
        if has_ds:
            ds = jnp.dot(xf, wd_ref[...], preferred_element_type=jnp.float32)
            ds = ds * sd_ref[...] + bd_ref[...]
        else:
            # Identity shortcut handled statically: just add the input back.
            ds = xf.astype(jnp.float32)

        out_ref[0] = jnp.maximum(o3 + ds, 0.0).astype(out_ref.dtype)

    return kernel


def _const_spec(shape):
    zeros = (0,) * len(shape)
    return pl.BlockSpec(shape, lambda b: zeros)


def bottleneck_forward_nhwc(x_nhwc, params):
    """Preferred entry point: NHWC input, no boundary transposes."""
    B, H, W, Cin = x_nhwc.shape
    P = params["w1"].shape[1]
    Cout = params["w3"].shape[1]
    has_ds = "wd" in params
    HW = H * W

    # Flatten spatial dims at the HBM boundary (free reshape); cast the
    # activations to bf16 to halve input HBM traffic (matmuls accumulate in f32).
    x = x_nhwc.astype(jnp.bfloat16).reshape(B, HW, Cin)

    kernel = _make_kernel(H, W, Cin, P, Cout, has_ds)

    in_specs = [pl.BlockSpec((1, HW, Cin), lambda b: (b, 0, 0)),
                _const_spec((Cin, P)), _const_spec((1, P)), _const_spec((1, P)),
                _const_spec((9, P, P)), _const_spec((1, P)), _const_spec((1, P)),
                _const_spec((P, Cout)), _const_spec((1, Cout)), _const_spec((1, Cout))]
    args = [x, params["w1"], params["s1"], params["b1"],
            params["w2"], params["s2"], params["b2"],
            params["w3"], params["s3"], params["b3"]]
    if has_ds:
        in_specs += [_const_spec((Cin, Cout)), _const_spec((1, Cout)),
                     _const_spec((1, Cout))]
        args += [params["wd"], params["sd"], params["bd"]]

    # Advisory cost + explicit VMEM budget sized to the per-image tile footprint.
    flops = 2 * B * HW * (Cin * P + 9 * P * P + P * Cout
                          + (Cin * Cout if has_ds else 0))
    bytes_accessed = sum(int(a.size) * a.dtype.itemsize for a in args)
    bytes_accessed += B * HW * Cout * 4
    weight_bytes = sum(int(a.size) * a.dtype.itemsize for a in args[1:])
    tile_bytes = (2 * HW * Cin * 2            # double-buffered bf16 input tile
                  + 2 * HW * Cout * 4         # double-buffered f32 output tile
                  + weight_bytes              # resident weights / folded BN
                  + (H + 2) * W * P * (3 * 4 + 3 * 2)   # padded + shifted columns
                  + HW * (P * 4 * 3 + Cout * 4 * 2))    # o1/acc/o2/o3/ds working set
    vmem_limit = int(min(max(2 * tile_bytes, 32 * 1024 * 1024), 48 * 1024 * 1024))

    out = pl.pallas_call(
        kernel,
        out_shape=jax.ShapeDtypeStruct((B, HW, Cout), jnp.float32),
        grid=(B,),
        in_specs=in_specs,
        out_specs=pl.BlockSpec((1, HW, Cout), lambda b: (b, 0, 0)),
        compiler_params=pltpu.CompilerParams(
            dimension_semantics=("parallel",),
            vmem_limit_bytes=vmem_limit),
        cost_estimate=pl.CostEstimate(flops=flops, transcendentals=0,
                                      bytes_accessed=int(bytes_accessed)),
    )(*args)
    return out.reshape(B, H, W, Cout)


def bottleneck_forward(x_nchw, params):
    # PyTorch-compatible NCHW entry point (transposes only at the HBM boundary).
    x = jnp.transpose(x_nchw, (0, 2, 3, 1))
    out = bottleneck_forward_nhwc(x, params)
    return jnp.transpose(out, (0, 3, 1, 2))


def make_params(key, in_planes, planes, stride=1, eps=1e-5):
    """Conv weights (bf16, channels-last matmul layout) + folded eval-mode BN."""
    assert stride == 1, "stride > 1 is not supported by this kernel"
    expansion = 4
    out_planes = expansion * planes
    keys = jax.random.split(key, 8)

    def bn_fold(k, c):
        kg, kb, km, kv = jax.random.split(k, 4)
        gamma = jax.random.uniform(kg, (c,), jnp.float32, 0.5, 1.5)
        beta = jax.random.normal(kb, (c,), jnp.float32) * 0.1
        mean = jax.random.normal(km, (c,), jnp.float32) * 0.1
        var = jax.random.uniform(kv, (c,), jnp.float32, 0.5, 1.5)
        scale = gamma / jnp.sqrt(var + eps)
        bias = beta - mean * scale
        return scale.reshape(1, c), bias.reshape(1, c)

    # conv weights generated in torch layout [out, in, kh, kw]
    w1_t = jax.random.normal(keys[0], (planes, in_planes, 1, 1), jnp.float32) * 0.1
    w2_t = jax.random.normal(keys[1], (planes, planes, 3, 3), jnp.float32) * 0.1
    w3_t = jax.random.normal(keys[2], (out_planes, planes, 1, 1), jnp.float32) * 0.1

    s1, b1 = bn_fold(keys[3], planes)
    s2, b2 = bn_fold(keys[4], planes)
    s3, b3 = bn_fold(keys[5], out_planes)

    params = dict(
        w1=w1_t[:, :, 0, 0].T.astype(jnp.bfloat16),                            # (Cin, P)
        w2=jnp.transpose(w2_t, (2, 3, 1, 0)).reshape(9, planes, planes)
              .astype(jnp.bfloat16),                                           # (9, Pin, Pout), t = kh*3+kw
        w3=w3_t[:, :, 0, 0].T.astype(jnp.bfloat16),                            # (P, 4P)
        s1=s1, b1=b1, s2=s2, b2=b2, s3=s3, b3=b3,
    )

    if stride != 1 or in_planes != out_planes:
        wd_t = jax.random.normal(keys[6], (out_planes, in_planes, 1, 1), jnp.float32) * 0.1
        sd, bd = bn_fold(keys[7], out_planes)
        params.update(wd=wd_t[:, :, 0, 0].T.astype(jnp.bfloat16), sd=sd, bd=bd)
    # else: identity shortcut — handled as a static branch in the kernel.
    return params


def ref_forward(x_nchw, params):
    # Pure-JAX f32 reference (lax conv) for correctness checking.
    x = jnp.transpose(x_nchw, (0, 2, 3, 1)).astype(jnp.float32)
    Cin = x.shape[-1]
    P = params["w1"].shape[1]
    Cout = params["w3"].shape[1]
    dn = ("NHWC", "HWIO", "NHWC")

    def conv(v, k, pad):
        return lax.conv_general_dilated(v, k, (1, 1), pad, dimension_numbers=dn)

    w1 = params["w1"].astype(jnp.float32).reshape(1, 1, Cin, P)
    w2 = params["w2"].astype(jnp.float32).reshape(3, 3, P, P)
    w3 = params["w3"].astype(jnp.float32).reshape(1, 1, P, Cout)

    o = conv(x, w1, "VALID")
    o = jnp.maximum(o * params["s1"] + params["b1"], 0.0)
    o = conv(o, w2, "SAME")
    o = jnp.maximum(o * params["s2"] + params["b2"], 0.0)
    o = conv(o, w3, "VALID")
    o = o * params["s3"] + params["b3"]
    if "wd" in params:
        wd = params["wd"].astype(jnp.float32).reshape(1, 1, Cin, Cout)
        d = conv(x, wd, "VALID") * params["sd"] + params["bd"]
    else:
        d = x
    out = jnp.maximum(o + d, 0.0)
    return jnp.transpose(out, (0, 3, 1, 2))


if __name__ == "__main__":
    key = jax.random.PRNGKey(0)
    k1, k2, k3, k4 = jax.random.split(key, 4)
    B, H, W, planes = 2, 16, 16, 4

    # Config 1: projection shortcut (in_planes != expansion*planes).
    Cin = 4
    x = jax.random.normal(k1, (B, Cin, H, W), jnp.float32)
    params = make_params(k2, Cin, planes, stride=1)
    out = jax.block_until_ready(bottleneck_forward(x, params))
    ref = ref_forward(x, params)
    assert out.shape == (B, 4 * planes, H, W), out.shape
    err = float(jnp.max(jnp.abs(out - ref)))
    assert jnp.allclose(out, ref, atol=3e-2, rtol=3e-2), err

    # Config 2: identity shortcut (in_planes == expansion*planes) — exercises
    # the static skip of the downsample matmul.
    Cin2 = 16
    x2 = jax.random.normal(k3, (B, Cin2, H, W), jnp.float32)
    params2 = make_params(k4, Cin2, planes, stride=1)
    out2 = jax.block_until_ready(bottleneck_forward(x2, params2))
    ref2 = ref_forward(x2, params2)
    err2 = float(jnp.max(jnp.abs(out2 - ref2)))
    assert jnp.allclose(out2, ref2, atol=3e-2, rtol=3e-2), err2

    print("KERNEL_OK")
</pallas_src>

<mosaic_0001>
module attributes {stable_mosaic.version = 11 : i64} {
  func.func @kernel(%arg0: i32, %arg1: memref<1x256x4xbf16, #tpu.memory_space<vmem>>, %arg2: memref<4x4xbf16, #tpu.memory_space<vmem>>, %arg3: memref<1x4xf32, #tpu.memory_space<vmem>>, %arg4: memref<1x4xf32, #tpu.memory_space<vmem>>, %arg5: memref<9x4x4xbf16, #tpu.memory_space<vmem>>, %arg6: memref<1x4xf32, #tpu.memory_space<vmem>>, %arg7: memref<1x4xf32, #tpu.memory_space<vmem>>, %arg8: memref<4x16xbf16, #tpu.memory_space<vmem>>, %arg9: memref<1x16xf32, #tpu.memory_space<vmem>>, %arg10: memref<1x16xf32, #tpu.memory_space<vmem>>, %arg11: memref<4x16xbf16, #tpu.memory_space<vmem>>, %arg12: memref<1x16xf32, #tpu.memory_space<vmem>>, %arg13: memref<1x16xf32, #tpu.memory_space<vmem>>, %arg14: memref<1x256x16xf32, #tpu.memory_space<vmem>>) attributes {dimension_semantics = [#tpu.dimension_semantics<parallel>], iteration_bounds = array<i64: 2>, scalar_prefetch = 0 : i64, scratch_operands = 0 : i64, tpu.core_type = #tpu.core_type<tc>, window_params = [{transform_indices = @transform_0, window_bounds = array<i64: 1, 256, 4>}, {pipeline_mode = #tpu.pipeline_mode<synchronous>, transform_indices = @transform_1, window_bounds = array<i64: 4, 4>}, {pipeline_mode = #tpu.pipeline_mode<synchronous>, transform_indices = @transform_2, window_bounds = array<i64: 1, 4>}, {pipeline_mode = #tpu.pipeline_mode<synchronous>, transform_indices = @transform_3, window_bounds = array<i64: 1, 4>}, {pipeline_mode = #tpu.pipeline_mode<synchronous>, transform_indices = @transform_4, window_bounds = array<i64: 9, 4, 4>}, {pipeline_mode = #tpu.pipeline_mode<synchronous>, transform_indices = @transform_5, window_bounds = array<i64: 1, 4>}, {pipeline_mode = #tpu.pipeline_mode<synchronous>, transform_indices = @transform_6, window_bounds = array<i64: 1, 4>}, {pipeline_mode = #tpu.pipeline_mode<synchronous>, transform_indices = @transform_7, window_bounds = array<i64: 4, 16>}, {pipeline_mode = #tpu.pipeline_mode<synchronous>, transform_indices = @transform_8, window_bounds = array<i64: 1, 16>}, {pipeline_mode = #tpu.pipeline_mode<synchronous>, transform_indices = @transform_9, window_bounds = array<i64: 1, 16>}, {pipeline_mode = #tpu.pipeline_mode<synchronous>, transform_indices = @transform_10, window_bounds = array<i64: 4, 16>}, {pipeline_mode = #tpu.pipeline_mode<synchronous>, transform_indices = @transform_11, window_bounds = array<i64: 1, 16>}, {pipeline_mode = #tpu.pipeline_mode<synchronous>, transform_indices = @transform_12, window_bounds = array<i64: 1, 16>}, {transform_indices = @transform_13, window_bounds = array<i64: 1, 256, 16>}]} {
    %c0 = arith.constant 0 : index
    %c0_0 = arith.constant 0 : index
    %c0_1 = arith.constant 0 : index
    %0 = vector.load %arg1[%c0, %c0_0, %c0_1] : memref<1x256x4xbf16, #tpu.memory_space<vmem>>, vector<1x256x4xbf16>
    %1 = vector.shape_cast %0 : vector<1x256x4xbf16> to vector<256x4xbf16>
    %c0_2 = arith.constant 0 : index
    %c0_3 = arith.constant 0 : index
    %2 = vector.load %arg2[%c0_2, %c0_3] : memref<4x4xbf16, #tpu.memory_space<vmem>>, vector<4x4xbf16>
    %cst = arith.constant dense<0.000000e+00> : vector<256x4xf32>
    %3 = tpu.matmul %1, %2, %cst {dimension_numbers = #tpu.dot_dimension_numbers<[1], [0], [0], [1], [0, 0, 1, 1], [], []>} : vector<256x4xbf16>, vector<4x4xbf16>, vector<256x4xf32> -> vector<256x4xf32>
    %c0_4 = arith.constant 0 : index
    %c0_5 = arith.constant 0 : index
    %4 = vector.load %arg3[%c0_4, %c0_5] : memref<1x4xf32, #tpu.memory_space<vmem>>, vector<1x4xf32>
    %5 = vector.broadcast %4 : vector<1x4xf32> to vector<256x4xf32>
    %6 = arith.mulf %3, %5 : vector<256x4xf32>
    %c0_6 = arith.constant 0 : index
    %c0_7 = arith.constant 0 : index
    %7 = vector.load %arg4[%c0_6, %c0_7] : memref<1x4xf32, #tpu.memory_space<vmem>>, vector<1x4xf32>
    %8 = vector.broadcast %7 : vector<1x4xf32> to vector<256x4xf32>
    %9 = arith.addf %6, %8 : vector<256x4xf32>
    %cst_8 = arith.constant 0.000000e+00 : f32
    %10 = vector.broadcast %cst_8 : f32 to vector<256x4xf32>
    %11 = arith.maximumf %9, %10 : vector<256x4xf32>
    %12 = vector.shape_cast %11 : vector<256x4xf32> to vector<16x16x4xf32>
    %cst_9 = arith.constant 0.000000e+00 : f32
    %13 = vector.broadcast %cst_9 : f32 to vector<1x16x4xf32>
    %14 = tpu.concatenate %13, %12, %13 in 0 : vector<1x16x4xf32>, vector<16x16x4xf32>, vector<1x16x4xf32> -> vector<18x16x4xf32>
    %cst_10 = arith.constant 0.000000e+00 : f32
    %15 = vector.broadcast %cst_10 : f32 to vector<18x1x4xf32>
    %16 = vector.extract_strided_slice %14 {offsets = [0, 1, 0], sizes = [18, 15, 4], strides = [1, 1, 1]} : vector<18x16x4xf32> to vector<18x15x4xf32>
    %17 = tpu.concatenate %16, %15 in 1 : vector<18x15x4xf32>, vector<18x1x4xf32> -> vector<18x16x4xf32>
    %18 = vector.extract_strided_slice %14 {offsets = [0, 0, 0], sizes = [18, 15, 4], strides = [1, 1, 1]} : vector<18x16x4xf32> to vector<18x15x4xf32>
    %19 = tpu.concatenate %15, %18 in 1 : vector<18x1x4xf32>, vector<18x15x4xf32> -> vector<18x16x4xf32>
    %20 = arith.truncf %19 : vector<18x16x4xf32> to vector<18x16x4xbf16>
    %21 = vector.shape_cast %20 : vector<18x16x4xbf16> to vector<288x4xbf16>
    %22 = arith.truncf %14 : vector<18x16x4xf32> to vector<18x16x4xbf16>
    %23 = vector.shape_cast %22 : vector<18x16x4xbf16> to vector<288x4xbf16>
    %24 = arith.truncf %17 : vector<18x16x4xf32> to vector<18x16x4xbf16>
    %25 = vector.shape_cast %24 : vector<18x16x4xbf16> to vector<288x4xbf16>
    %cst_11 = arith.constant 0.000000e+00 : f32
    %26 = vector.broadcast %cst_11 : f32 to vector<256x4xf32>
    %27 = vector.extract_strided_slice %21 {offsets = [0, 0], sizes = [256, 4], strides = [1, 1]} : vector<288x4xbf16> to vector<256x4xbf16>
    %c0_12 = arith.constant 0 : index
    %c0_13 = arith.constant 0 : index
    %c0_14 = arith.constant 0 : index
    %28 = vector.load %arg5[%c0_12, %c0_13, %c0_14] : memref<9x4x4xbf16, #tpu.memory_space<vmem>>, vector<1x4x4xbf16>
    %29 = vector.shape_cast %28 : vector<1x4x4xbf16> to vector<4x4xbf16>
    %cst_15 = arith.constant dense<0.000000e+00> : vector<256x4xf32>
    %30 = tpu.matmul %27, %29, %cst_15 {dimension_numbers = #tpu.dot_dimension_numbers<[1], [0], [0], [1], [0, 0, 1, 1], [], []>} : vector<256x4xbf16>, vector<4x4xbf16>, vector<256x4xf32> -> vector<256x4xf32>
    %31 = arith.addf %26, %30 : vector<256x4xf32>
    %32 = vector.extract_strided_slice %23 {offsets = [0, 0], sizes = [256, 4], strides = [1, 1]} : vector<288x4xbf16> to vector<256x4xbf16>
    %c1 = arith.constant 1 : index
    %c0_16 = arith.constant 0 : index
    %c0_17 = arith.constant 0 : index
    %33 = vector.load %arg5[%c1, %c0_16, %c0_17] : memref<9x4x4xbf16, #tpu.memory_space<vmem>>, vector<1x4x4xbf16>
    %34 = vector.shape_cast %33 : vector<1x4x4xbf16> to vector<4x4xbf16>
    %cst_18 = arith.constant dense<0.000000e+00> : vector<256x4xf32>
    %35 = tpu.matmul %32, %34, %cst_18 {dimension_numbers = #tpu.dot_dimension_numbers<[1], [0], [0], [1], [0, 0, 1, 1], [], []>} : vector<256x4xbf16>, vector<4x4xbf16>, vector<256x4xf32> -> vector<256x4xf32>
    %36 = arith.addf %31, %35 : vector<256x4xf32>
    %37 = vector.extract_strided_slice %25 {offsets = [0, 0], sizes = [256, 4], strides = [1, 1]} : vector<288x4xbf16> to vector<256x4xbf16>
    %c2 = arith.constant 2 : index
    %c0_19 = arith.constant 0 : index
    %c0_20 = arith.constant 0 : index
    %38 = vector.load %arg5[%c2, %c0_19, %c0_20] : memref<9x4x4xbf16, #tpu.memory_space<vmem>>, vector<1x4x4xbf16>
    %39 = vector.shape_cast %38 : vector<1x4x4xbf16> to vector<4x4xbf16>
    %cst_21 = arith.constant dense<0.000000e+00> : vector<256x4xf32>
    %40 = tpu.matmul %37, %39, %cst_21 {dimension_numbers = #tpu.dot_dimension_numbers<[1], [0], [0], [1], [0, 0, 1, 1], [], []>} : vector<256x4xbf16>, vector<4x4xbf16>, vector<256x4xf32> -> vector<256x4xf32>
    %41 = arith.addf %36, %40 : vector<256x4xf32>
    %42 = vector.extract_strided_slice %21 {offsets = [16, 0], sizes = [256, 4], strides = [1, 1]} : vector<288x4xbf16> to vector<256x4xbf16>
    %c3 = arith.constant 3 : index
    %c0_22 = arith.constant 0 : index
    %c0_23 = arith.constant 0 : index
    %43 = vector.load %arg5[%c3, %c0_22, %c0_23] : memref<9x4x4xbf16, #tpu.memory_space<vmem>>, vector<1x4x4xbf16>
    %44 = vector.shape_cast %43 : vector<1x4x4xbf16> to vector<4x4xbf16>
    %cst_24 = arith.constant dense<0.000000e+00> : vector<256x4xf32>
    %45 = tpu.matmul %42, %44, %cst_24 {dimension_numbers = #tpu.dot_dimension_numbers<[1], [0], [0], [1], [0, 0, 1, 1], [], []>} : vector<256x4xbf16>, vector<4x4xbf16>, vector<256x4xf32> -> vector<256x4xf32>
    %46 = arith.addf %41, %45 : vector<256x4xf32>
    %47 = vector.extract_strided_slice %23 {offsets = [16, 0], sizes = [256, 4], strides = [1, 1]} : vector<288x4xbf16> to vector<256x4xbf16>
    %c4 = arith.constant 4 : index
    %c0_25 = arith.constant 0 : index
    %c0_26 = arith.constant 0 : index
    %48 = vector.load %arg5[%c4, %c0_25, %c0_26] : memref<9x4x4xbf16, #tpu.memory_space<vmem>>, vector<1x4x4xbf16>
    %49 = vector.shape_cast %48 : vector<1x4x4xbf16> to vector<4x4xbf16>
    %cst_27 = arith.constant dense<0.000000e+00> : vector<256x4xf32>
    %50 = tpu.matmul %47, %49, %cst_27 {dimension_numbers = #tpu.dot_dimension_numbers<[1], [0], [0], [1], [0, 0, 1, 1], [], []>} : vector<256x4xbf16>, vector<4x4xbf16>, vector<256x4xf32> -> vector<256x4xf32>
    %51 = arith.addf %46, %50 : vector<256x4xf32>
    %52 = vector.extract_strided_slice %25 {offsets = [16, 0], sizes = [256, 4], strides = [1, 1]} : vector<288x4xbf16> to vector<256x4xbf16>
    %c5 = arith.constant 5 : index
    %c0_28 = arith.constant 0 : index
    %c0_29 = arith.constant 0 : index
    %53 = vector.load %arg5[%c5, %c0_28, %c0_29] : memref<9x4x4xbf16, #tpu.memory_space<vmem>>, vector<1x4x4xbf16>
    %54 = vector.shape_cast %53 : vector<1x4x4xbf16> to vector<4x4xbf16>
    %cst_30 = arith.constant dense<0.000000e+00> : vector<256x4xf32>
    %55 = tpu.matmul %52, %54, %cst_30 {dimension_numbers = #tpu.dot_dimension_numbers<[1], [0], [0], [1], [0, 0, 1, 1], [], []>} : vector<256x4xbf16>, vector<4x4xbf16>, vector<256x4xf32> -> vector<256x4xf32>
    %56 = arith.addf %51, %55 : vector<256x4xf32>
    %57 = vector.extract_strided_slice %21 {offsets = [32, 0], sizes = [256, 4], strides = [1, 1]} : vector<288x4xbf16> to vector<256x4xbf16>
    %c6 = arith.constant 6 : index
    %c0_31 = arith.constant 0 : index
    %c0_32 = arith.constant 0 : index
    %58 = vector.load %arg5[%c6, %c0_31, %c0_32] : memref<9x4x4xbf16, #tpu.memory_space<vmem>>, vector<1x4x4xbf16>
    %59 = vector.shape_cast %58 : vector<1x4x4xbf16> to vector<4x4xbf16>
    %cst_33 = arith.constant dense<0.000000e+00> : vector<256x4xf32>
    %60 = tpu.matmul %57, %59, %cst_33 {dimension_numbers = #tpu.dot_dimension_numbers<[1], [0], [0], [1], [0, 0, 1, 1], [], []>} : vector<256x4xbf16>, vector<4x4xbf16>, vector<256x4xf32> -> vector<256x4xf32>
    %61 = arith.addf %56, %60 : vector<256x4xf32>
    %62 = vector.extract_strided_slice %23 {offsets = [32, 0], sizes = [256, 4], strides = [1, 1]} : vector<288x4xbf16> to vector<256x4xbf16>
    %c7 = arith.constant 7 : index
    %c0_34 = arith.constant 0 : index
    %c0_35 = arith.constant 0 : index
    %63 = vector.load %arg5[%c7, %c0_34, %c0_35] : memref<9x4x4xbf16, #tpu.memory_space<vmem>>, vector<1x4x4xbf16>
    %64 = vector.shape_cast %63 : vector<1x4x4xbf16> to vector<4x4xbf16>
    %cst_36 = arith.constant dense<0.000000e+00> : vector<256x4xf32>
    %65 = tpu.matmul %62, %64, %cst_36 {dimension_numbers = #tpu.dot_dimension_numbers<[1], [0], [0], [1], [0, 0, 1, 1], [], []>} : vector<256x4xbf16>, vector<4x4xbf16>, vector<256x4xf32> -> vector<256x4xf32>
    %66 = arith.addf %61, %65 : vector<256x4xf32>
    %67 = vector.extract_strided_slice %25 {offsets = [32, 0], sizes = [256, 4], strides = [1, 1]} : vector<288x4xbf16> to vector<256x4xbf16>
    %c8 = arith.constant 8 : index
    %c0_37 = arith.constant 0 : index
    %c0_38 = arith.constant 0 : index
    %68 = vector.load %arg5[%c8, %c0_37, %c0_38] : memref<9x4x4xbf16, #tpu.memory_space<vmem>>, vector<1x4x4xbf16>
    %69 = vector.shape_cast %68 : vector<1x4x4xbf16> to vector<4x4xbf16>
    %cst_39 = arith.constant dense<0.000000e+00> : vector<256x4xf32>
    %70 = tpu.matmul %67, %69, %cst_39 {dimension_numbers = #tpu.dot_dimension_numbers<[1], [0], [0], [1], [0, 0, 1, 1], [], []>} : vector<256x4xbf16>, vector<4x4xbf16>, vector<256x4xf32> -> vector<256x4xf32>
    %71 = arith.addf %66, %70 : vector<256x4xf32>
    %c0_40 = arith.constant 0 : index
    %c0_41 = arith.constant 0 : index
    %72 = vector.load %arg6[%c0_40, %c0_41] : memref<1x4xf32, #tpu.memory_space<vmem>>, vector<1x4xf32>
    %73 = vector.broadcast %72 : vector<1x4xf32> to vector<256x4xf32>
    %74 = arith.mulf %71, %73 : vector<256x4xf32>
    %c0_42 = arith.constant 0 : index
    %c0_43 = arith.constant 0 : index
    %75 = vector.load %arg7[%c0_42, %c0_43] : memref<1x4xf32, #tpu.memory_space<vmem>>, vector<1x4xf32>
    %76 = vector.broadcast %75 : vector<1x4xf32> to vector<256x4xf32>
    %77 = arith.addf %74, %76 : vector<256x4xf32>
    %cst_44 = arith.constant 0.000000e+00 : f32
    %78 = vector.broadcast %cst_44 : f32 to vector<256x4xf32>
    %79 = arith.maximumf %77, %78 : vector<256x4xf32>
    %80 = arith.truncf %79 : vector<256x4xf32> to vector<256x4xbf16>
    %c0_45 = arith.constant 0 : index
    %c0_46 = arith.constant 0 : index
    %81 = vector.load %arg8[%c0_45, %c0_46] : memref<4x16xbf16, #tpu.memory_space<vmem>>, vector<4x16xbf16>
    %cst_47 = arith.constant dense<0.000000e+00> : vector<256x16xf32>
    %82 = tpu.matmul %80, %81, %cst_47 {dimension_numbers = #tpu.dot_dimension_numbers<[1], [0], [0], [1], [0, 0, 1, 1], [], []>} : vector<256x4xbf16>, vector<4x16xbf16>, vector<256x16xf32> -> vector<256x16xf32>
    %c0_48 = arith.constant 0 : index
    %c0_49 = arith.constant 0 : index
    %83 = vector.load %arg9[%c0_48, %c0_49] : memref<1x16xf32, #tpu.memory_space<vmem>>, vector<1x16xf32>
    %84 = vector.broadcast %83 : vector<1x16xf32> to vector<256x16xf32>
    %85 = arith.mulf %82, %84 : vector<256x16xf32>
    %c0_50 = arith.constant 0 : index
    %c0_51 = arith.constant 0 : index
    %86 = vector.load %arg10[%c0_50, %c0_51] : memref<1x16xf32, #tpu.memory_space<vmem>>, vector<1x16xf32>
    %87 = vector.broadcast %86 : vector<1x16xf32> to vector<256x16xf32>
    %88 = arith.addf %85, %87 : vector<256x16xf32>
    %c0_52 = arith.constant 0 : index
    %c0_53 = arith.constant 0 : index
    %89 = vector.load %arg11[%c0_52, %c0_53] : memref<4x16xbf16, #tpu.memory_space<vmem>>, vector<4x16xbf16>
    %cst_54 = arith.constant dense<0.000000e+00> : vector<256x16xf32>
    %90 = tpu.matmul %1, %89, %cst_54 {dimension_numbers = #tpu.dot_dimension_numbers<[1], [0], [0], [1], [0, 0, 1, 1], [], []>} : vector<256x4xbf16>, vector<4x16xbf16>, vector<256x16xf32> -> vector<256x16xf32>
    %c0_55 = arith.constant 0 : index
    %c0_56 = arith.constant 0 : index
    %91 = vector.load %arg12[%c0_55, %c0_56] : memref<1x16xf32, #tpu.memory_space<vmem>>, vector<1x16xf32>
    %92 = vector.broadcast %91 : vector<1x16xf32> to vector<256x16xf32>
    %93 = arith.mulf %90, %92 : vector<256x16xf32>
    %c0_57 = arith.constant 0 : index
    %c0_58 = arith.constant 0 : index
    %94 = vector.load %arg13[%c0_57, %c0_58] : memref<1x16xf32, #tpu.memory_space<vmem>>, vector<1x16xf32>
    %95 = vector.broadcast %94 : vector<1x16xf32> to vector<256x16xf32>
    %96 = arith.addf %93, %95 : vector<256x16xf32>
    %97 = arith.addf %88, %96 : vector<256x16xf32>
    %cst_59 = arith.constant 0.000000e+00 : f32
    %98 = vector.broadcast %cst_59 : f32 to vector<256x16xf32>
    %99 = arith.maximumf %97, %98 : vector<256x16xf32>
    %c0_60 = arith.constant 0 : index
    %c0_61 = arith.constant 0 : index
    %c0_62 = arith.constant 0 : index
    %100 = vector.load %arg14[%c0_60, %c0_61, %c0_62] : memref<1x256x16xf32, #tpu.memory_space<vmem>>, vector<1x256x16xf32>
    %101 = vector.shape_cast %100 : vector<1x256x16xf32> to vector<256x16xf32>
    %102 = vector.shape_cast %99 : vector<256x16xf32> to vector<1x256x16xf32>
    tpu.vector_store %arg14[%c0_60, %c0_61, %c0_62], %102 {strides = array<i32>} : memref<1x256x16xf32, #tpu.memory_space<vmem>>, vector<1x256x16xf32>,
    return
  }
  func.func @transform_0(%arg0: i32) -> (i32, i32, i32) {
    %c0_i32 = arith.constant 0 : i32
    %c0_i32_0 = arith.constant 0 : i32
    %c0_i32_1 = arith.constant 0 : i32
    return %arg0, %c0_i32, %c0_i32_0 : i32, i32, i32
  }
  func.func @transform_1(%arg0: i32) -> (i32, i32) {
    %c0_i32 = arith.constant 0 : i32
    %c0_i32_0 = arith.constant 0 : i32
    %c0_i32_1 = arith.constant 0 : i32
    return %c0_i32, %c0_i32_0 : i32, i32
  }
  func.func @transform_2(%arg0: i32) -> (i32, i32) {
    %c0_i32 = arith.constant 0 : i32
    %c0_i32_0 = arith.constant 0 : i32
    %c0_i32_1 = arith.constant 0 : i32
    return %c0_i32, %c0_i32_0 : i32, i32
  }
  func.func @transform_3(%arg0: i32) -> (i32, i32) {
    %c0_i32 = arith.constant 0 : i32
    %c0_i32_0 = arith.constant 0 : i32
    %c0_i32_1 = arith.constant 0 : i32
    return %c0_i32, %c0_i32_0 : i32, i32
  }
  func.func @transform_4(%arg0: i32) -> (i32, i32, i32) {
    %c0_i32 = arith.constant 0 : i32
    %c0_i32_0 = arith.constant 0 : i32
    %c0_i32_1 = arith.constant 0 : i32
    %c0_i32_2 = arith.constant 0 : i32
    return %c0_i32, %c0_i32_0, %c0_i32_1 : i32, i32, i32
  }
  func.func @transform_5(%arg0: i32) -> (i32, i32) {
    %c0_i32 = arith.constant 0 : i32
    %c0_i32_0 = arith.constant 0 : i32
    %c0_i32_1 = arith.constant 0 : i32
    return %c0_i32, %c0_i32_0 : i32, i32
  }
  func.func @transform_6(%arg0: i32) -> (i32, i32) {
    %c0_i32 = arith.constant 0 : i32
    %c0_i32_0 = arith.constant 0 : i32
    %c0_i32_1 = arith.constant 0 : i32
    return %c0_i32, %c0_i32_0 : i32, i32
  }
  func.func @transform_7(%arg0: i32) -> (i32, i32) {
    %c0_i32 = arith.constant 0 : i32
    %c0_i32_0 = arith.constant 0 : i32
    %c0_i32_1 = arith.constant 0 : i32
    return %c0_i32, %c0_i32_0 : i32, i32
  }
  func.func @transform_8(%arg0: i32) -> (i32, i32) {
    %c0_i32 = arith.constant 0 : i32
    %c0_i32_0 = arith.constant 0 : i32
    %c0_i32_1 = arith.constant 0 : i32
    return %c0_i32, %c0_i32_0 : i32, i32
  }
  func.func @transform_9(%arg0: i32) -> (i32, i32) {
    %c0_i32 = arith.constant 0 : i32
    %c0_i32_0 = arith.constant 0 : i32
    %c0_i32_1 = arith.constant 0 : i32
    return %c0_i32, %c0_i32_0 : i32, i32
  }
  func.func @transform_10(%arg0: i32) -> (i32, i32) {
    %c0_i32 = arith.constant 0 : i32
    %c0_i32_0 = arith.constant 0 : i32
    %c0_i32_1 = arith.constant 0 : i32
    return %c0_i32, %c0_i32_0 : i32, i32
  }
  func.func @transform_11(%arg0: i32) -> (i32, i32) {
    %c0_i32 = arith.constant 0 : i32
    %c0_i32_0 = arith.constant 0 : i32
    %c0_i32_1 = arith.constant 0 : i32
    return %c0_i32, %c0_i32_0 : i32, i32
  }
  func.func @transform_12(%arg0: i32) -> (i32, i32) {
    %c0_i32 = arith.constant 0 : i32
    %c0_i32_0 = arith.constant 0 : i32
    %c0_i32_1 = arith.constant 0 : i32
    return %c0_i32, %c0_i32_0 : i32, i32
  }
  func.func @transform_13(%arg0: i32) -> (i32, i32, i32) {
    %c0_i32 = arith.constant 0 : i32
    %c0_i32_0 = arith.constant 0 : i32
    %c0_i32_1 = arith.constant 0 : i32
    return %arg0, %c0_i32, %c0_i32_0 : i32, i32, i32
  }
}

</mosaic_0001>

<llo_original>
// kernel: tpu_custom_call.1
$region0: #{tpu_custom_call.1}
  #allocation0 [shape = 'u32[]', space=smem, size = 0x4, offset = 0x4, fixed_abs, tag = 'smem constant byte address 0x4 - core index']
  #allocation1 [shape = 'u32[144,128]{1,0:T(1,128)}', space=vmem, size = 0x12000, scoped, tag = 'internal scratch']
  %s0 = inlined_call_operand.vmem [shape: bf16[2,256,4], index: 0, kind: input, shape index: {}]
  %s1 = inlined_call_operand.vmem [shape: bf16[4,4], index: 1, kind: input, shape index: {}]
  %s2 = inlined_call_operand.vmem [shape: f32[1,4], index: 2, kind: input, shape index: {}]
  %s3 = inlined_call_operand.vmem [shape: f32[1,4], index: 3, kind: input, shape index: {}]
  %s4 = inlined_call_operand.vmem [shape: bf16[9,4,4], index: 4, kind: input, shape index: {}]
  %s5 = inlined_call_operand.vmem [shape: f32[1,4], index: 5, kind: input, shape index: {}]
  %s6 = inlined_call_operand.vmem [shape: f32[1,4], index: 6, kind: input, shape index: {}]
  %s7 = inlined_call_operand.vmem [shape: bf16[4,16], index: 7, kind: input, shape index: {}]
  %s8 = inlined_call_operand.vmem [shape: f32[1,16], index: 8, kind: input, shape index: {}]
  %s9 = inlined_call_operand.vmem [shape: f32[1,16], index: 9, kind: input, shape index: {}]
  %s10 = inlined_call_operand.vmem [shape: bf16[4,16], index: 10, kind: input, shape index: {}]
  %s11 = inlined_call_operand.vmem [shape: f32[1,16], index: 11, kind: input, shape index: {}]
  %s12 = inlined_call_operand.vmem [shape: f32[1,16], index: 12, kind: input, shape index: {}]
  %s13 = inlined_call_operand.vmem [shape: f32[2,256,16], index: 13, kind: output, shape index: {}]
  %s14 = sld [smem:[#allocation0]]
  $region85: #{tpu_custom_call.1} parent=0
    _
  %s16 = ssub.s32 1, %s14
  %s17 = scalar_select 0, %s16, %s14
  loop: start=0, step=1, limit=4
  $region2: #{tpu_custom_call.1} parent=0 // loop_pre_header
    _
  $region3: #{tpu_custom_call.1} parent=0 // loop_header
    %s19 = sphi 0, %s23
    %p20 = scmp.ge.s32.totalorder %s19, 4
    %s29 = sphi 0, %s31
    %s32 = sphi 0, %s29
    %s33 = sphi 0, %s32
    %s49 = sphi 0, %s33
    %s53 = sphi 0, %s53
    %s55 = sphi 0, %s53
    %s56 = sphi 0, %s55
    %s70 = sphi 0, %s56
    %s74 = sphi 0, %s74
    %s76 = sphi 0, %s74
    %s77 = sphi 0, %s76
    %s91 = sphi 0, %s77
    %s95 = sphi 0, %s95
    %s97 = sphi 0, %s95
    %s98 = sphi 0, %s97
    %s112 = sphi 0, %s98
    %s116 = sphi 0, %s116
    %s118 = sphi 0, %s116
    %s119 = sphi 0, %s118
    %s133 = sphi 0, %s119
    %s137 = sphi 0, %s137
    %s139 = sphi 0, %s137
    %s140 = sphi 0, %s139
    %s154 = sphi 0, %s140
    %s158 = sphi 0, %s158
    %s160 = sphi 0, %s158
    %s161 = sphi 0, %s160
    %s175 = sphi 0, %s161
    %s179 = sphi 0, %s179
    %s181 = sphi 0, %s179
    %s182 = sphi 0, %s181
    %s196 = sphi 0, %s182
    %s200 = sphi 0, %s200
    %s202 = sphi 0, %s200
    %s203 = sphi 0, %s202
    %s217 = sphi 0, %s203
    %s221 = sphi 0, %s221
    %s223 = sphi 0, %s221
    %s224 = sphi 0, %s223
    %s238 = sphi 0, %s224
    %s242 = sphi 0, %s242
    %s244 = sphi 0, %s242
    %s245 = sphi 0, %s244
    %s259 = sphi 0, %s245
    %s263 = sphi 0, %s263
    %s265 = sphi 0, %s263
    %s266 = sphi 0, %s265
    %s280 = sphi 0, %s266
    %s284 = sphi 0, %s284
    %s286 = sphi 0, %s284
    %s287 = sphi 0, %s286
    %s301 = sphi 0, %s287
    %s307 = sphi 0, %s309
    %s310 = sphi 0, %s307
    %s311 = sphi 0, %s310
    %s327 = sphi 0, %s311
  $region4: #{tpu_custom_call.1} parent=0 // loop_header_branch
    %22 = sbr.rel (%p20) target = $region8
  $region5: #{tpu_custom_call.1} parent=0 // loop_body
    %s24 = ssub.s32 %s19, 1
    %s25 = ssub.s32 %s19, 2
    %s26 = sadd.s32 %s19, 1
    %s27 = ssub.s32 %s19, %s26
    %p28 = scmp.eq.s32.totalorder %s27, 0
    %s30 = sadd.s32 %s29, 1
    %s31 = scalar_select %p28, %s29, %s30
    %p34 = pneg %p28
    %p35 = scmp.eq.s32.totalorder %s19, 1
    %p36 = por %p34, %p35
    %p37 = scmp.ne.s32.totalorder %s29, %s32
    %p38 = scmp.eq.s32.totalorder %s19, 0
    %p39 = por %p37, %p38
    %p40 = scmp.ne.s32.totalorder %s29, %s32
    %p41 = scmp.eq.s32.totalorder %s24, 1
    %p42 = por %p40, %p41
    %p43 = scmp.ne.s32.totalorder %s32, %s33
    %p44 = scmp.eq.s32.totalorder %s24, 0
    %p45 = por %p43, %p44
    %p46 = scmp.ne.s32.totalorder %s32, %s33
    %p47 = scmp.eq.s32.totalorder %s25, 1
    %p48 = por %p46, %p47
    %p50 = scmp.ne.s32.totalorder %s33, %s49
    %p51 = scmp.eq.s32.totalorder %s25, 0
    %p52 = por %p50, %p51
    %s54 = sadd.s32 %s53, 1
    %p57 = scmp.eq.s32.totalorder %s19, 1
    %p58 = scmp.ne.s32.totalorder %s53, %s55
    %p59 = scmp.eq.s32.totalorder %s19, 0
    %p60 = por %p58, %p59
    %p61 = scmp.ne.s32.totalorder %s53, %s55
    %p62 = scmp.eq.s32.totalorder %s24, 1
    %p63 = por %p61, %p62
    %p64 = scmp.ne.s32.totalorder %s55, %s56
    %p65 = scmp.eq.s32.totalorder %s24, 0
    %p66 = por %p64, %p65
    %p67 = scmp.ne.s32.totalorder %s55, %s56
    %p68 = scmp.eq.s32.totalorder %s25, 1
    %p69 = por %p67, %p68
    %p71 = scmp.ne.s32.totalorder %s56, %s70
    %p72 = scmp.eq.s32.totalorder %s25, 0
    %p73 = por %p71, %p72
    %s75 = sadd.s32 %s74, 1
    %p78 = scmp.eq.s32.totalorder %s19, 1
    %p79 = scmp.ne.s32.totalorder %s74, %s76
    %p80 = scmp.eq.s32.totalorder %s19, 0
    %p81 = por %p79, %p80
    %p82 = scmp.ne.s32.totalorder %s74, %s76
    %p83 = scmp.eq.s32.totalorder %s24, 1
    %p84 = por %p82, %p83
    %p85 = scmp.ne.s32.totalorder %s76, %s77
    %p86 = scmp.eq.s32.totalorder %s24, 0
    %p87 = por %p85, %p86
    %p88 = scmp.ne.s32.totalorder %s76, %s77
    %p89 = scmp.eq.s32.totalorder %s25, 1
    %p90 = por %p88, %p89
    %p92 = scmp.ne.s32.totalorder %s77, %s91
    %p93 = scmp.eq.s32.totalorder %s25, 0
    %p94 = por %p92, %p93
    %s96 = sadd.s32 %s95, 1
    %p99 = scmp.eq.s32.totalorder %s19, 1
    %p100 = scmp.ne.s32.totalorder %s95, %s97
    %p101 = scmp.eq.s32.totalorder %s19, 0
    %p102 = por %p100, %p101
    %p103 = scmp.ne.s32.totalorder %s95, %s97
    %p104 = scmp.eq.s32.totalorder %s24, 1
    %p105 = por %p103, %p104
    %p106 = scmp.ne.s32.totalorder %s97, %s98
    %p107 = scmp.eq.s32.totalorder %s24, 0
    %p108 = por %p106, %p107
    %p109 = scmp.ne.s32.totalorder %s97, %s98
    %p110 = scmp.eq.s32.totalorder %s25, 1
    %p111 = por %p109, %p110
    %p113 = scmp.ne.s32.totalorder %s98, %s112
    %p114 = scmp.eq.s32.totalorder %s25, 0
    %p115 = por %p113, %p114
    %s117 = sadd.s32 %s116, 1
    %p120 = scmp.eq.s32.totalorder %s19, 1
    %p121 = scmp.ne.s32.totalorder %s116, %s118
    %p122 = scmp.eq.s32.totalorder %s19, 0
    %p123 = por %p121, %p122
    %p124 = scmp.ne.s32.totalorder %s116, %s118
    %p125 = scmp.eq.s32.totalorder %s24, 1
    %p126 = por %p124, %p125
    %p127 = scmp.ne.s32.totalorder %s118, %s119
    %p128 = scmp.eq.s32.totalorder %s24, 0
    %p129 = por %p127, %p128
    %p130 = scmp.ne.s32.totalorder %s118, %s119
    %p131 = scmp.eq.s32.totalorder %s25, 1
    %p132 = por %p130, %p131
    %p134 = scmp.ne.s32.totalorder %s119, %s133
    %p135 = scmp.eq.s32.totalorder %s25, 0
    %p136 = por %p134, %p135
    %s138 = sadd.s32 %s137, 1
    %p141 = scmp.eq.s32.totalorder %s19, 1
    %p142 = scmp.ne.s32.totalorder %s137, %s139
    %p143 = scmp.eq.s32.totalorder %s19, 0
    %p144 = por %p142, %p143
    %p145 = scmp.ne.s32.totalorder %s137, %s139
    %p146 = scmp.eq.s32.totalorder %s24, 1
    %p147 = por %p145, %p146
    %p148 = scmp.ne.s32.totalorder %s139, %s140
    %p149 = scmp.eq.s32.totalorder %s24, 0
    %p150 = por %p148, %p149
    %p151 = scmp.ne.s32.totalorder %s139, %s140
    %p152 = scmp.eq.s32.totalorder %s25, 1
    %p153 = por %p151, %p152
    %p155 = scmp.ne.s32.totalorder %s140, %s154
    %p156 = scmp.eq.s32.totalorder %s25, 0
    %p157 = por %p155, %p156
    %s159 = sadd.s32 %s158, 1
    %p162 = scmp.eq.s32.totalorder %s19, 1
    %p163 = scmp.ne.s32.totalorder %s158, %s160
    %p164 = scmp.eq.s32.totalorder %s19, 0
    %p165 = por %p163, %p164
    %p166 = scmp.ne.s32.totalorder %s158, %s160
    %p167 = scmp.eq.s32.totalorder %s24, 1
    %p168 = por %p166, %p167
    %p169 = scmp.ne.s32.totalorder %s160, %s161
    %p170 = scmp.eq.s32.totalorder %s24, 0
    %p171 = por %p169, %p170
    %p172 = scmp.ne.s32.totalorder %s160, %s161
    %p173 = scmp.eq.s32.totalorder %s25, 1
    %p174 = por %p172, %p173
    %p176 = scmp.ne.s32.totalorder %s161, %s175
    %p177 = scmp.eq.s32.totalorder %s25, 0
    %p178 = por %p176, %p177
    %s180 = sadd.s32 %s179, 1
    %p183 = scmp.eq.s32.totalorder %s19, 1
    %p184 = scmp.ne.s32.totalorder %s179, %s181
    %p185 = scmp.eq.s32.totalorder %s19, 0
    %p186 = por %p184, %p185
    %p187 = scmp.ne.s32.totalorder %s179, %s181
    %p188 = scmp.eq.s32.totalorder %s24, 1
    %p189 = por %p187, %p188
    %p190 = scmp.ne.s32.totalorder %s181, %s182
    %p191 = scmp.eq.s32.totalorder %s24, 0
    %p192 = por %p190, %p191
    %p193 = scmp.ne.s32.totalorder %s181, %s182
    %p194 = scmp.eq.s32.totalorder %s25, 1
    %p195 = por %p193, %p194
    %p197 = scmp.ne.s32.totalorder %s182, %s196
    %p198 = scmp.eq.s32.totalorder %s25, 0
    %p199 = por %p197, %p198
    %s201 = sadd.s32 %s200, 1
    %p204 = scmp.eq.s32.totalorder %s19, 1
    %p205 = scmp.ne.s32.totalorder %s200, %s202
    %p206 = scmp.eq.s32.totalorder %s19, 0
    %p207 = por %p205, %p206
    %p208 = scmp.ne.s32.totalorder %s200, %s202
    %p209 = scmp.eq.s32.totalorder %s24, 1
    %p210 = por %p208, %p209
    %p211 = scmp.ne.s32.totalorder %s202, %s203
    %p212 = scmp.eq.s32.totalorder %s24, 0
    %p213 = por %p211, %p212
    %p214 = scmp.ne.s32.totalorder %s202, %s203
    %p215 = scmp.eq.s32.totalorder %s25, 1
    %p216 = por %p214, %p215
    %p218 = scmp.ne.s32.totalorder %s203, %s217
    %p219 = scmp.eq.s32.totalorder %s25, 0
    %p220 = por %p218, %p219
    %s222 = sadd.s32 %s221, 1
    %p225 = scmp.eq.s32.totalorder %s19, 1
    %p226 = scmp.ne.s32.totalorder %s221, %s223
    %p227 = scmp.eq.s32.totalorder %s19, 0
    %p228 = por %p226, %p227
    %p229 = scmp.ne.s32.totalorder %s221, %s223
    %p230 = scmp.eq.s32.totalorder %s24, 1
    %p231 = por %p229, %p230
    %p232 = scmp.ne.s32.totalorder %s223, %s224
    %p233 = scmp.eq.s32.totalorder %s24, 0
    %p234 = por %p232, %p233
    %p235 = scmp.ne.s32.totalorder %s223, %s224
    %p236 = scmp.eq.s32.totalorder %s25, 1
    %p237 = por %p235, %p236
    %p239 = scmp.ne.s32.totalorder %s224, %s238
    %p240 = scmp.eq.s32.totalorder %s25, 0
    %p241 = por %p239, %p240
    %s243 = sadd.s32 %s242, 1
    %p246 = scmp.eq.s32.totalorder %s19, 1
    %p247 = scmp.ne.s32.totalorder %s242, %s244
    %p248 = scmp.eq.s32.totalorder %s19, 0
    %p249 = por %p247, %p248
    %p250 = scmp.ne.s32.totalorder %s242, %s244
    %p251 = scmp.eq.s32.totalorder %s24, 1
    %p252 = por %p250, %p251
    %p253 = scmp.ne.s32.totalorder %s244, %s245
    %p254 = scmp.eq.s32.totalorder %s24, 0
    %p255 = por %p253, %p254
    %p256 = scmp.ne.s32.totalorder %s244, %s245
    %p257 = scmp.eq.s32.totalorder %s25, 1
    %p258 = por %p256, %p257
    %p260 = scmp.ne.s32.totalorder %s245, %s259
    %p261 = scmp.eq.s32.totalorder %s25, 0
    %p262 = por %p260, %p261
    %s264 = sadd.s32 %s263, 1
    %p267 = scmp.eq.s32.totalorder %s19, 1
    %p268 = scmp.ne.s32.totalorder %s263, %s265
    %p269 = scmp.eq.s32.totalorder %s19, 0
    %p270 = por %p268, %p269
    %p271 = scmp.ne.s32.totalorder %s263, %s265
    %p272 = scmp.eq.s32.totalorder %s24, 1
    %p273 = por %p271, %p272
    %p274 = scmp.ne.s32.totalorder %s265, %s266
    %p275 = scmp.eq.s32.totalorder %s24, 0
    %p276 = por %p274, %p275
    %p277 = scmp.ne.s32.totalorder %s265, %s266
    %p278 = scmp.eq.s32.totalorder %s25, 1
    %p279 = por %p277, %p278
    %p281 = scmp.ne.s32.totalorder %s266, %s280
    %p282 = scmp.eq.s32.totalorder %s25, 0
    %p283 = por %p281, %p282
    %s285 = sadd.s32 %s284, 1
    %p288 = scmp.eq.s32.totalorder %s19, 1
    %p289 = scmp.ne.s32.totalorder %s284, %s286
    %p290 = scmp.eq.s32.totalorder %s19, 0
    %p291 = por %p289, %p290
    %p292 = scmp.ne.s32.totalorder %s284, %s286
    %p293 = scmp.eq.s32.totalorder %s24, 1
    %p294 = por %p292, %p293
    %p295 = scmp.ne.s32.totalorder %s286, %s287
    %p296 = scmp.eq.s32.totalorder %s24, 0
    %p297 = por %p295, %p296
    %p298 = scmp.ne.s32.totalorder %s286, %s287
    %p299 = scmp.eq.s32.totalorder %s25, 1
    %p300 = por %p298, %p299
    %p302 = scmp.ne.s32.totalorder %s287, %s301
    %p303 = scmp.eq.s32.totalorder %s25, 0
    %p304 = por %p302, %p303
    %s305 = ssub.s32 %s19, %s26
    %p306 = scmp.eq.s32.totalorder %s305, 0
    %s308 = sadd.s32 %s307, 1
    %s309 = scalar_select %p306, %s307, %s308
    %p312 = pneg %p306
    %p313 = scmp.eq.s32.totalorder %s19, 1
    %p314 = por %p312, %p313
    %p315 = scmp.ne.s32.totalorder %s307, %s310
    %p316 = scmp.eq.s32.totalorder %s19, 0
    %p317 = por %p315, %p316
    %p318 = scmp.ne.s32.totalorder %s307, %s310
    %p319 = scmp.eq.s32.totalorder %s24, 1
    %p320 = por %p318, %p319
    %p321 = scmp.ne.s32.totalorder %s310, %s311
    %p322 = scmp.eq.s32.totalorder %s24, 0
    %p323 = por %p321, %p322
    %p324 = scmp.ne.s32.totalorder %s310, %s311
    %p325 = scmp.eq.s32.totalorder %s25, 1
    %p326 = por %p324, %p325
    %p328 = scmp.ne.s32.totalorder %s311, %s327
    %p329 = scmp.eq.s32.totalorder %s25, 0
    %p330 = por %p328, %p329
    %p331 = scmp.le.s32.totalorder 1, %s19
    %p332 = scmp.lt.s32.totalorder %s19, 3
    %p333 = pnand %p331, %p332
    %p334 = pneg %p333
    // Predicated region
    $region9: #{tpu_custom_call.1} parent=5 // pred_check
      _
    $region10: #{tpu_custom_call.1} parent=5 // pred_check_branch
      %336 = sbr.rel (%p333) target = $region12
    $region11: #{tpu_custom_call.1} parent=5 // pred_region
      %s337 = ssub.s32 %s19, 1
      // Predicated region
      $region13: #{tpu_custom_call.1} parent=11 // pred_check
        %p338 = pneg %p66
      $region14: #{tpu_custom_call.1} parent=11 // pred_check_branch
        %340 = sbr.rel (%p338) target = $region16
      $region15: #{tpu_custom_call.1} parent=11 // pred_region
        _
      $region16: #{tpu_custom_call.1} parent=11 // pred_fallthru
        _
      // Predicated region
      $region17: #{tpu_custom_call.1} parent=11 // pred_check
        %p341 = pneg %p87
      $region18: #{tpu_custom_call.1} parent=11 // pred_check_branch
        %343 = sbr.rel (%p341) target = $region20
      $region19: #{tpu_custom_call.1} parent=11 // pred_region
        _
      $region20: #{tpu_custom_call.1} parent=11 // pred_fallthru
        _
      // Predicated region
      $region21: #{tpu_custom_call.1} parent=11 // pred_check
        %p344 = pneg %p108
      $region22: #{tpu_custom_call.1} parent=11 // pred_check_branch
        %346 = sbr.rel (%p344) target = $region24
      $region23: #{tpu_custom_call.1} parent=11 // pred_region
        _
      $region24: #{tpu_custom_call.1} parent=11 // pred_fallthru
        _
      // Predicated region
      $region25: #{tpu_custom_call.1} parent=11 // pred_check
        %p347 = pneg %p129
      $region26: #{tpu_custom_call.1} parent=11 // pred_check_branch
        %349 = sbr.rel (%p347) target = $region28
      $region27: #{tpu_custom_call.1} parent=11 // pred_region
        _
      $region28: #{tpu_custom_call.1} parent=11 // pred_fallthru
        _
      // Predicated region
      $region29: #{tpu_custom_call.1} parent=11 // pred_check
        %p350 = pneg %p150
      $region30: #{tpu_custom_call.1} parent=11 // pred_check_branch
        %352 = sbr.rel (%p350) target = $region32
      $region31: #{tpu_custom_call.1} parent=11 // pred_region
        _
      $region32: #{tpu_custom_call.1} parent=11 // pred_fallthru
        _
      // Predicated region
      $region33: #{tpu_custom_call.1} parent=11 // pred_check
        %p353 = pneg %p171
      $region34: #{tpu_custom_call.1} parent=11 // pred_check_branch
        %355 = sbr.rel (%p353) target = $region36
      $region35: #{tpu_custom_call.1} parent=11 // pred_region
        _
      $region36: #{tpu_custom_call.1} parent=11 // pred_fallthru
        _
      // Predicated region
      $region37: #{tpu_custom_call.1} parent=11 // pred_check
        %p356 = pneg %p192
      $region38: #{tpu_custom_call.1} parent=11 // pred_check_branch
        %358 = sbr.rel (%p356) target = $region40
      $region39: #{tpu_custom_call.1} parent=11 // pred_region
        _
      $region40: #{tpu_custom_call.1} parent=11 // pred_fallthru
        _
      // Predicated region
      $region41: #{tpu_custom_call.1} parent=11 // pred_check
        %p359 = pneg %p213
      $region42: #{tpu_custom_call.1} parent=11 // pred_check_branch
        %361 = sbr.rel (%p359) target = $region44
      $region43: #{tpu_custom_call.1} parent=11 // pred_region
        _
      $region44: #{tpu_custom_call.1} parent=11 // pred_fallthru
        _
      // Predicated region
      $region45: #{tpu_custom_call.1} parent=11 // pred_check
        %p362 = pneg %p234
      $region46: #{tpu_custom_call.1} parent=11 // pred_check_branch
        %364 = sbr.rel (%p362) target = $region48
      $region47: #{tpu_custom_call.1} parent=11 // pred_region
        _
      $region48: #{tpu_custom_call.1} parent=11 // pred_fallthru
        _
      // Predicated region
      $region49: #{tpu_custom_call.1} parent=11 // pred_check
        %p365 = pneg %p255
      $region50: #{tpu_custom_call.1} parent=11 // pred_check_branch
        %367 = sbr.rel (%p365) target = $region52
      $region51: #{tpu_custom_call.1} parent=11 // pred_region
        _
      $region52: #{tpu_custom_call.1} parent=11 // pred_fallthru
        _
      // Predicated region
      $region53: #{tpu_custom_call.1} parent=11 // pred_check
        %p368 = pneg %p276
      $region54: #{tpu_custom_call.1} parent=11 // pred_check_branch
        %370 = sbr.rel (%p368) target = $region56
      $region55: #{tpu_custom_call.1} parent=11 // pred_region
        _
      $region56: #{tpu_custom_call.1} parent=11 // pred_fallthru
        _
      // Predicated region
      $region57: #{tpu_custom_call.1} parent=11 // pred_check
        %p371 = pneg %p297
      $region58: #{tpu_custom_call.1} parent=11 // pred_check_branch
        %373 = sbr.rel (%p371) target = $region60
      $region59: #{tpu_custom_call.1} parent=11 // pred_region
        _
      $region60: #{tpu_custom_call.1} parent=11 // pred_fallthru
        _
    $region12: #{tpu_custom_call.1} parent=5 // pred_fallthru
      _
    %p374 = scmp.lt.s32.totalorder %s19, 2
    // Predicated region
    $region61: #{tpu_custom_call.1} parent=5 // pred_check
      %p375 = pneg %p374
    $region62: #{tpu_custom_call.1} parent=5 // pred_check_branch
      %377 = sbr.rel (%p375) target = $region64
    $region63: #{tpu_custom_call.1} parent=5 // pred_region
      // Predicated region
      $region65: #{tpu_custom_call.1} parent=63 // pred_check
        %p378 = pneg %p39
      $region66: #{tpu_custom_call.1} parent=63 // pred_check_branch
        %380 = sbr.rel (%p378) target = $region68
      $region67: #{tpu_custom_call.1} parent=63 // pred_region
        %p381 = scmp.lt.s32.totalorder %s19, 1
        %s382 = scalar_select %p381, %s19, 1
        %s383 = smul.addr %s382, 32
        %s384 = smul.addr %s383, 4
        %s385 = scalar_lea.vmem %s0, %s384
      $region68: #{tpu_custom_call.1} parent=63 // pred_fallthru
        _
    $region64: #{tpu_custom_call.1} parent=5 // pred_fallthru
      _
    %p386 = scmp.le.s32.totalorder 1, %s19
    %p387 = scmp.lt.s32.totalorder %s19, 3
    %p388 = pnand %p386, %p387
    %p389 = pneg %p388
    // Predicated region
    $region69: #{tpu_custom_call.1} parent=5 // pred_check
      _
    $region70: #{tpu_custom_call.1} parent=5 // pred_check_branch
      %391 = sbr.rel (%p388) target = $region72
    $region71: #{tpu_custom_call.1} parent=5 // pred_region
      %s392 = ssub.s32 %s19, 1
      %p393 = scmp.lt.s32.totalorder %s24, 1
      %s394 = scalar_select %p393, %s24, 1
      %s395 = smul.addr %s394, 32
      %s396 = smul.addr %s395, 4
      %s397 = scalar_lea.vmem %s0, %s396
      %p398 = pneg %p45
      %p399 = pneg %p42
      %p400 = pneg %p66
      %p401 = pneg %p63
      %p402 = pneg %p87
      %p403 = pneg %p84
      %p404 = pneg %p108
      %p405 = pneg %p105
      %p406 = pneg %p129
      %p407 = pneg %p126
      %p408 = pneg %p150
      %p409 = pneg %p147
      %p410 = pneg %p171
      %p411 = pneg %p168
      %p412 = pneg %p192
      %p413 = pneg %p189
      %p414 = pneg %p213
      %p415 = pneg %p210
      %p416 = pneg %p234
      %p417 = pneg %p231
      %p418 = pneg %p255
      %p419 = pneg %p252
      %p420 = pneg %p276
      %p421 = pneg %p273
      %p422 = pneg %p297
      %p423 = pneg %p294
      %p424 = pneg %p323
      %p425 = pneg %p320
      %p426 = scmp.lt.s32.totalorder %s24, 1
      %s427 = scalar_select %p426, %s24, 1
      %s428 = smul.addr %s427, 32
      %s429 = smul.addr %s428, 8
      %s430 = scalar_lea.vmem %s13, %s429
      %p431 = scmp.lt.s32.totalorder %s24, 1
      %s432 = scalar_select %p431, %s24, 1
      %s433 = smul.addr %s432, 32
      %s434 = smul.addr %s433, 4
      %s435 = scalar_lea.vmem %s0, %s434
      %p436 = scmp.lt.s32.totalorder %s24, 1
      %s437 = scalar_select %p436, %s24, 1
      %s438 = smul.addr %s437, 32
      %s439 = smul.addr %s438, 8
      %s440 = scalar_lea.vmem %s13, %s439
      %v442 = vld [vmem:[%s435] sm:$0xf]
      %v443 = vld [vmem:[%s435 + $0x4] sm:$0xf]
      %v444 = vld [vmem:[%s435 + $0x8] sm:$0xf]
      %v445 = vld [vmem:[%s435 + $0xc] sm:$0xf]
      %v446 = vld [vmem:[%s435 + $0x10] sm:$0xf]
      %v447 = vld [vmem:[%s435 + $0x14] sm:$0xf]
      %v448 = vld [vmem:[%s435 + $0x18] sm:$0xf]
      %v449 = vld [vmem:[%s435 + $0x1c] sm:$0xf]
      %v450 = vld [vmem:[%s435 + $0x20] sm:$0xf]
      %v451 = vld [vmem:[%s435 + $0x24] sm:$0xf]
      %v452 = vld [vmem:[%s435 + $0x28] sm:$0xf]
      %v453 = vld [vmem:[%s435 + $0x2c] sm:$0xf]
      %v454 = vld [vmem:[%s435 + $0x30] sm:$0xf]
      %v455 = vld [vmem:[%s435 + $0x34] sm:$0xf]
      %v456 = vld [vmem:[%s435 + $0x38] sm:$0xf]
      %v457 = vld [vmem:[%s435 + $0x3c] sm:$0xf]
      %v458 = vld [vmem:[%s435 + $0x40] sm:$0xf]
      %v459 = vld [vmem:[%s435 + $0x44] sm:$0xf]
      %v460 = vld [vmem:[%s435 + $0x48] sm:$0xf]
      %v461 = vld [vmem:[%s435 + $0x4c] sm:$0xf]
      %v462 = vld [vmem:[%s435 + $0x50] sm:$0xf]
      %v463 = vld [vmem:[%s435 + $0x54] sm:$0xf]
      %v464 = vld [vmem:[%s435 + $0x58] sm:$0xf]
      %v465 = vld [vmem:[%s435 + $0x5c] sm:$0xf]
      %v466 = vld [vmem:[%s435 + $0x60] sm:$0xf]
      %v467 = vld [vmem:[%s435 + $0x64] sm:$0xf]
      %v468 = vld [vmem:[%s435 + $0x68] sm:$0xf]
      %v469 = vld [vmem:[%s435 + $0x6c] sm:$0xf]
      %v470 = vld [vmem:[%s435 + $0x70] sm:$0xf]
      %v471 = vld [vmem:[%s435 + $0x74] sm:$0xf]
      %v472 = vld [vmem:[%s435 + $0x78] sm:$0xf]
      %v473 = vld [vmem:[%s435 + $0x7c] sm:$0xf]
      %v474 = vld [vmem:[%s1] sm:$0x3]
      %v507 = vunpack.c.l.b16 %v442
      %v508 = vunpack.c.l.b16 %v443
      %v509 = vunpack.c.l.b16 %v444
      %v510 = vunpack.c.l.b16 %v445
      %v511 = vunpack.c.l.b16 %v446
      %v512 = vunpack.c.l.b16 %v447
      %v513 = vunpack.c.l.b16 %v448
      %v514 = vunpack.c.l.b16 %v449
      %v515 = vunpack.c.l.b16 %v450
      %v516 = vunpack.c.l.b16 %v451
      %v517 = vunpack.c.l.b16 %v452
      %v518 = vunpack.c.l.b16 %v453
      %v519 = vunpack.c.l.b16 %v454
      %v520 = vunpack.c.l.b16 %v455
      %v521 = vunpack.c.l.b16 %v456
      %v522 = vunpack.c.l.b16 %v457
      %v523 = vunpack.c.l.b16 %v458
      %v524 = vunpack.c.l.b16 %v459
      %v525 = vunpack.c.l.b16 %v460
      %v526 = vunpack.c.l.b16 %v461
      %v527 = vunpack.c.l.b16 %v462
      %v528 = vunpack.c.l.b16 %v463
      %v529 = vunpack.c.l.b16 %v464
      %v530 = vunpack.c.l.b16 %v465
      %v531 = vunpack.c.l.b16 %v466
      %v532 = vunpack.c.l.b16 %v467
      %v533 = vunpack.c.l.b16 %v468
      %v534 = vunpack.c.l.b16 %v469
      %v535 = vunpack.c.l.b16 %v470
      %v536 = vunpack.c.l.b16 %v471
      %v537 = vunpack.c.l.b16 %v472
      %v538 = vunpack.c.l.b16 %v473
      %v539 = vpack.c.b16 %v508, %v507
      %v540 = vpack.c.b16 %v510, %v509
      %v541 = vpack.c.b16 %v512, %v511
      %v542 = vpack.c.b16 %v514, %v513
      %v543 = vpack.c.b16 %v516, %v515
      %v544 = vpack.c.b16 %v518, %v517
      %v545 = vpack.c.b16 %v520, %v519
      %v546 = vpack.c.b16 %v522, %v521
      %v547 = vpack.c.b16 %v524, %v523
      %v548 = vpack.c.b16 %v526, %v525
      %v549 = vpack.c.b16 %v528, %v527
      %v550 = vpack.c.b16 %v530, %v529
      %v551 = vpack.c.b16 %v532, %v531
      %v552 = vpack.c.b16 %v534, %v533
      %v553 = vpack.c.b16 %v536, %v535
      %v554 = vpack.c.b16 %v538, %v537
      %vm555 = vcmask 31744
      %v557 = vsel %vm555, %v539, 0
      %v560 = vsel %vm555, %v540, 0
      %v563 = vsel %vm555, %v541, 0
      %v566 = vsel %vm555, %v542, 0
      %v569 = vsel %vm555, %v543, 0
      %v572 = vsel %vm555, %v544, 0
      %v575 = vsel %vm555, %v545, 0
      %v578 = vsel %vm555, %v546, 0
      %v581 = vsel %vm555, %v547, 0
      %v584 = vsel %vm555, %v548, 0
      %v587 = vsel %vm555, %v549, 0
      %v590 = vsel %vm555, %v550, 0
      %v593 = vsel %vm555, %v551, 0
      %v596 = vsel %vm555, %v552, 0
      %v599 = vsel %vm555, %v553, 0
      %v602 = vsel %vm555, %v554, 0
      %vm604 = vcmask 1041408
      %v606 = vsel %vm604, %v474, 0
      %608 = vmatprep.subr.bf16.mxu0 0
      %609 = vmatpush1.bf16.msra.mxu0 %v606
      %610 = vmatprep.subr.bf16.mxu0 0
      %611 = vmatpush1.bf16.msra.mxu0 0
      %612 = vmatprep.subr.bf16.mxu0 0
      %613 = vmatpush1.bf16.msra.mxu0 0
      %614 = vmatprep.subr.bf16.mxu0 0
      %615 = vmatpush1.bf16.msra.mxu0 0
      %616 = vmatprep.subr.bf16.mxu0 0
      %617 = vmatpush1.bf16.msra.mxu0 0
      %618 = vmatprep.subr.bf16.mxu0 0
      %619 = vmatpush1.bf16.msra.mxu0 0
      %620 = vmatprep.subr.bf16.mxu0 0
      %621 = vmatpush1.bf16.msra.mxu0 0
      %622 = vmatprep.subr.bf16.mxu0 0
      %623 = vmatpush1.bf16.msra.mxu0 0
      %624 = vmatprep.subr.bf16.mxu0 0
      %625 = vmatpush1.bf16.msra.mxu0 0
      %626 = vmatprep.subr.bf16.mxu0 0
      %627 = vmatpush1.bf16.msra.mxu0 0
      %628 = vmatprep.subr.bf16.mxu0 0
      %629 = vmatpush1.bf16.msra.mxu0 0
      %630 = vmatprep.subr.bf16.mxu0 0
      %631 = vmatpush1.bf16.msra.mxu0 0
      %632 = vmatprep.subr.bf16.mxu0 0
      %633 = vmatpush1.bf16.msra.mxu0 0
      %634 = vmatprep.subr.bf16.mxu0 0
      %635 = vmatpush1.bf16.msra.mxu0 0
      %636 = vmatprep.subr.bf16.mxu0 0
      %637 = vmatpush1.bf16.msra.mxu0 0
      %638 = vmatprep.subr.bf16.mxu0 0
      %639 = vmatpush1.bf16.msra.mxu0 0
      %640 = vmatprep.mubr.bf16.mxu0 0
      %641 = vmatmul.mubr.bf16.gmra.mrb[0].mxu0 %v557
      %v642 = vpop.f32.mrb[0].mxu0
      %v643 = vadd.f32 0.0, %v642
      %v644 = vpop.f32.mrb[0].mxu0
      %v645 = vpop.f32.mrb[0].mxu0
      %v646 = vadd.f32 0.0, %v645
      %v647 = vpop.f32.mrb[0].mxu0
      %648 = vmatprep.mubr.bf16.mxu0 0
      %649 = vmatmul.mubr.bf16.gmra.mrb[0].mxu0 %v560
      %v650 = vpop.f32.mrb[0].mxu0
      %v651 = vadd.f32 0.0, %v650
      %v652 = vpop.f32.mrb[0].mxu0
      %v653 = vpop.f32.mrb[0].mxu0
      %v654 = vadd.f32 0.0, %v653
      %v655 = vpop.f32.mrb[0].mxu0
      %656 = vmatprep.mubr.bf16.mxu0 0
      %657 = vmatmul.mubr.bf16.gmra.mrb[0].mxu0 %v563
      %v658 = vpop.f32.mrb[0].mxu0
      %v659 = vadd.f32 0.0, %v658
      %v660 = vpop.f32.mrb[0].mxu0
      %v661 = vpop.f32.mrb[0].mxu0
      %v662 = vadd.f32 0.0, %v661
      %v663 = vpop.f32.mrb[0].mxu0
      %664 = vmatprep.mubr.bf16.mxu0 0
      %665 = vmatmul.mubr.bf16.gmra.mrb[0].mxu0 %v566
      %v666 = vpop.f32.mrb[0].mxu0
      %v667 = vadd.f32 0.0, %v666
      %v668 = vpop.f32.mrb[0].mxu0
      %v669 = vpop.f32.mrb[0].mxu0
      %v670 = vadd.f32 0.0, %v669
      %v671 = vpop.f32.mrb[0].mxu0
      %672 = vmatprep.mubr.bf16.mxu0 0
      %673 = vmatmul.mubr.bf16.gmra.mrb[0].mxu0 %v569
      %v674 = vpop.f32.mrb[0].mxu0
      %v675 = vadd.f32 0.0, %v674
      %v676 = vpop.f32.mrb[0].mxu0
      %v677 = vpop.f32.mrb[0].mxu0
      %v678 = vadd.f32 0.0, %v677
      %v679 = vpop.f32.mrb[0].mxu0
      %680 = vmatprep.mubr.bf16.mxu0 0
      %681 = vmatmul.mubr.bf16.gmra.mrb[0].mxu0 %v572
      %v682 = vpop.f32.mrb[0].mxu0
      %v683 = vadd.f32 0.0, %v682
      %v684 = vpop.f32.mrb[0].mxu0
      %v685 = vpop.f32.mrb[0].mxu0
      %v686 = vadd.f32 0.0, %v685
      %v687 = vpop.f32.mrb[0].mxu0
      %688 = vmatprep.mubr.bf16.mxu0 0
      %689 = vmatmul.mubr.bf16.gmra.mrb[0].mxu0 %v575
      %v690 = vpop.f32.mrb[0].mxu0
      %v691 = vadd.f32 0.0, %v690
      %v692 = vpop.f32.mrb[0].mxu0
      %v693 = vpop.f32.mrb[0].mxu0
      %v694 = vadd.f32 0.0, %v693
      %v695 = vpop.f32.mrb[0].mxu0
      %696 = vmatprep.mubr.bf16.mxu0 0
      %697 = vmatmul.mubr.bf16.gmra.mrb[0].mxu0 %v578
      %v698 = vpop.f32.mrb[0].mxu0
      %v699 = vadd.f32 0.0, %v698
      %v700 = vpop.f32.mrb[0].mxu0
      %v701 = vpop.f32.mrb[0].mxu0
      %v702 = vadd.f32 0.0, %v701
      %v703 = vpop.f32.mrb[0].mxu0
      %704 = vmatprep.mubr.bf16.mxu0 0
      %705 = vmatmul.mubr.bf16.gmra.mrb[0].mxu0 %v581
      %v706 = vpop.f32.mrb[0].mxu0
      %v707 = vadd.f32 0.0, %v706
      %v708 = vpop.f32.mrb[0].mxu0
      %v709 = vpop.f32.mrb[0].mxu0
      %v710 = vadd.f32 0.0, %v709
      %v711 = vpop.f32.mrb[0].mxu0
      %712 = vmatprep.mubr.bf16.mxu0 0
      %713 = vmatmul.mubr.bf16.gmra.mrb[0].mxu0 %v584
      %v714 = vpop.f32.mrb[0].mxu0
      %v715 = vadd.f32 0.0, %v714
      %v716 = vpop.f32.mrb[0].mxu0
      %v717 = vpop.f32.mrb[0].mxu0
      %v718 = vadd.f32 0.0, %v717
      %v719 = vpop.f32.mrb[0].mxu0
      %720 = vmatprep.mubr.bf16.mxu0 0
      %721 = vmatmul.mubr.bf16.gmra.mrb[0].mxu0 %v587
      %v722 = vpop.f32.mrb[0].mxu0
      %v723 = vadd.f32 0.0, %v722
      %v724 = vpop.f32.mrb[0].mxu0
      %v725 = vpop.f32.mrb[0].mxu0
      %v726 = vadd.f32 0.0, %v725
      %v727 = vpop.f32.mrb[0].mxu0
      %728 = vmatprep.mubr.bf16.mxu0 0
      %729 = vmatmul.mubr.bf16.gmra.mrb[0].mxu0 %v590
      %v730 = vpop.f32.mrb[0].mxu0
      %v731 = vadd.f32 0.0, %v730
      %v732 = vpop.f32.mrb[0].mxu0
      %v733 = vpop.f32.mrb[0].mxu0
      %v734 = vadd.f32 0.0, %v733
      %v735 = vpop.f32.mrb[0].mxu0
      %736 = vmatprep.mubr.bf16.mxu0 0
      %737 = vmatmul.mubr.bf16.gmra.mrb[0].mxu0 %v593
      %v738 = vpop.f32.mrb[0].mxu0
      %v739 = vadd.f32 0.0, %v738
      %v740 = vpop.f32.mrb[0].mxu0
      %v741 = vpop.f32.mrb[0].mxu0
      %v742 = vadd.f32 0.0, %v741
      %v743 = vpop.f32.mrb[0].mxu0
      %744 = vmatprep.mubr.bf16.mxu0 0
      %745 = vmatmul.mubr.bf16.gmra.mrb[0].mxu0 %v596
      %v746 = vpop.f32.mrb[0].mxu0
      %v747 = vadd.f32 0.0, %v746
      %v748 = vpop.f32.mrb[0].mxu0
      %v749 = vpop.f32.mrb[0].mxu0
      %v750 = vadd.f32 0.0, %v749
      %v751 = vpop.f32.mrb[0].mxu0
      %752 = vmatprep.mubr.bf16.mxu0 0
      %753 = vmatmul.mubr.bf16.gmra.mrb[0].mxu0 %v599
      %v754 = vpop.f32.mrb[0].mxu0
      %v755 = vadd.f32 0.0, %v754
      %v756 = vpop.f32.mrb[0].mxu0
      %v757 = vpop.f32.mrb[0].mxu0
      %v758 = vadd.f32 0.0, %v757
      %v759 = vpop.f32.mrb[0].mxu0
      %760 = vmatprep.mubr.bf16.mxu0 0
      %761 = vmatmul.mubr.bf16.gmra.mrb[0].mxu0 %v602
      %v762 = vpop.f32.mrb[0].mxu0
      %v763 = vadd.f32 0.0, %v762
      %v764 = vpop.f32.mrb[0].mxu0
      %v765 = vpop.f32.mrb[0].mxu0
      %v766 = vadd.f32 0.0, %v765
      %v767 = vpop.f32.mrb[0].mxu0
      %768 = vdwg.mxu0
      %v769 = vld [vmem:[%s2] sm:$0x1]
      %v771 = vlaneseq
      %v772 = vshrl.u32 %v771, 7
      %v773 = vsub.s32 0, %v772
      %v774 = vrot.slane %v769, %v773
      %v776 = vmul.f32 %v643, %v774
      %v777 = vmul.f32 %v646, %v774
      %v778 = vmul.f32 %v651, %v774
      %v779 = vmul.f32 %v654, %v774
      %v780 = vmul.f32 %v659, %v774
      %v781 = vmul.f32 %v662, %v774
      %v782 = vmul.f32 %v667, %v774
      %v783 = vmul.f32 %v670, %v774
      %v784 = vmul.f32 %v675, %v774
      %v785 = vmul.f32 %v678, %v774
      %v786 = vmul.f32 %v683, %v774
      %v787 = vmul.f32 %v686, %v774
      %v788 = vmul.f32 %v691, %v774
      %v789 = vmul.f32 %v694, %v774
      %v790 = vmul.f32 %v699, %v774
      %v791 = vmul.f32 %v702, %v774
      %v792 = vmul.f32 %v707, %v774
      %v793 = vmul.f32 %v710, %v774
      %v794 = vmul.f32 %v715, %v774
      %v795 = vmul.f32 %v718, %v774
      %v796 = vmul.f32 %v723, %v774
      %v797 = vmul.f32 %v726, %v774
      %v798 = vmul.f32 %v731, %v774
      %v799 = vmul.f32 %v734, %v774
      %v800 = vmul.f32 %v739, %v774
      %v801 = vmul.f32 %v742, %v774
      %v802 = vmul.f32 %v747, %v774
      %v803 = vmul.f32 %v750, %v774
      %v804 = vmul.f32 %v755, %v774
      %v805 = vmul.f32 %v758, %v774
      %v806 = vmul.f32 %v763, %v774
      %v807 = vmul.f32 %v766, %v774
      %v808 = vld [vmem:[%s3] sm:$0x1]
      %v810 = vlaneseq
      %v811 = vshrl.u32 %v810, 7
      %v812 = vsub.s32 0, %v811
      %v813 = vrot.slane %v808, %v812
      %v815 = vadd.f32 %v776, %v813
      %v816 = vadd.f32 %v777, %v813
      %v817 = vadd.f32 %v778, %v813
      %v818 = vadd.f32 %v779, %v813
      %v819 = vadd.f32 %v780, %v813
      %v820 = vadd.f32 %v781, %v813
      %v821 = vadd.f32 %v782, %v813
      %v822 = vadd.f32 %v783, %v813
      %v823 = vadd.f32 %v784, %v813
      %v824 = vadd.f32 %v785, %v813
      %v825 = vadd.f32 %v786, %v813
      %v826 = vadd.f32 %v787, %v813
      %v827 = vadd.f32 %v788, %v813
      %v828 = vadd.f32 %v789, %v813
      %v829 = vadd.f32 %v790, %v813
      %v830 = vadd.f32 %v791, %v813
      %v831 = vadd.f32 %v792, %v813
      %v832 = vadd.f32 %v793, %v813
      %v833 = vadd.f32 %v794, %v813
      %v834 = vadd.f32 %v795, %v813
      %v835 = vadd.f32 %v796, %v813
      %v836 = vadd.f32 %v797, %v813
      %v837 = vadd.f32 %v798, %v813
      %v838 = vadd.f32 %v799, %v813
      %v839 = vadd.f32 %v800, %v813
      %v840 = vadd.f32 %v801, %v813
      %v841 = vadd.f32 %v802, %v813
      %v842 = vadd.f32 %v803, %v813
      %v843 = vadd.f32 %v804, %v813
      %v844 = vadd.f32 %v805, %v813
      %v845 = vadd.f32 %v806, %v813
      %v846 = vadd.f32 %v807, %v813
      %v847 = vmax.f32 %v815, 0.0
      %v848 = vmax.f32 %v816, 0.0
      %v849 = vmax.f32 %v817, 0.0
      %v850 = vmax.f32 %v818, 0.0
      %v851 = vmax.f32 %v819, 0.0
      %v852 = vmax.f32 %v820, 0.0
      %v853 = vmax.f32 %v821, 0.0
      %v854 = vmax.f32 %v822, 0.0
      %v855 = vmax.f32 %v823, 0.0
      %v856 = vmax.f32 %v824, 0.0
      %v857 = vmax.f32 %v825, 0.0
      %v858 = vmax.f32 %v826, 0.0
      %v859 = vmax.f32 %v827, 0.0
      %v860 = vmax.f32 %v828, 0.0
      %v861 = vmax.f32 %v829, 0.0
      %v862 = vmax.f32 %v830, 0.0
      %v863 = vmax.f32 %v831, 0.0
      %v864 = vmax.f32 %v832, 0.0
      %v865 = vmax.f32 %v833, 0.0
      %v866 = vmax.f32 %v834, 0.0
      %v867 = vmax.f32 %v835, 0.0
      %v868 = vmax.f32 %v836, 0.0
      %v869 = vmax.f32 %v837, 0.0
      %v870 = vmax.f32 %v838, 0.0
      %v871 = vmax.f32 %v839, 0.0
      %v872 = vmax.f32 %v840, 0.0
      %v873 = vmax.f32 %v841, 0.0
      %v874 = vmax.f32 %v842, 0.0
      %v875 = vmax.f32 %v843, 0.0
      %v876 = vmax.f32 %v844, 0.0
      %v877 = vmax.f32 %v845, 0.0
      %v878 = vmax.f32 %v846, 0.0
      %vm912 = vcmask 1046528
      %v913 = vrot.slane 0.0, 1
      %v914 = vsel %vm912, %v913, %v913
      %v915 = vrot.slane %v847, 1
      %v916 = vrot.slane %v848, 1
      %v917 = vsel %vm912, %v915, %v916
      %v918 = vrot.slane %v849, 1
      %v919 = vrot.slane %v850, 1
      %v920 = vsel %vm912, %v918, %v919
      %v921 = vrot.slane %v851, 1
      %v922 = vrot.slane %v852, 1
      %v923 = vsel %vm912, %v921, %v922
      %v924 = vrot.slane %v853, 1
      %v925 = vrot.slane %v854, 1
      %v926 = vsel %vm912, %v924, %v925
      %v927 = vrot.slane %v855, 1
      %v928 = vrot.slane %v856, 1
      %v929 = vsel %vm912, %v927, %v928
      %v930 = vrot.slane %v857, 1
      %v931 = vrot.slane %v858, 1
      %v932 = vsel %vm912, %v930, %v931
      %v933 = vrot.slane %v859, 1
      %v934 = vrot.slane %v860, 1
      %v935 = vsel %vm912, %v933, %v934
      %v936 = vrot.slane %v861, 1
      %v937 = vrot.slane %v862, 1
      %v938 = vsel %vm912, %v936, %v937
      %v939 = vrot.slane %v863, 1
      %v940 = vrot.slane %v864, 1
      %v941 = vsel %vm912, %v939, %v940
      %v942 = vrot.slane %v865, 1
      %v943 = vrot.slane %v866, 1
      %v944 = vsel %vm912, %v942, %v943
      %v945 = vrot.slane %v867, 1
      %v946 = vrot.slane %v868, 1
      %v947 = vsel %vm912, %v945, %v946
      %v948 = vrot.slane %v869, 1
      %v949 = vrot.slane %v870, 1
      %v950 = vsel %vm912, %v948, %v949
      %v951 = vrot.slane %v871, 1
      %v952 = vrot.slane %v872, 1
      %v953 = vsel %vm912, %v951, %v952
      %v954 = vrot.slane %v873, 1
      %v955 = vrot.slane %v874, 1
      %v956 = vsel %vm912, %v954, %v955
      %v957 = vrot.slane %v875, 1
      %v958 = vrot.slane %v876, 1
      %v959 = vsel %vm912, %v957, %v958
      %v960 = vrot.slane %v877, 1
      %v961 = vrot.slane %v878, 1
      %v962 = vsel %vm912, %v960, %v961
      %v997 = vsel %vm912, %v913, 0.0
      %v998 = vsel %vm912, %v916, 0.0
      %v999 = vsel %vm912, %v919, 0.0
      %v1000 = vsel %vm912, %v922, 0.0
      %v1001 = vsel %vm912, %v925, 0.0
      %v1002 = vsel %vm912, %v928, 0.0
      %v1003 = vsel %vm912, %v931, 0.0
      %v1004 = vsel %vm912, %v934, 0.0
      %v1005 = vsel %vm912, %v937, 0.0
      %v1006 = vsel %vm912, %v940, 0.0
      %v1007 = vsel %vm912, %v943, 0.0
      %v1008 = vsel %vm912, %v946, 0.0
      %v1009 = vsel %vm912, %v949, 0.0
      %v1010 = vsel %vm912, %v952, 0.0
      %v1011 = vsel %vm912, %v955, 0.0
      %v1012 = vsel %vm912, %v958, 0.0
      %v1013 = vsel %vm912, %v961, 0.0
      %vm1014 = vcmask 1040384
      %v1015 = vrot.slane 0.0, 7
      %v1016 = vsel %vm1014, %v1015, %v1015
      %v1017 = vrot.slane %v847, 7
      %v1018 = vrot.slane %v848, 7
      %v1019 = vsel %vm1014, %v1017, %v1018
      %v1020 = vrot.slane %v849, 7
      %v1021 = vrot.slane %v850, 7
      %v1022 = vsel %vm1014, %v1020, %v1021
      %v1023 = vrot.slane %v851, 7
      %v1024 = vrot.slane %v852, 7
      %v1025 = vsel %vm1014, %v1023, %v1024
      %v1026 = vrot.slane %v853, 7
      %v1027 = vrot.slane %v854, 7
      %v1028 = vsel %vm1014, %v1026, %v1027
      %v1029 = vrot.slane %v855, 7
      %v1030 = vrot.slane %v856, 7
      %v1031 = vsel %vm1014, %v1029, %v1030
      %v1032 = vrot.slane %v857, 7
      %v1033 = vrot.slane %v858, 7
      %v1034 = vsel %vm1014, %v1032, %v1033
      %v1035 = vrot.slane %v859, 7
      %v1036 = vrot.slane %v860, 7
      %v1037 = vsel %vm1014, %v1035, %v1036
      %v1038 = vrot.slane %v861, 7
      %v1039 = vrot.slane %v862, 7
      %v1040 = vsel %vm1014, %v1038, %v1039
      %v1041 = vrot.slane %v863, 7
      %v1042 = vrot.slane %v864, 7
      %v1043 = vsel %vm1014, %v1041, %v1042
      %v1044 = vrot.slane %v865, 7
      %v1045 = vrot.slane %v866, 7
      %v1046 = vsel %vm1014, %v1044, %v1045
      %v1047 = vrot.slane %v867, 7
      %v1048 = vrot.slane %v868, 7
      %v1049 = vsel %vm1014, %v1047, %v1048
      %v1050 = vrot.slane %v869, 7
      %v1051 = vrot.slane %v870, 7
      %v1052 = vsel %vm1014, %v1050, %v1051
      %v1053 = vrot.slane %v871, 7
      %v1054 = vrot.slane %v872, 7
      %v1055 = vsel %vm1014, %v1053, %v1054
      %v1056 = vrot.slane %v873, 7
      %v1057 = vrot.slane %v874, 7
      %v1058 = vsel %vm1014, %v1056, %v1057
      %v1059 = vrot.slane %v875, 7
      %v1060 = vrot.slane %v876, 7
      %v1061 = vsel %vm1014, %v1059, %v1060
      %v1062 = vrot.slane %v877, 7
      %v1063 = vrot.slane %v878, 7
      %v1064 = vsel %vm1014, %v1062, %v1063
      %v1099 = vsel %vm1014, 0.0, %v1015
      %v1100 = vsel %vm1014, 0.0, %v1017
      %v1101 = vsel %vm1014, 0.0, %v1020
      %v1102 = vsel %vm1014, 0.0, %v1023
      %v1103 = vsel %vm1014, 0.0, %v1026
      %v1104 = vsel %vm1014, 0.0, %v1029
      %v1105 = vsel %vm1014, 0.0, %v1032
      %v1106 = vsel %vm1014, 0.0, %v1035
      %v1107 = vsel %vm1014, 0.0, %v1038
      %v1108 = vsel %vm1014, 0.0, %v1041
      %v1109 = vsel %vm1014, 0.0, %v1044
      %v1110 = vsel %vm1014, 0.0, %v1047
      %v1111 = vsel %vm1014, 0.0, %v1050
      %v1112 = vsel %vm1014, 0.0, %v1053
      %v1113 = vsel %vm1014, 0.0, %v1056
      %v1114 = vsel %vm1014, 0.0, %v1059
      %v1115 = vsel %vm1014, 0.0, %v1062
      %v1116 = vpack.c.bf16 %v1016, %v1099
      %v1117 = vpack.c.bf16 %v1019, %v1100
      %v1118 = vpack.c.bf16 %v1022, %v1101
      %v1119 = vpack.c.bf16 %v1025, %v1102
      %v1120 = vpack.c.bf16 %v1028, %v1103
      %v1121 = vpack.c.bf16 %v1031, %v1104
      %v1122 = vpack.c.bf16 %v1034, %v1105
      %v1123 = vpack.c.bf16 %v1037, %v1106
      %v1124 = vpack.c.bf16 %v1040, %v1107
      %v1125 = vpack.c.bf16 %v1043, %v1108
      %v1126 = vpack.c.bf16 %v1046, %v1109
      %v1127 = vpack.c.bf16 %v1049, %v1110
      %v1128 = vpack.c.bf16 %v1052, %v1111
      %v1129 = vpack.c.bf16 %v1055, %v1112
      %v1130 = vpack.c.bf16 %v1058, %v1113
      %v1131 = vpack.c.bf16 %v1061, %v1114
      %v1132 = vpack.c.bf16 %v1064, %v1115
      %v1133 = vpack.c.bf16 0.0, 0.0
      %v1134 = vpack.c.bf16 %v848, %v847
      %v1135 = vpack.c.bf16 %v850, %v849
      %v1136 = vpack.c.bf16 %v852, %v851
      %v1137 = vpack.c.bf16 %v854, %v853
      %v1138 = vpack.c.bf16 %v856, %v855
      %v1139 = vpack.c.bf16 %v858, %v857
      %v1140 = vpack.c.bf16 %v860, %v859
      %v1141 = vpack.c.bf16 %v862, %v861
      %v1142 = vpack.c.bf16 %v864, %v863
      %v1143 = vpack.c.bf16 %v866, %v865
      %v1144 = vpack.c.bf16 %v868, %v867
      %v1145 = vpack.c.bf16 %v870, %v869
      %v1146 = vpack.c.bf16 %v872, %v871
      %v1147 = vpack.c.bf16 %v874, %v873
      %v1148 = vpack.c.bf16 %v876, %v875
      %v1149 = vpack.c.bf16 %v878, %v877
      %v1150 = vpack.c.bf16 %v997, %v914
      %v1151 = vpack.c.bf16 %v998, %v917
      %v1152 = vpack.c.bf16 %v999, %v920
      %v1153 = vpack.c.bf16 %v1000, %v923
      %v1154 = vpack.c.bf16 %v1001, %v926
      %v1155 = vpack.c.bf16 %v1002, %v929
      %v1156 = vpack.c.bf16 %v1003, %v932
      %v1157 = vpack.c.bf16 %v1004, %v935
      %v1158 = vpack.c.bf16 %v1005, %v938
      %v1159 = vpack.c.bf16 %v1006, %v941
      %v1160 = vpack.c.bf16 %v1007, %v944
      %v1161 = vpack.c.bf16 %v1008, %v947
      %v1162 = vpack.c.bf16 %v1009, %v950
      %v1163 = vpack.c.bf16 %v1010, %v953
      %v1164 = vpack.c.bf16 %v1011, %v956
      %v1165 = vpack.c.bf16 %v1012, %v959
      %v1166 = vpack.c.bf16 %v1013, %v962
      %v1167 = vld [vmem:[%s4] sm:$0x3]
      %s1168 = scalar_lea.vmem %s4, 2
      %v1169 = vld [vmem:[%s1168] sm:$0x3]
      %v1171 = vsel %vm555, %v1133, 0
      %v1174 = vsel %vm555, %v1134, 0
      %v1177 = vsel %vm555, %v1135, 0
      %v1180 = vsel %vm555, %v1136, 0
      %v1183 = vsel %vm555, %v1137, 0
      %v1186 = vsel %vm555, %v1138, 0
      %v1189 = vsel %vm555, %v1139, 0
      %v1192 = vsel %vm555, %v1140, 0
      %v1195 = vsel %vm555, %v1141, 0
      %v1198 = vsel %vm555, %v1142, 0
      %v1201 = vsel %vm555, %v1143, 0
      %v1204 = vsel %vm555, %v1144, 0
      %v1207 = vsel %vm555, %v1145, 0
      %v1210 = vsel %vm555, %v1146, 0
      %v1213 = vsel %vm555, %v1147, 0
      %v1216 = vsel %vm555, %v1148, 0
      %v1219 = vsel %vm604, %v1169, 0
      %1221 = vmatprep.subr.bf16.mxu0 0
      %1222 = vmatpush1.bf16.msra.mxu0 %v1219
      %1223 = vmatprep.subr.bf16.mxu0 0
      %1224 = vmatpush1.bf16.msra.mxu0 0
      %1225 = vmatprep.subr.bf16.mxu0 0
      %1226 = vmatpush1.bf16.msra.mxu0 0
      %1227 = vmatprep.subr.bf16.mxu0 0
      %1228 = vmatpush1.bf16.msra.mxu0 0
      %1229 = vmatprep.subr.bf16.mxu0 0
      %1230 = vmatpush1.bf16.msra.mxu0 0
      %1231 = vmatprep.subr.bf16.mxu0 0
      %1232 = vmatpush1.bf16.msra.mxu0 0
      %1233 = vmatprep.subr.bf16.mxu0 0
      %1234 = vmatpush1.bf16.msra.mxu0 0
      %1235 = vmatprep.subr.bf16.mxu0 0
      %1236 = vmatpush1.bf16.msra.mxu0 0
      %1237 = vmatprep.subr.bf16.mxu0 0
      %1238 = vmatpush1.bf16.msra.mxu0 0
      %1239 = vmatprep.subr.bf16.mxu0 0
      %1240 = vmatpush1.bf16.msra.mxu0 0
      %1241 = vmatprep.subr.bf16.mxu0 0
      %1242 = vmatpush1.bf16.msra.mxu0 0
      %1243 = vmatprep.subr.bf16.mxu0 0
      %1244 = vmatpush1.bf16.msra.mxu0 0
      %1245 = vmatprep.subr.bf16.mxu0 0
      %1246 = vmatpush1.bf16.msra.mxu0 0
      %1247 = vmatprep.subr.bf16.mxu0 0
      %1248 = vmatpush1.bf16.msra.mxu0 0
      %1249 = vmatprep.subr.bf16.mxu0 0
      %1250 = vmatpush1.bf16.msra.mxu0 0
      %1251 = vmatprep.subr.bf16.mxu0 0
      %1252 = vmatpush1.bf16.msra.mxu0 0
      %1253 = vmatprep.mubr.bf16.mxu0 0
      %1254 = vmatmul.mubr.bf16.gmra.mrb[0].mxu0 %v1171
      %v1255 = vpop.f32.mrb[0].mxu0
      %v1256 = vadd.f32 0.0, %v1255
      %v1257 = vpop.f32.mrb[0].mxu0
      %v1258 = vpop.f32.mrb[0].mxu0
      %v1259 = vadd.f32 0.0, %v1258
      %v1260 = vpop.f32.mrb[0].mxu0
      %1261 = vmatprep.mubr.bf16.mxu0 0
      %1262 = vmatmul.mubr.bf16.gmra.mrb[0].mxu0 %v1174
      %v1263 = vpop.f32.mrb[0].mxu0
      %v1264 = vadd.f32 0.0, %v1263
      %v1265 = vpop.f32.mrb[0].mxu0
      %v1266 = vpop.f32.mrb[0].mxu0
      %v1267 = vadd.f32 0.0, %v1266
      %v1268 = vpop.f32.mrb[0].mxu0
      %1269 = vmatprep.mubr.bf16.mxu0 0
      %1270 = vmatmul.mubr.bf16.gmra.mrb[0].mxu0 %v1177
      %v1271 = vpop.f32.mrb[0].mxu0
      %v1272 = vadd.f32 0.0, %v1271
      %v1273 = vpop.f32.mrb[0].mxu0
      %v1274 = vpop.f32.mrb[0].mxu0
      %v1275 = vadd.f32 0.0, %v1274
      %v1276 = vpop.f32.mrb[0].mxu0
      %1277 = vmatprep.mubr.bf16.mxu0 0
      %1278 = vmatmul.mubr.bf16.gmra.mrb[0].mxu0 %v1180
      %v1279 = vpop.f32.mrb[0].mxu0
      %v1280 = vadd.f32 0.0, %v1279
      %v1281 = vpop.f32.mrb[0].mxu0
      %v1282 = vpop.f32.mrb[0].mxu0
      %v1283 = vadd.f32 0.0, %v1282
      %v1284 = vpop.f32.mrb[0].mxu0
      %1285 = vmatprep.mubr.bf16.mxu0 0
      %1286 = vmatmul.mubr.bf16.gmra.mrb[0].mxu0 %v1183
      %v1287 = vpop.f32.mrb[0].mxu0
      %v1288 = vadd.f32 0.0, %v1287
      %v1289 = vpop.f32.mrb[0].mxu0
      %v1290 = vpop.f32.mrb[0].mxu0
      %v1291 = vadd.f32 0.0, %v1290
      %v1292 = vpop.f32.mrb[0].mxu0
      %1293 = vmatprep.mubr.bf16.mxu0 0
      %1294 = vmatmul.mubr.bf16.gmra.mrb[0].mxu0 %v1186
      %v1295 = vpop.f32.mrb[0].mxu0
      %v1296 = vadd.f32 0.0, %v1295
      %v1297 = vpop.f32.mrb[0].mxu0
      %v1298 = vpop.f32.mrb[0].mxu0
      %v1299 = vadd.f32 0.0, %v1298
      %v1300 = vpop.f32.mrb[0].mxu0
      %1301 = vmatprep.mubr.bf16.mxu0 0
      %1302 = vmatmul.mubr.bf16.gmra.mrb[0].mxu0 %v1189
      %v1303 = vpop.f32.mrb[0].mxu0
      %v1304 = vadd.f32 0.0, %v1303
      %v1305 = vpop.f32.mrb[0].mxu0
      %v1306 = vpop.f32.mrb[0].mxu0
      %v1307 = vadd.f32 0.0, %v1306
      %v1308 = vpop.f32.mrb[0].mxu0
      %1309 = vmatprep.mubr.bf16.mxu0 0
      %1310 = vmatmul.mubr.bf16.gmra.mrb[0].mxu0 %v1192
      %v1311 = vpop.f32.mrb[0].mxu0
      %v1312 = vadd.f32 0.0, %v1311
      %v1313 = vpop.f32.mrb[0].mxu0
      %v1314 = vpop.f32.mrb[0].mxu0
      %v1315 = vadd.f32 0.0, %v1314
      %v1316 = vpop.f32.mrb[0].mxu0
      %1317 = vmatprep.mubr.bf16.mxu0 0
      %1318 = vmatmul.mubr.bf16.gmra.mrb[0].mxu0 %v1195
      %v1319 = vpop.f32.mrb[0].mxu0
      %v1320 = vadd.f32 0.0, %v1319
      %v1321 = vpop.f32.mrb[0].mxu0
      %v1322 = vpop.f32.mrb[0].mxu0
      %v1323 = vadd.f32 0.0, %v1322
      %v1324 = vpop.f32.mrb[0].mxu0
      %1325 = vmatprep.mubr.bf16.mxu0 0
      %1326 = vmatmul.mubr.bf16.gmra.mrb[0].mxu0 %v1198
      %v1327 = vpop.f32.mrb[0].mxu0
      %v1328 = vadd.f32 0.0, %v1327
      %v1329 = vpop.f32.mrb[0].mxu0
      %v1330 = vpop.f32.mrb[0].mxu0
      %v1331 = vadd.f32 0.0, %v1330
      %v1332 = vpop.f32.mrb[0].mxu0
      %1333 = vmatprep.mubr.bf16.mxu0 0
      %1334 = vmatmul.mubr.bf16.gmra.mrb[0].mxu0 %v1201
      %v1335 = vpop.f32.mrb[0].mxu0
      %v1336 = vadd.f32 0.0, %v1335
      %v1337 = vpop.f32.mrb[0].mxu0
      %v1338 = vpop.f32.mrb[0].mxu0
      %v1339 = vadd.f32 0.0, %v1338
      %v1340 = vpop.f32.mrb[0].mxu0
      %1341 = vmatprep.mubr.bf16.mxu0 0
      %1342 = vmatmul.mubr.bf16.gmra.mrb[0].mxu0 %v1204
      %v1343 = vpop.f32.mrb[0].mxu0
      %v1344 = vadd.f32 0.0, %v1343
      %v1345 = vpop.f32.mrb[0].mxu0
      %v1346 = vpop.f32.mrb[0].mxu0
      %v1347 = vadd.f32 0.0, %v1346
      %v1348 = vpop.f32.mrb[0].mxu0
      %1349 = vmatprep.mubr.bf16.mxu0 0
      %1350 = vmatmul.mubr.bf16.gmra.mrb[0].mxu0 %v1207
      %v1351 = vpop.f32.mrb[0].mxu0
      %v1352 = vadd.f32 0.0, %v1351
      %v1353 = vpop.f32.mrb[0].mxu0
      %v1354 = vpop.f32.mrb[0].mxu0
      %v1355 = vadd.f32 0.0, %v1354
      %v1356 = vpop.f32.mrb[0].mxu0
      %1357 = vmatprep.mubr.bf16.mxu0 0
      %1358 = vmatmul.mubr.bf16.gmra.mrb[0].mxu0 %v1210
      %v1359 = vpop.f32.mrb[0].mxu0
      %v1360 = vadd.f32 0.0, %v1359
      %v1361 = vpop.f32.mrb[0].mxu0
      %v1362 = vpop.f32.mrb[0].mxu0
      %v1363 = vadd.f32 0.0, %v1362
      %v1364 = vpop.f32.mrb[0].mxu0
      %1365 = vmatprep.mubr.bf16.mxu0 0
      %1366 = vmatmul.mubr.bf16.gmra.mrb[0].mxu0 %v1213
      %v1367 = vpop.f32.mrb[0].mxu0
      %v1368 = vadd.f32 0.0, %v1367
      %v1369 = vpop.f32.mrb[0].mxu0
      %v1370 = vpop.f32.mrb[0].mxu0
      %v1371 = vadd.f32 0.0, %v1370
      %v1372 = vpop.f32.mrb[0].mxu0
      %1373 = vmatprep.mubr.bf16.mxu0 0
      %1374 = vmatmul.mubr.bf16.gmra.mrb[0].mxu0 %v1216
      %v1375 = vpop.f32.mrb[0].mxu0
      %v1376 = vadd.f32 0.0, %v1375
      %v1377 = vpop.f32.mrb[0].mxu0
      %v1378 = vpop.f32.mrb[0].mxu0
      %v1379 = vadd.f32 0.0, %v1378
      %v1380 = vpop.f32.mrb[0].mxu0
      %1381 = vdwg.mxu0
      %v1383 = vsel %vm555, %v1116, 0
      %v1386 = vsel %vm555, %v1117, 0
      %v1389 = vsel %vm555, %v1118, 0
      %v1392 = vsel %vm555, %v1119, 0
      %v1395 = vsel %vm555, %v1120, 0
      %v1398 = vsel %vm555, %v1121, 0
      %v1401 = vsel %vm555, %v1122, 0
      %v1404 = vsel %vm555, %v1123, 0
      %v1407 = vsel %vm555, %v1124, 0
      %v1410 = vsel %vm555, %v1125, 0
      %v1413 = vsel %vm555, %v1126, 0
      %v1416 = vsel %vm555, %v1127, 0
      %v1419 = vsel %vm555, %v1128, 0
      %v1422 = vsel %vm555, %v1129, 0
      %v1425 = vsel %vm555, %v1130, 0
      %v1428 = vsel %vm555, %v1131, 0
      %v1431 = vsel %vm604, %v1167, 0
      %1433 = vmatprep.subr.bf16.mxu0 0
      %1434 = vmatpush1.bf16.msra.mxu0 %v1431
      %1435 = vmatprep.subr.bf16.mxu0 0
      %1436 = vmatpush1.bf16.msra.mxu0 0
      %1437 = vmatprep.subr.bf16.mxu0 0
      %1438 = vmatpush1.bf16.msra.mxu0 0
      %1439 = vmatprep.subr.bf16.mxu0 0
      %1440 = vmatpush1.bf16.msra.mxu0 0
      %1441 = vmatprep.subr.bf16.mxu0 0
      %1442 = vmatpush1.bf16.msra.mxu0 0
      %1443 = vmatprep.subr.bf16.mxu0 0
      %1444 = vmatpush1.bf16.msra.mxu0 0
      %1445 = vmatprep.subr.bf16.mxu0 0
      %1446 = vmatpush1.bf16.msra.mxu0 0
      %1447 = vmatprep.subr.bf16.mxu0 0
      %1448 = vmatpush1.bf16.msra.mxu0 0
      %1449 = vmatprep.subr.bf16.mxu0 0
      %1450 = vmatpush1.bf16.msra.mxu0 0
      %1451 = vmatprep.subr.bf16.mxu0 0
      %1452 = vmatpush1.bf16.msra.mxu0 0
      %1453 = vmatprep.subr.bf16.mxu0 0
      %1454 = vmatpush1.bf16.msra.mxu0 0
      %1455 = vmatprep.subr.bf16.mxu0 0
      %1456 = vmatpush1.bf16.msra.mxu0 0
      %1457 = vmatprep.subr.bf16.mxu0 0
      %1458 = vmatpush1.bf16.msra.mxu0 0
      %1459 = vmatprep.subr.bf16.mxu0 0
      %1460 = vmatpush1.bf16.msra.mxu0 0
      %1461 = vmatprep.subr.bf16.mxu0 0
      %1462 = vmatpush1.bf16.msra.mxu0 0
      %1463 = vmatprep.subr.bf16.mxu0 0
      %1464 = vmatpush1.bf16.msra.mxu0 0
      %1465 = vmatprep.mubr.bf16.mxu0 0
      %1466 = vmatmul.mubr.bf16.gmra.mrb[0].mxu0 %v1383
      %v1467 = vpop.f32.mrb[0].mxu0
      %v1468 = vadd.f32 %v1256, %v1467
      %v1469 = vpop.f32.mrb[0].mxu0
      %v1470 = vpop.f32.mrb[0].mxu0
      %v1471 = vadd.f32 %v1259, %v1470
      %v1472 = vpop.f32.mrb[0].mxu0
      %1473 = vmatprep.mubr.bf16.mxu0 0
      %1474 = vmatmul.mubr.bf16.gmra.mrb[0].mxu0 %v1386
      %v1475 = vpop.f32.mrb[0].mxu0
      %v1476 = vadd.f32 %v1264, %v1475
      %v1477 = vpop.f32.mrb[0].mxu0
      %v1478 = vpop.f32.mrb[0].mxu0
      %v1479 = vadd.f32 %v1267, %v1478
      %v1480 = vpop.f32.mrb[0].mxu0
      %1481 = vmatprep.mubr.bf16.mxu0 0
      %1482 = vmatmul.mubr.bf16.gmra.mrb[0].mxu0 %v1389
      %v1483 = vpop.f32.mrb[0].mxu0
      %v1484 = vadd.f32 %v1272, %v1483
      %v1485 = vpop.f32.mrb[0].mxu0
      %v1486 = vpop.f32.mrb[0].mxu0
      %v1487 = vadd.f32 %v1275, %v1486
      %v1488 = vpop.f32.mrb[0].mxu0
      %1489 = vmatprep.mubr.bf16.mxu0 0
      %1490 = vmatmul.mubr.bf16.gmra.mrb[0].mxu0 %v1392
      %v1491 = vpop.f32.mrb[0].mxu0
      %v1492 = vadd.f32 %v1280, %v1491
      %v1493 = vpop.f32.mrb[0].mxu0
      %v1494 = vpop.f32.mrb[0].mxu0
      %v1495 = vadd.f32 %v1283, %v1494
      %v1496 = vpop.f32.mrb[0].mxu0
      %1497 = vmatprep.mubr.bf16.mxu0 0
      %1498 = vmatmul.mubr.bf16.gmra.mrb[0].mxu0 %v1395
      %v1499 = vpop.f32.mrb[0].mxu0
      %v1500 = vadd.f32 %v1288, %v1499
      %v1501 = vpop.f32.mrb[0].mxu0
      %v1502 = vpop.f32.mrb[0].mxu0
      %v1503 = vadd.f32 %v1291, %v1502
      %v1504 = vpop.f32.mrb[0].mxu0
      %1505 = vmatprep.mubr.bf16.mxu0 0
      %1506 = vmatmul.mubr.bf16.gmra.mrb[0].mxu0 %v1398
      %v1507 = vpop.f32.mrb[0].mxu0
      %v1508 = vadd.f32 %v1296, %v1507
      %v1509 = vpop.f32.mrb[0].mxu0
      %v1510 = vpop.f32.mrb[0].mxu0
      %v1511 = vadd.f32 %v1299, %v1510
      %v1512 = vpop.f32.mrb[0].mxu0
      %1513 = vmatprep.mubr.bf16.mxu0 0
      %1514 = vmatmul.mubr.bf16.gmra.mrb[0].mxu0 %v1401
      %v1515 = vpop.f32.mrb[0].mxu0
      %v1516 = vadd.f32 %v1304, %v1515
      %v1517 = vpop.f32.mrb[0].mxu0
      %v1518 = vpop.f32.mrb[0].mxu0
      %v1519 = vadd.f32 %v1307, %v1518
      %v1520 = vpop.f32.mrb[0].mxu0
      %1521 = vmatprep.mubr.bf16.mxu0 0
      %1522 = vmatmul.mubr.bf16.gmra.mrb[0].mxu0 %v1404
      %v1523 = vpop.f32.mrb[0].mxu0
      %v1524 = vadd.f32 %v1312, %v1523
      %v1525 = vpop.f32.mrb[0].mxu0
      %v1526 = vpop.f32.mrb[0].mxu0
      %v1527 = vadd.f32 %v1315, %v1526
      %v1528 = vpop.f32.mrb[0].mxu0
      %1529 = vmatprep.mubr.bf16.mxu0 0
      %1530 = vmatmul.mubr.bf16.gmra.mrb[0].mxu0 %v1407
      %v1531 = vpop.f32.mrb[0].mxu0
      %v1532 = vadd.f32 %v1320, %v1531
      %v1533 = vpop.f32.mrb[0].mxu0
      %v1534 = vpop.f32.mrb[0].mxu0
      %v1535 = vadd.f32 %v1323, %v1534
      %v1536 = vpop.f32.mrb[0].mxu0
      %1537 = vmatprep.mubr.bf16.mxu0 0
      %1538 = vmatmul.mubr.bf16.gmra.mrb[0].mxu0 %v1410
      %v1539 = vpop.f32.mrb[0].mxu0
      %v1540 = vadd.f32 %v1328, %v1539
      %v1541 = vpop.f32.mrb[0].mxu0
      %v1542 = vpop.f32.mrb[0].mxu0
      %v1543 = vadd.f32 %v1331, %v1542
      %v1544 = vpop.f32.mrb[0].mxu0
      %1545 = vmatprep.mubr.bf16.mxu0 0
      %1546 = vmatmul.mubr.bf16.gmra.mrb[0].mxu0 %v1413
      %v1547 = vpop.f32.mrb[0].mxu0
      %v1548 = vadd.f32 %v1336, %v1547
      %v1549 = vpop.f32.mrb[0].mxu0
      %v1550 = vpop.f32.mrb[0].mxu0
      %v1551 = vadd.f32 %v1339, %v1550
      %v1552 = vpop.f32.mrb[0].mxu0
      %1553 = vmatprep.mubr.bf16.mxu0 0
      %1554 = vmatmul.mubr.bf16.gmra.mrb[0].mxu0 %v1416
      %v1555 = vpop.f32.mrb[0].mxu0
      %v1556 = vadd.f32 %v1344, %v1555
      %v1557 = vpop.f32.mrb[0].mxu0
      %v1558 = vpop.f32.mrb[0].mxu0
      %v1559 = vadd.f32 %v1347, %v1558
      %v1560 = vpop.f32.mrb[0].mxu0
      %1561 = vmatprep.mubr.bf16.mxu0 0
      %1562 = vmatmul.mubr.bf16.gmra.mrb[0].mxu0 %v1419
      %v1563 = vpop.f32.mrb[0].mxu0
      %v1564 = vadd.f32 %v1352, %v1563
      %v1565 = vpop.f32.mrb[0].mxu0
      %v1566 = vpop.f32.mrb[0].mxu0
      %v1567 = vadd.f32 %v1355, %v1566
      %v1568 = vpop.f32.mrb[0].mxu0
      %1569 = vmatprep.mubr.bf16.mxu0 0
      %1570 = vmatmul.mubr.bf16.gmra.mrb[0].mxu0 %v1422
      %v1571 = vpop.f32.mrb[0].mxu0
      %v1572 = vadd.f32 %v1360, %v1571
      %v1573 = vpop.f32.mrb[0].mxu0
      %v1574 = vpop.f32.mrb[0].mxu0
      %v1575 = vadd.f32 %v1363, %v1574
      %v1576 = vpop.f32.mrb[0].mxu0
      %1577 = vmatprep.mubr.bf16.mxu0 0
      %1578 = vmatmul.mubr.bf16.gmra.mrb[0].mxu0 %v1425
      %v1579 = vpop.f32.mrb[0].mxu0
      %v1580 = vadd.f32 %v1368, %v1579
      %v1581 = vpop.f32.mrb[0].mxu0
      %v1582 = vpop.f32.mrb[0].mxu0
      %v1583 = vadd.f32 %v1371, %v1582
      %v1584 = vpop.f32.mrb[0].mxu0
      %1585 = vmatprep.mubr.bf16.mxu0 0
      %1586 = vmatmul.mubr.bf16.gmra.mrb[0].mxu0 %v1428
      %v1587 = vpop.f32.mrb[0].mxu0
      %v1588 = vadd.f32 %v1376, %v1587
      %v1589 = vpop.f32.mrb[0].mxu0
      %v1590 = vpop.f32.mrb[0].mxu0
      %v1591 = vadd.f32 %v1379, %v1590
      %v1592 = vpop.f32.mrb[0].mxu0
      %1593 = vdwg.mxu0
      %s1594 = scalar_lea.vmem %s4, 4
      %v1595 = vld [vmem:[%s1594] sm:$0x3]
      %v1597 = vsel %vm555, %v1150, 0
      %v1600 = vsel %vm555, %v1151, 0
      %v1603 = vsel %vm555, %v1152, 0
      %v1606 = vsel %vm555, %v1153, 0
      %v1609 = vsel %vm555, %v1154, 0
      %v1612 = vsel %vm555, %v1155, 0
      %v1615 = vsel %vm555, %v1156, 0
      %v1618 = vsel %vm555, %v1157, 0
      %v1621 = vsel %vm555, %v1158, 0
      %v1624 = vsel %vm555, %v1159, 0
      %v1627 = vsel %vm555, %v1160, 0
      %v1630 = vsel %vm555, %v1161, 0
      %v1633 = vsel %vm555, %v1162, 0
      %v1636 = vsel %vm555, %v1163, 0
      %v1639 = vsel %vm555, %v1164, 0
      %v1642 = vsel %vm555, %v1165, 0
      %v1645 = vsel %vm604, %v1595, 0
      %1647 = vmatprep.subr.bf16.mxu0 0
      %1648 = vmatpush1.bf16.msra.mxu0 %v1645
      %1649 = vmatprep.subr.bf16.mxu0 0
      %1650 = vmatpush1.bf16.msra.mxu0 0
      %1651 = vmatprep.subr.bf16.mxu0 0
      %1652 = vmatpush1.bf16.msra.mxu0 0
      %1653 = vmatprep.subr.bf16.mxu0 0
      %1654 = vmatpush1.bf16.msra.mxu0 0
      %1655 = vmatprep.subr.bf16.mxu0 0
      %1656 = vmatpush1.bf16.msra.mxu0 0
      %1657 = vmatprep.subr.bf16.mxu0 0
      %1658 = vmatpush1.bf16.msra.mxu0 0
      %1659 = vmatprep.subr.bf16.mxu0 0
      %1660 = vmatpush1.bf16.msra.mxu0 0
      %1661 = vmatprep.subr.bf16.mxu0 0
      %1662 = vmatpush1.bf16.msra.mxu0 0
      %1663 = vmatprep.subr.bf16.mxu0 0
      %1664 = vmatpush1.bf16.msra.mxu0 0
      %1665 = vmatprep.subr.bf16.mxu0 0
      %1666 = vmatpush1.bf16.msra.mxu0 0
      %1667 = vmatprep.subr.bf16.mxu0 0
      %1668 = vmatpush1.bf16.msra.mxu0 0
      %1669 = vmatprep.subr.bf16.mxu0 0
      %1670 = vmatpush1.bf16.msra.mxu0 0
      %1671 = vmatprep.subr.bf16.mxu0 0
      %1672 = vmatpush1.bf16.msra.mxu0 0
      %1673 = vmatprep.subr.bf16.mxu0 0
      %1674 = vmatpush1.bf16.msra.mxu0 0
      %1675 = vmatprep.subr.bf16.mxu0 0
      %1676 = vmatpush1.bf16.msra.mxu0 0
      %1677 = vmatprep.subr.bf16.mxu0 0
      %1678 = vmatpush1.bf16.msra.mxu0 0
      %1679 = vmatprep.mubr.bf16.mxu0 0
      %1680 = vmatmul.mubr.bf16.gmra.mrb[0].mxu0 %v1597
      %v1681 = vpop.f32.mrb[0].mxu0
      %v1682 = vadd.f32 0.0, %v1681
      %v1683 = vpop.f32.mrb[0].mxu0
      %v1684 = vpop.f32.mrb[0].mxu0
      %v1685 = vadd.f32 0.0, %v1684
      %v1686 = vpop.f32.mrb[0].mxu0
      %1687 = vmatprep.mubr.bf16.mxu0 0
      %1688 = vmatmul.mubr.bf16.gmra.mrb[0].mxu0 %v1600
      %v1689 = vpop.f32.mrb[0].mxu0
      %v1690 = vadd.f32 0.0, %v1689
      %v1691 = vpop.f32.mrb[0].mxu0
      %v1692 = vpop.f32.mrb[0].mxu0
      %v1693 = vadd.f32 0.0, %v1692
      %v1694 = vpop.f32.mrb[0].mxu0
      %1695 = vmatprep.mubr.bf16.mxu0 0
      %1696 = vmatmul.mubr.bf16.gmra.mrb[0].mxu0 %v1603
      %v1697 = vpop.f32.mrb[0].mxu0
      %v1698 = vadd.f32 0.0, %v1697
      %v1699 = vpop.f32.mrb[0].mxu0
      %v1700 = vpop.f32.mrb[0].mxu0
      %v1701 = vadd.f32 0.0, %v1700
      %v1702 = vpop.f32.mrb[0].mxu0
      %1703 = vmatprep.mubr.bf16.mxu0 0
      %1704 = vmatmul.mubr.bf16.gmra.mrb[0].mxu0 %v1606
      %v1705 = vpop.f32.mrb[0].mxu0
      %v1706 = vadd.f32 0.0, %v1705
      %v1707 = vpop.f32.mrb[0].mxu0
      %v1708 = vpop.f32.mrb[0].mxu0
      %v1709 = vadd.f32 0.0, %v1708
      %v1710 = vpop.f32.mrb[0].mxu0
      %1711 = vmatprep.mubr.bf16.mxu0 0
      %1712 = vmatmul.mubr.bf16.gmra.mrb[0].mxu0 %v1609
      %v1713 = vpop.f32.mrb[0].mxu0
      %v1714 = vadd.f32 0.0, %v1713
      %v1715 = vpop.f32.mrb[0].mxu0
      %v1716 = vpop.f32.mrb[0].mxu0
      %v1717 = vadd.f32 0.0, %v1716
      %v1718 = vpop.f32.mrb[0].mxu0
      %1719 = vmatprep.mubr.bf16.mxu0 0
      %1720 = vmatmul.mubr.bf16.gmra.mrb[0].mxu0 %v1612
      %v1721 = vpop.f32.mrb[0].mxu0
      %v1722 = vadd.f32 0.0, %v1721
      %v1723 = vpop.f32.mrb[0].mxu0
      %v1724 = vpop.f32.mrb[0].mxu0
      %v1725 = vadd.f32 0.0, %v1724
      %v1726 = vpop.f32.mrb[0].mxu0
      %1727 = vmatprep.mubr.bf16.mxu0 0
      %1728 = vmatmul.mubr.bf16.gmra.mrb[0].mxu0 %v1615
      %v1729 = vpop.f32.mrb[0].mxu0
      %v1730 = vadd.f32 0.0, %v1729
      %v1731 = vpop.f32.mrb[0].mxu0
      %v1732 = vpop.f32.mrb[0].mxu0
      %v1733 = vadd.f32 0.0, %v1732
      %v1734 = vpop.f32.mrb[0].mxu0
      %1735 = vmatprep.mubr.bf16.mxu0 0
      %1736 = vmatmul.mubr.bf16.gmra.mrb[0].mxu0 %v1618
      %v1737 = vpop.f32.mrb[0].mxu0
      %v1738 = vadd.f32 0.0, %v1737
      %v1739 = vpop.f32.mrb[0].mxu0
      %v1740 = vpop.f32.mrb[0].mxu0
      %v1741 = vadd.f32 0.0, %v1740
      %v1742 = vpop.f32.mrb[0].mxu0
      %1743 = vmatprep.mubr.bf16.mxu0 0
      %1744 = vmatmul.mubr.bf16.gmra.mrb[0].mxu0 %v1621
      %v1745 = vpop.f32.mrb[0].mxu0
      %v1746 = vadd.f32 0.0, %v1745
      %v1747 = vpop.f32.mrb[0].mxu0
      %v1748 = vpop.f32.mrb[0].mxu0
      %v1749 = vadd.f32 0.0, %v1748
      %v1750 = vpop.f32.mrb[0].mxu0
      %1751 = vmatprep.mubr.bf16.mxu0 0
      %1752 = vmatmul.mubr.bf16.gmra.mrb[0].mxu0 %v1624
      %v1753 = vpop.f32.mrb[0].mxu0
      %v1754 = vadd.f32 0.0, %v1753
      %v1755 = vpop.f32.mrb[0].mxu0
      %v1756 = vpop.f32.mrb[0].mxu0
      %v1757 = vadd.f32 0.0, %v1756
      %v1758 = vpop.f32.mrb[0].mxu0
      %1759 = vmatprep.mubr.bf16.mxu0 0
      %1760 = vmatmul.mubr.bf16.gmra.mrb[0].mxu0 %v1627
      %v1761 = vpop.f32.mrb[0].mxu0
      %v1762 = vadd.f32 0.0, %v1761
      %v1763 = vpop.f32.mrb[0].mxu0
      %v1764 = vpop.f32.mrb[0].mxu0
      %v1765 = vadd.f32 0.0, %v1764
      %v1766 = vpop.f32.mrb[0].mxu0
      %1767 = vmatprep.mubr.bf16.mxu0 0
      %1768 = vmatmul.mubr.bf16.gmra.mrb[0].mxu0 %v1630
      %v1769 = vpop.f32.mrb[0].mxu0
      %v1770 = vadd.f32 0.0, %v1769
      %v1771 = vpop.f32.mrb[0].mxu0
      %v1772 = vpop.f32.mrb[0].mxu0
      %v1773 = vadd.f32 0.0, %v1772
      %v1774 = vpop.f32.mrb[0].mxu0
      %1775 = vmatprep.mubr.bf16.mxu0 0
      %1776 = vmatmul.mubr.bf16.gmra.mrb[0].mxu0 %v1633
      %v1777 = vpop.f32.mrb[0].mxu0
      %v1778 = vadd.f32 0.0, %v1777
      %v1779 = vpop.f32.mrb[0].mxu0
      %v1780 = vpop.f32.mrb[0].mxu0
      %v1781 = vadd.f32 0.0, %v1780
      %v1782 = vpop.f32.mrb[0].mxu0
      %1783 = vmatprep.mubr.bf16.mxu0 0
      %1784 = vmatmul.mubr.bf16.gmra.mrb[0].mxu0 %v1636
      %v1785 = vpop.f32.mrb[0].mxu0
      %v1786 = vadd.f32 0.0, %v1785
      %v1787 = vpop.f32.mrb[0].mxu0
      %v1788 = vpop.f32.mrb[0].mxu0
      %v1789 = vadd.f32 0.0, %v1788
      %v1790 = vpop.f32.mrb[0].mxu0
      %1791 = vmatprep.mubr.bf16.mxu0 0
      %1792 = vmatmul.mubr.bf16.gmra.mrb[0].mxu0 %v1639
      %v1793 = vpop.f32.mrb[0].mxu0
      %v1794 = vadd.f32 0.0, %v1793
      %v1795 = vpop.f32.mrb[0].mxu0
      %v1796 = vpop.f32.mrb[0].mxu0
      %v1797 = vadd.f32 0.0, %v1796
      %v1798 = vpop.f32.mrb[0].mxu0
      %1799 = vmatprep.mubr.bf16.mxu0 0
      %1800 = vmatmul.mubr.bf16.gmra.mrb[0].mxu0 %v1642
      %v1801 = vpop.f32.mrb[0].mxu0
      %v1802 = vadd.f32 0.0, %v1801
      %v1803 = vpop.f32.mrb[0].mxu0
      %v1804 = vpop.f32.mrb[0].mxu0
      %v1805 = vadd.f32 0.0, %v1804
      %v1806 = vpop.f32.mrb[0].mxu0
      %1807 = vdwg.mxu0
      %v1808 = vadd.f32 %v1468, %v1682
      %v1809 = vadd.f32 %v1471, %v1685
      %v1810 = vadd.f32 %v1476, %v1690
      %v1811 = vadd.f32 %v1479, %v1693
      %v1812 = vadd.f32 %v1484, %v1698
      %v1813 = vadd.f32 %v1487, %v1701
      %v1814 = vadd.f32 %v1492, %v1706
      %v1815 = vadd.f32 %v1495, %v1709
      %v1816 = vadd.f32 %v1500, %v1714
      %v1817 = vadd.f32 %v1503, %v1717
      %v1818 = vadd.f32 %v1508, %v1722
      %v1819 = vadd.f32 %v1511, %v1725
      %v1820 = vadd.f32 %v1516, %v1730
      %v1821 = vadd.f32 %v1519, %v1733
      %v1822 = vadd.f32 %v1524, %v1738
      %v1823 = vadd.f32 %v1527, %v1741
      %v1824 = vadd.f32 %v1532, %v1746
      %v1825 = vadd.f32 %v1535, %v1749
      %v1826 = vadd.f32 %v1540, %v1754
      %v1827 = vadd.f32 %v1543, %v1757
      %v1828 = vadd.f32 %v1548, %v1762
      %v1829 = vadd.f32 %v1551, %v1765
      %v1830 = vadd.f32 %v1556, %v1770
      %v1831 = vadd.f32 %v1559, %v1773
      %v1832 = vadd.f32 %v1564, %v1778
      %v1833 = vadd.f32 %v1567, %v1781
      %v1834 = vadd.f32 %v1572, %v1786
      %v1835 = vadd.f32 %v1575, %v1789
      %v1836 = vadd.f32 %v1580, %v1794
      %v1837 = vadd.f32 %v1583, %v1797
      %v1838 = vadd.f32 %v1588, %v1802
      %v1839 = vadd.f32 %v1591, %v1805
      %s1840 = scalar_lea.vmem %s4, 6
      %v1841 = vld [vmem:[%s1840] sm:$0x3]
      %v1843 = vsel %vm555, %v1132, 0
      %v1846 = vsel %vm604, %v1841, 0
      %1848 = vmatprep.subr.bf16.mxu0 0
      %1849 = vmatpush1.bf16.msra.mxu0 %v1846
      %1850 = vmatprep.subr.bf16.mxu0 0
      %1851 = vmatpush1.bf16.msra.mxu0 0
      %1852 = vmatprep.subr.bf16.mxu0 0
      %1853 = vmatpush1.bf16.msra.mxu0 0
      %1854 = vmatprep.subr.bf16.mxu0 0
      %1855 = vmatpush1.bf16.msra.mxu0 0
      %1856 = vmatprep.subr.bf16.mxu0 0
      %1857 = vmatpush1.bf16.msra.mxu0 0
      %1858 = vmatprep.subr.bf16.mxu0 0
      %1859 = vmatpush1.bf16.msra.mxu0 0
      %1860 = vmatprep.subr.bf16.mxu0 0
      %1861 = vmatpush1.bf16.msra.mxu0 0
      %1862 = vmatprep.subr.bf16.mxu0 0
      %1863 = vmatpush1.bf16.msra.mxu0 0
      %1864 = vmatprep.subr.bf16.mxu0 0
      %1865 = vmatpush1.bf16.msra.mxu0 0
      %1866 = vmatprep.subr.bf16.mxu0 0
      %1867 = vmatpush1.bf16.msra.mxu0 0
      %1868 = vmatprep.subr.bf16.mxu0 0
      %1869 = vmatpush1.bf16.msra.mxu0 0
      %1870 = vmatprep.subr.bf16.mxu0 0
      %1871 = vmatpush1.bf16.msra.mxu0 0
      %1872 = vmatprep.subr.bf16.mxu0 0
      %1873 = vmatpush1.bf16.msra.mxu0 0
      %1874 = vmatprep.subr.bf16.mxu0 0
      %1875 = vmatpush1.bf16.msra.mxu0 0
      %1876 = vmatprep.subr.bf16.mxu0 0
      %1877 = vmatpush1.bf16.msra.mxu0 0
      %1878 = vmatprep.subr.bf16.mxu0 0
      %1879 = vmatpush1.bf16.msra.mxu0 0
      %1880 = vmatprep.mubr.bf16.mxu0 0
      %1881 = vmatmul.mubr.bf16.gmra.mrb[0].mxu0 %v1386
      %v1882 = vpop.f32.mrb[0].mxu0
      %v1883 = vadd.f32 0.0, %v1882
      %v1884 = vpop.f32.mrb[0].mxu0
      %v1885 = vpop.f32.mrb[0].mxu0
      %v1886 = vadd.f32 0.0, %v1885
      %v1887 = vpop.f32.mrb[0].mxu0
      %1888 = vmatprep.mubr.bf16.mxu0 0
      %1889 = vmatmul.mubr.bf16.gmra.mrb[0].mxu0 %v1389
      %v1890 = vpop.f32.mrb[0].mxu0
      %v1891 = vadd.f32 0.0, %v1890
      %v1892 = vpop.f32.mrb[0].mxu0
      %v1893 = vpop.f32.mrb[0].mxu0
      %v1894 = vadd.f32 0.0, %v1893
      %v1895 = vpop.f32.mrb[0].mxu0
      %1896 = vmatprep.mubr.bf16.mxu0 0
      %1897 = vmatmul.mubr.bf16.gmra.mrb[0].mxu0 %v1392
      %v1898 = vpop.f32.mrb[0].mxu0
      %v1899 = vadd.f32 0.0, %v1898
      %v1900 = vpop.f32.mrb[0].mxu0
      %v1901 = vpop.f32.mrb[0].mxu0
      %v1902 = vadd.f32 0.0, %v1901
      %v1903 = vpop.f32.mrb[0].mxu0
      %1904 = vmatprep.mubr.bf16.mxu0 0
      %1905 = vmatmul.mubr.bf16.gmra.mrb[0].mxu0 %v1395
      %v1906 = vpop.f32.mrb[0].mxu0
      %v1907 = vadd.f32 0.0, %v1906
      %v1908 = vpop.f32.mrb[0].mxu0
      %v1909 = vpop.f32.mrb[0].mxu0
      %v1910 = vadd.f32 0.0, %v1909
      %v1911 = vpop.f32.mrb[0].mxu0
      %1912 = vmatprep.mubr.bf16.mxu0 0
      %1913 = vmatmul.mubr.bf16.gmra.mrb[0].mxu0 %v1398
      %v1914 = vpop.f32.mrb[0].mxu0
      %v1915 = vadd.f32 0.0, %v1914
      %v1916 = vpop.f32.mrb[0].mxu0
      %v1917 = vpop.f32.mrb[0].mxu0
      %v1918 = vadd.f32 0.0, %v1917
      %v1919 = vpop.f32.mrb[0].mxu0
      %1920 = vmatprep.mubr.bf16.mxu0 0
      %1921 = vmatmul.mubr.bf16.gmra.mrb[0].mxu0 %v1401
      %v1922 = vpop.f32.mrb[0].mxu0
      %v1923 = vadd.f32 0.0, %v1922
      %v1924 = vpop.f32.mrb[0].mxu0
      %v1925 = vpop.f32.mrb[0].mxu0
      %v1926 = vadd.f32 0.0, %v1925
      %v1927 = vpop.f32.mrb[0].mxu0
      %1928 = vmatprep.mubr.bf16.mxu0 0
      %1929 = vmatmul.mubr.bf16.gmra.mrb[0].mxu0 %v1404
      %v1930 = vpop.f32.mrb[0].mxu0
      %v1931 = vadd.f32 0.0, %v1930
      %v1932 = vpop.f32.mrb[0].mxu0
      %v1933 = vpop.f32.mrb[0].mxu0
      %v1934 = vadd.f32 0.0, %v1933
      %v1935 = vpop.f32.mrb[0].mxu0
      %1936 = vmatprep.mubr.bf16.mxu0 0
      %1937 = vmatmul.mubr.bf16.gmra.mrb[0].mxu0 %v1407
      %v1938 = vpop.f32.mrb[0].mxu0
      %v1939 = vadd.f32 0.0, %v1938
      %v1940 = vpop.f32.mrb[0].mxu0
      %v1941 = vpop.f32.mrb[0].mxu0
      %v1942 = vadd.f32 0.0, %v1941
      %v1943 = vpop.f32.mrb[0].mxu0
      %1944 = vmatprep.mubr.bf16.mxu0 0
      %1945 = vmatmul.mubr.bf16.gmra.mrb[0].mxu0 %v1410
      %v1946 = vpop.f32.mrb[0].mxu0
      %v1947 = vadd.f32 0.0, %v1946
      %v1948 = vpop.f32.mrb[0].mxu0
      %v1949 = vpop.f32.mrb[0].mxu0
      %v1950 = vadd.f32 0.0, %v1949
      %v1951 = vpop.f32.mrb[0].mxu0
      %1952 = vmatprep.mubr.bf16.mxu0 0
      %1953 = vmatmul.mubr.bf16.gmra.mrb[0].mxu0 %v1413
      %v1954 = vpop.f32.mrb[0].mxu0
      %v1955 = vadd.f32 0.0, %v1954
      %v1956 = vpop.f32.mrb[0].mxu0
      %v1957 = vpop.f32.mrb[0].mxu0
      %v1958 = vadd.f32 0.0, %v1957
      %v1959 = vpop.f32.mrb[0].mxu0
      %1960 = vmatprep.mubr.bf16.mxu0 0
      %1961 = vmatmul.mubr.bf16.gmra.mrb[0].mxu0 %v1416
      %v1962 = vpop.f32.mrb[0].mxu0
      %v1963 = vadd.f32 0.0, %v1962
      %v1964 = vpop.f32.mrb[0].mxu0
      %v1965 = vpop.f32.mrb[0].mxu0
      %v1966 = vadd.f32 0.0, %v1965
      %v1967 = vpop.f32.mrb[0].mxu0
      %1968 = vmatprep.mubr.bf16.mxu0 0
      %1969 = vmatmul.mubr.bf16.gmra.mrb[0].mxu0 %v1419
      %v1970 = vpop.f32.mrb[0].mxu0
      %v1971 = vadd.f32 0.0, %v1970
      %v1972 = vpop.f32.mrb[0].mxu0
      %v1973 = vpop.f32.mrb[0].mxu0
      %v1974 = vadd.f32 0.0, %v1973
      %v1975 = vpop.f32.mrb[0].mxu0
      %1976 = vmatprep.mubr.bf16.mxu0 0
      %1977 = vmatmul.mubr.bf16.gmra.mrb[0].mxu0 %v1422
      %v1978 = vpop.f32.mrb[0].mxu0
      %v1979 = vadd.f32 0.0, %v1978
      %v1980 = vpop.f32.mrb[0].mxu0
      %v1981 = vpop.f32.mrb[0].mxu0
      %v1982 = vadd.f32 0.0, %v1981
      %v1983 = vpop.f32.mrb[0].mxu0
      %1984 = vmatprep.mubr.bf16.mxu0 0
      %1985 = vmatmul.mubr.bf16.gmra.mrb[0].mxu0 %v1425
      %v1986 = vpop.f32.mrb[0].mxu0
      %v1987 = vadd.f32 0.0, %v1986
      %v1988 = vpop.f32.mrb[0].mxu0
      %v1989 = vpop.f32.mrb[0].mxu0
      %v1990 = vadd.f32 0.0, %v1989
      %v1991 = vpop.f32.mrb[0].mxu0
      %1992 = vmatprep.mubr.bf16.mxu0 0
      %1993 = vmatmul.mubr.bf16.gmra.mrb[0].mxu0 %v1428
      %v1994 = vpop.f32.mrb[0].mxu0
      %v1995 = vadd.f32 0.0, %v1994
      %v1996 = vpop.f32.mrb[0].mxu0
      %v1997 = vpop.f32.mrb[0].mxu0
      %v1998 = vadd.f32 0.0, %v1997
      %v1999 = vpop.f32.mrb[0].mxu0
      %2000 = vmatprep.mubr.bf16.mxu0 0
      %2001 = vmatmul.mubr.bf16.gmra.mrb[0].mxu0 %v1843
      %v2002 = vpop.f32.mrb[0].mxu0
      %v2003 = vadd.f32 0.0, %v2002
      %v2004 = vpop.f32.mrb[0].mxu0
      %v2005 = vpop.f32.mrb[0].mxu0
      %v2006 = vadd.f32 0.0, %v2005
      %v2007 = vpop.f32.mrb[0].mxu0
      %2008 = vdwg.mxu0
      %v2009 = vadd.f32 %v1808, %v1883
      %v2010 = vadd.f32 %v1809, %v1886
      %v2011 = vadd.f32 %v1810, %v1891
      %v2012 = vadd.f32 %v1811, %v1894
      %v2013 = vadd.f32 %v1812, %v1899
      %v2014 = vadd.f32 %v1813, %v1902
      %v2015 = vadd.f32 %v1814, %v1907
      %v2016 = vadd.f32 %v1815, %v1910
      %v2017 = vadd.f32 %v1816, %v1915
      %v2018 = vadd.f32 %v1817, %v1918
      %v2019 = vadd.f32 %v1818, %v1923
      %v2020 = vadd.f32 %v1819, %v1926
      %v2021 = vadd.f32 %v1820, %v1931
      %v2022 = vadd.f32 %v1821, %v1934
      %v2023 = vadd.f32 %v1822, %v1939
      %v2024 = vadd.f32 %v1823, %v1942
      %v2025 = vadd.f32 %v1824, %v1947
      %v2026 = vadd.f32 %v1825, %v1950
      %v2027 = vadd.f32 %v1826, %v1955
      %v2028 = vadd.f32 %v1827, %v1958
      %v2029 = vadd.f32 %v1828, %v1963
      %v2030 = vadd.f32 %v1829, %v1966
      %v2031 = vadd.f32 %v1830, %v1971
      %v2032 = vadd.f32 %v1831, %v1974
      %v2033 = vadd.f32 %v1832, %v1979
      %v2034 = vadd.f32 %v1833, %v1982
      %v2035 = vadd.f32 %v1834, %v1987
      %v2036 = vadd.f32 %v1835, %v1990
      %v2037 = vadd.f32 %v1836, %v1995
      %v2038 = vadd.f32 %v1837, %v1998
      %v2039 = vadd.f32 %v1838, %v2003
      %v2040 = vadd.f32 %v1839, %v2006
      %s2041 = scalar_lea.vmem %s4, 8
      %v2042 = vld [vmem:[%s2041] sm:$0x3]
      %v2044 = vsel %vm555, %v1149, 0
      %v2047 = vsel %vm604, %v2042, 0
      %2049 = vmatprep.subr.bf16.mxu0 0
      %2050 = vmatpush1.bf16.msra.mxu0 %v2047
      %2051 = vmatprep.subr.bf16.mxu0 0
      %2052 = vmatpush1.bf16.msra.mxu0 0
      %2053 = vmatprep.subr.bf16.mxu0 0
      %2054 = vmatpush1.bf16.msra.mxu0 0
      %2055 = vmatprep.subr.bf16.mxu0 0
      %2056 = vmatpush1.bf16.msra.mxu0 0
      %2057 = vmatprep.subr.bf16.mxu0 0
      %2058 = vmatpush1.bf16.msra.mxu0 0
      %2059 = vmatprep.subr.bf16.mxu0 0
      %2060 = vmatpush1.bf16.msra.mxu0 0
      %2061 = vmatprep.subr.bf16.mxu0 0
      %2062 = vmatpush1.bf16.msra.mxu0 0
      %2063 = vmatprep.subr.bf16.mxu0 0
      %2064 = vmatpush1.bf16.msra.mxu0 0
      %2065 = vmatprep.subr.bf16.mxu0 0
      %2066 = vmatpush1.bf16.msra.mxu0 0
      %2067 = vmatprep.subr.bf16.mxu0 0
      %2068 = vmatpush1.bf16.msra.mxu0 0
      %2069 = vmatprep.subr.bf16.mxu0 0
      %2070 = vmatpush1.bf16.msra.mxu0 0
      %2071 = vmatprep.subr.bf16.mxu0 0
      %2072 = vmatpush1.bf16.msra.mxu0 0
      %2073 = vmatprep.subr.bf16.mxu0 0
      %2074 = vmatpush1.bf16.msra.mxu0 0
      %2075 = vmatprep.subr.bf16.mxu0 0
      %2076 = vmatpush1.bf16.msra.mxu0 0
      %2077 = vmatprep.subr.bf16.mxu0 0
      %2078 = vmatpush1.bf16.msra.mxu0 0
      %2079 = vmatprep.subr.bf16.mxu0 0
      %2080 = vmatpush1.bf16.msra.mxu0 0
      %2081 = vmatprep.mubr.bf16.mxu0 0
      %2082 = vmatmul.mubr.bf16.gmra.mrb[0].mxu0 %v1174
      %v2083 = vpop.f32.mrb[0].mxu0
      %v2084 = vadd.f32 0.0, %v2083
      %v2085 = vpop.f32.mrb[0].mxu0
      %v2086 = vpop.f32.mrb[0].mxu0
      %v2087 = vadd.f32 0.0, %v2086
      %v2088 = vpop.f32.mrb[0].mxu0
      %2089 = vmatprep.mubr.bf16.mxu0 0
      %2090 = vmatmul.mubr.bf16.gmra.mrb[0].mxu0 %v1177
      %v2091 = vpop.f32.mrb[0].mxu0
      %v2092 = vadd.f32 0.0, %v2091
      %v2093 = vpop.f32.mrb[0].mxu0
      %v2094 = vpop.f32.mrb[0].mxu0
      %v2095 = vadd.f32 0.0, %v2094
      %v2096 = vpop.f32.mrb[0].mxu0
      %2097 = vmatprep.mubr.bf16.mxu0 0
      %2098 = vmatmul.mubr.bf16.gmra.mrb[0].mxu0 %v1180
      %v2099 = vpop.f32.mrb[0].mxu0
      %v2100 = vadd.f32 0.0, %v2099
      %v2101 = vpop.f32.mrb[0].mxu0
      %v2102 = vpop.f32.mrb[0].mxu0
      %v2103 = vadd.f32 0.0, %v2102
      %v2104 = vpop.f32.mrb[0].mxu0
      %2105 = vmatprep.mubr.bf16.mxu0 0
      %2106 = vmatmul.mubr.bf16.gmra.mrb[0].mxu0 %v1183
      %v2107 = vpop.f32.mrb[0].mxu0
      %v2108 = vadd.f32 0.0, %v2107
      %v2109 = vpop.f32.mrb[0].mxu0
      %v2110 = vpop.f32.mrb[0].mxu0
      %v2111 = vadd.f32 0.0, %v2110
      %v2112 = vpop.f32.mrb[0].mxu0
      %2113 = vmatprep.mubr.bf16.mxu0 0
      %2114 = vmatmul.mubr.bf16.gmra.mrb[0].mxu0 %v1186
      %v2115 = vpop.f32.mrb[0].mxu0
      %v2116 = vadd.f32 0.0, %v2115
      %v2117 = vpop.f32.mrb[0].mxu0
      %v2118 = vpop.f32.mrb[0].mxu0
      %v2119 = vadd.f32 0.0, %v2118
      %v2120 = vpop.f32.mrb[0].mxu0
      %2121 = vmatprep.mubr.bf16.mxu0 0
      %2122 = vmatmul.mubr.bf16.gmra.mrb[0].mxu0 %v1189
      %v2123 = vpop.f32.mrb[0].mxu0
      %v2124 = vadd.f32 0.0, %v2123
      %v2125 = vpop.f32.mrb[0].mxu0
      %v2126 = vpop.f32.mrb[0].mxu0
      %v2127 = vadd.f32 0.0, %v2126
      %v2128 = vpop.f32.mrb[0].mxu0
      %2129 = vmatprep.mubr.bf16.mxu0 0
      %2130 = vmatmul.mubr.bf16.gmra.mrb[0].mxu0 %v1192
      %v2131 = vpop.f32.mrb[0].mxu0
      %v2132 = vadd.f32 0.0, %v2131
      %v2133 = vpop.f32.mrb[0].mxu0
      %v2134 = vpop.f32.mrb[0].mxu0
      %v2135 = vadd.f32 0.0, %v2134
      %v2136 = vpop.f32.mrb[0].mxu0
      %2137 = vmatprep.mubr.bf16.mxu0 0
      %2138 = vmatmul.mubr.bf16.gmra.mrb[0].mxu0 %v1195
      %v2139 = vpop.f32.mrb[0].mxu0
      %v2140 = vadd.f32 0.0, %v2139
      %v2141 = vpop.f32.mrb[0].mxu0
      %v2142 = vpop.f32.mrb[0].mxu0
      %v2143 = vadd.f32 0.0, %v2142
      %v2144 = vpop.f32.mrb[0].mxu0
      %2145 = vmatprep.mubr.bf16.mxu0 0
      %2146 = vmatmul.mubr.bf16.gmra.mrb[0].mxu0 %v1198
      %v2147 = vpop.f32.mrb[0].mxu0
      %v2148 = vadd.f32 0.0, %v2147
      %v2149 = vpop.f32.mrb[0].mxu0
      %v2150 = vpop.f32.mrb[0].mxu0
      %v2151 = vadd.f32 0.0, %v2150
      %v2152 = vpop.f32.mrb[0].mxu0
      %2153 = vmatprep.mubr.bf16.mxu0 0
      %2154 = vmatmul.mubr.bf16.gmra.mrb[0].mxu0 %v1201
      %v2155 = vpop.f32.mrb[0].mxu0
      %v2156 = vadd.f32 0.0, %v2155
      %v2157 = vpop.f32.mrb[0].mxu0
      %v2158 = vpop.f32.mrb[0].mxu0
      %v2159 = vadd.f32 0.0, %v2158
      %v2160 = vpop.f32.mrb[0].mxu0
      %2161 = vmatprep.mubr.bf16.mxu0 0
      %2162 = vmatmul.mubr.bf16.gmra.mrb[0].mxu0 %v1204
      %v2163 = vpop.f32.mrb[0].mxu0
      %v2164 = vadd.f32 0.0, %v2163
      %v2165 = vpop.f32.mrb[0].mxu0
      %v2166 = vpop.f32.mrb[0].mxu0
      %v2167 = vadd.f32 0.0, %v2166
      %v2168 = vpop.f32.mrb[0].mxu0
      %2169 = vmatprep.mubr.bf16.mxu0 0
      %2170 = vmatmul.mubr.bf16.gmra.mrb[0].mxu0 %v1207
      %v2171 = vpop.f32.mrb[0].mxu0
      %v2172 = vadd.f32 0.0, %v2171
      %v2173 = vpop.f32.mrb[0].mxu0
      %v2174 = vpop.f32.mrb[0].mxu0
      %v2175 = vadd.f32 0.0, %v2174
      %v2176 = vpop.f32.mrb[0].mxu0
      %2177 = vmatprep.mubr.bf16.mxu0 0
      %2178 = vmatmul.mubr.bf16.gmra.mrb[0].mxu0 %v1210
      %v2179 = vpop.f32.mrb[0].mxu0
      %v2180 = vadd.f32 0.0, %v2179
      %v2181 = vpop.f32.mrb[0].mxu0
      %v2182 = vpop.f32.mrb[0].mxu0
      %v2183 = vadd.f32 0.0, %v2182
      %v2184 = vpop.f32.mrb[0].mxu0
      %2185 = vmatprep.mubr.bf16.mxu0 0
      %2186 = vmatmul.mubr.bf16.gmra.mrb[0].mxu0 %v1213
      %v2187 = vpop.f32.mrb[0].mxu0
      %v2188 = vadd.f32 0.0, %v2187
      %v2189 = vpop.f32.mrb[0].mxu0
      %v2190 = vpop.f32.mrb[0].mxu0
      %v2191 = vadd.f32 0.0, %v2190
      %v2192 = vpop.f32.mrb[0].mxu0
      %2193 = vmatprep.mubr.bf16.mxu0 0
      %2194 = vmatmul.mubr.bf16.gmra.mrb[0].mxu0 %v1216
      %v2195 = vpop.f32.mrb[0].mxu0
      %v2196 = vadd.f32 0.0, %v2195
      %v2197 = vpop.f32.mrb[0].mxu0
      %v2198 = vpop.f32.mrb[0].mxu0
      %v2199 = vadd.f32 0.0, %v2198
      %v2200 = vpop.f32.mrb[0].mxu0
      %2201 = vmatprep.mubr.bf16.mxu0 0
      %2202 = vmatmul.mubr.bf16.gmra.mrb[0].mxu0 %v2044
      %v2203 = vpop.f32.mrb[0].mxu0
      %v2204 = vadd.f32 0.0, %v2203
      %v2205 = vpop.f32.mrb[0].mxu0
      %v2206 = vpop.f32.mrb[0].mxu0
      %v2207 = vadd.f32 0.0, %v2206
      %v2208 = vpop.f32.mrb[0].mxu0
      %2209 = vdwg.mxu0
      %v2210 = vadd.f32 %v2009, %v2084
      %v2211 = vadd.f32 %v2010, %v2087
      %v2212 = vadd.f32 %v2011, %v2092
      %v2213 = vadd.f32 %v2012, %v2095
      %v2214 = vadd.f32 %v2013, %v2100
      %v2215 = vadd.f32 %v2014, %v2103
      %v2216 = vadd.f32 %v2015, %v2108
      %v2217 = vadd.f32 %v2016, %v2111
      %v2218 = vadd.f32 %v2017, %v2116
      %v2219 = vadd.f32 %v2018, %v2119
      %v2220 = vadd.f32 %v2019, %v2124
      %v2221 = vadd.f32 %v2020, %v2127
      %v2222 = vadd.f32 %v2021, %v2132
      %v2223 = vadd.f32 %v2022, %v2135
      %v2224 = vadd.f32 %v2023, %v2140
      %v2225 = vadd.f32 %v2024, %v2143
      %v2226 = vadd.f32 %v2025, %v2148
      %v2227 = vadd.f32 %v2026, %v2151
      %v2228 = vadd.f32 %v2027, %v2156
      %v2229 = vadd.f32 %v2028, %v2159
      %v2230 = vadd.f32 %v2029, %v2164
      %v2231 = vadd.f32 %v2030, %v2167
      %v2232 = vadd.f32 %v2031, %v2172
      %v2233 = vadd.f32 %v2032, %v2175
      %v2234 = vadd.f32 %v2033, %v2180
      %v2235 = vadd.f32 %v2034, %v2183
      %v2236 = vadd.f32 %v2035, %v2188
      %v2237 = vadd.f32 %v2036, %v2191
      %v2238 = vadd.f32 %v2037, %v2196
      %v2239 = vadd.f32 %v2038, %v2199
      %v2240 = vadd.f32 %v2039, %v2204
      %v2241 = vadd.f32 %v2040, %v2207
      %s2242 = scalar_lea.vmem %s4, 10
      %v2243 = vld [vmem:[%s2242] sm:$0x3]
      %v2245 = vsel %vm555, %v1166, 0
      %v2248 = vsel %vm604, %v2243, 0
      %2250 = vmatprep.subr.bf16.mxu0 0
      %2251 = vmatpush1.bf16.msra.mxu0 %v2248
      %2252 = vmatprep.subr.bf16.mxu0 0
      %2253 = vmatpush1.bf16.msra.mxu0 0
      %2254 = vmatprep.subr.bf16.mxu0 0
      %2255 = vmatpush1.bf16.msra.mxu0 0
      %2256 = vmatprep.subr.bf16.mxu0 0
      %2257 = vmatpush1.bf16.msra.mxu0 0
      %2258 = vmatprep.subr.bf16.mxu0 0
      %2259 = vmatpush1.bf16.msra.mxu0 0
      %2260 = vmatprep.subr.bf16.mxu0 0
      %2261 = vmatpush1.bf16.msra.mxu0 0
      %2262 = vmatprep.subr.bf16.mxu0 0
      %2263 = vmatpush1.bf16.msra.mxu0 0
      %2264 = vmatprep.subr.bf16.mxu0 0
      %2265 = vmatpush1.bf16.msra.mxu0 0
      %2266 = vmatprep.subr.bf16.mxu0 0
      %2267 = vmatpush1.bf16.msra.mxu0 0
      %2268 = vmatprep.subr.bf16.mxu0 0
      %2269 = vmatpush1.bf16.msra.mxu0 0
      %2270 = vmatprep.subr.bf16.mxu0 0
      %2271 = vmatpush1.bf16.msra.mxu0 0
      %2272 = vmatprep.subr.bf16.mxu0 0
      %2273 = vmatpush1.bf16.msra.mxu0 0
      %2274 = vmatprep.subr.bf16.mxu0 0
      %2275 = vmatpush1.bf16.msra.mxu0 0
      %2276 = vmatprep.subr.bf16.mxu0 0
      %2277 = vmatpush1.bf16.msra.mxu0 0
      %2278 = vmatprep.subr.bf16.mxu0 0
      %2279 = vmatpush1.bf16.msra.mxu0 0
      %2280 = vmatprep.subr.bf16.mxu0 0
      %2281 = vmatpush1.bf16.msra.mxu0 0
      %2282 = vmatprep.mubr.bf16.mxu0 0
      %2283 = vmatmul.mubr.bf16.gmra.mrb[0].mxu0 %v1600
      %v2284 = vpop.f32.mrb[0].mxu0
      %v2285 = vadd.f32 0.0, %v2284
      %v2286 = vpop.f32.mrb[0].mxu0
      %v2287 = vpop.f32.mrb[0].mxu0
      %v2288 = vadd.f32 0.0, %v2287
      %v2289 = vpop.f32.mrb[0].mxu0
      %2290 = vmatprep.mubr.bf16.mxu0 0
      %2291 = vmatmul.mubr.bf16.gmra.mrb[0].mxu0 %v1603
      %v2292 = vpop.f32.mrb[0].mxu0
      %v2293 = vadd.f32 0.0, %v2292
      %v2294 = vpop.f32.mrb[0].mxu0
      %v2295 = vpop.f32.mrb[0].mxu0
      %v2296 = vadd.f32 0.0, %v2295
      %v2297 = vpop.f32.mrb[0].mxu0
      %2298 = vmatprep.mubr.bf16.mxu0 0
      %2299 = vmatmul.mubr.bf16.gmra.mrb[0].mxu0 %v1606
      %v2300 = vpop.f32.mrb[0].mxu0
      %v2301 = vadd.f32 0.0, %v2300
      %v2302 = vpop.f32.mrb[0].mxu0
      %v2303 = vpop.f32.mrb[0].mxu0
      %v2304 = vadd.f32 0.0, %v2303
      %v2305 = vpop.f32.mrb[0].mxu0
      %2306 = vmatprep.mubr.bf16.mxu0 0
      %2307 = vmatmul.mubr.bf16.gmra.mrb[0].mxu0 %v1609
      %v2308 = vpop.f32.mrb[0].mxu0
      %v2309 = vadd.f32 0.0, %v2308
      %v2310 = vpop.f32.mrb[0].mxu0
      %v2311 = vpop.f32.mrb[0].mxu0
      %v2312 = vadd.f32 0.0, %v2311
      %v2313 = vpop.f32.mrb[0].mxu0
      %2314 = vmatprep.mubr.bf16.mxu0 0
      %2315 = vmatmul.mubr.bf16.gmra.mrb[0].mxu0 %v1612
      %v2316 = vpop.f32.mrb[0].mxu0
      %v2317 = vadd.f32 0.0, %v2316
      %v2318 = vpop.f32.mrb[0].mxu0
      %v2319 = vpop.f32.mrb[0].mxu0
      %v2320 = vadd.f32 0.0, %v2319
      %v2321 = vpop.f32.mrb[0].mxu0
      %2322 = vmatprep.mubr.bf16.mxu0 0
      %2323 = vmatmul.mubr.bf16.gmra.mrb[0].mxu0 %v1615
      %v2324 = vpop.f32.mrb[0].mxu0
      %v2325 = vadd.f32 0.0, %v2324
      %v2326 = vpop.f32.mrb[0].mxu0
      %v2327 = vpop.f32.mrb[0].mxu0
      %v2328 = vadd.f32 0.0, %v2327
      %v2329 = vpop.f32.mrb[0].mxu0
      %2330 = vmatprep.mubr.bf16.mxu0 0
      %2331 = vmatmul.mubr.bf16.gmra.mrb[0].mxu0 %v1618
      %v2332 = vpop.f32.mrb[0].mxu0
      %v2333 = vadd.f32 0.0, %v2332
      %v2334 = vpop.f32.mrb[0].mxu0
      %v2335 = vpop.f32.mrb[0].mxu0
      %v2336 = vadd.f32 0.0, %v2335
      %v2337 = vpop.f32.mrb[0].mxu0
      %2338 = vmatprep.mubr.bf16.mxu0 0
      %2339 = vmatmul.mubr.bf16.gmra.mrb[0].mxu0 %v1621
      %v2340 = vpop.f32.mrb[0].mxu0
      %v2341 = vadd.f32 0.0, %v2340
      %v2342 = vpop.f32.mrb[0].mxu0
      %v2343 = vpop.f32.mrb[0].mxu0
      %v2344 = vadd.f32 0.0, %v2343
      %v2345 = vpop.f32.mrb[0].mxu0
      %2346 = vmatprep.mubr.bf16.mxu0 0
      %2347 = vmatmul.mubr.bf16.gmra.mrb[0].mxu0 %v1624
      %v2348 = vpop.f32.mrb[0].mxu0
      %v2349 = vadd.f32 0.0, %v2348
      %v2350 = vpop.f32.mrb[0].mxu0
      %v2351 = vpop.f32.mrb[0].mxu0
      %v2352 = vadd.f32 0.0, %v2351
      %v2353 = vpop.f32.mrb[0].mxu0
      %2354 = vmatprep.mubr.bf16.mxu0 0
      %2355 = vmatmul.mubr.bf16.gmra.mrb[0].mxu0 %v1627
      %v2356 = vpop.f32.mrb[0].mxu0
      %v2357 = vadd.f32 0.0, %v2356
      %v2358 = vpop.f32.mrb[0].mxu0
      %v2359 = vpop.f32.mrb[0].mxu0
      %v2360 = vadd.f32 0.0, %v2359
      %v2361 = vpop.f32.mrb[0].mxu0
      %2362 = vmatprep.mubr.bf16.mxu0 0
      %2363 = vmatmul.mubr.bf16.gmra.mrb[0].mxu0 %v1630
      %v2364 = vpop.f32.mrb[0].mxu0
      %v2365 = vadd.f32 0.0, %v2364
      %v2366 = vpop.f32.mrb[0].mxu0
      %v2367 = vpop.f32.mrb[0].mxu0
      %v2368 = vadd.f32 0.0, %v2367
      %v2369 = vpop.f32.mrb[0].mxu0
      %2370 = vmatprep.mubr.bf16.mxu0 0
      %2371 = vmatmul.mubr.bf16.gmra.mrb[0].mxu0 %v1633
      %v2372 = vpop.f32.mrb[0].mxu0
      %v2373 = vadd.f32 0.0, %v2372
      %v2374 = vpop.f32.mrb[0].mxu0
      %v2375 = vpop.f32.mrb[0].mxu0
      %v2376 = vadd.f32 0.0, %v2375
      %v2377 = vpop.f32.mrb[0].mxu0
      %2378 = vmatprep.mubr.bf16.mxu0 0
      %2379 = vmatmul.mubr.bf16.gmra.mrb[0].mxu0 %v1636
      %v2380 = vpop.f32.mrb[0].mxu0
      %v2381 = vadd.f32 0.0, %v2380
      %v2382 = vpop.f32.mrb[0].mxu0
      %v2383 = vpop.f32.mrb[0].mxu0
      %v2384 = vadd.f32 0.0, %v2383
      %v2385 = vpop.f32.mrb[0].mxu0
      %2386 = vmatprep.mubr.bf16.mxu0 0
      %2387 = vmatmul.mubr.bf16.gmra.mrb[0].mxu0 %v1639
      %v2388 = vpop.f32.mrb[0].mxu0
      %v2389 = vadd.f32 0.0, %v2388
      %v2390 = vpop.f32.mrb[0].mxu0
      %v2391 = vpop.f32.mrb[0].mxu0
      %v2392 = vadd.f32 0.0, %v2391
      %v2393 = vpop.f32.mrb[0].mxu0
      %2394 = vmatprep.mubr.bf16.mxu0 0
      %2395 = vmatmul.mubr.bf16.gmra.mrb[0].mxu0 %v1642
      %v2396 = vpop.f32.mrb[0].mxu0
      %v2397 = vadd.f32 0.0, %v2396
      %v2398 = vpop.f32.mrb[0].mxu0
      %v2399 = vpop.f32.mrb[0].mxu0
      %v2400 = vadd.f32 0.0, %v2399
      %v2401 = vpop.f32.mrb[0].mxu0
      %2402 = vmatprep.mubr.bf16.mxu0 0
      %2403 = vmatmul.mubr.bf16.gmra.mrb[0].mxu0 %v2245
      %v2404 = vpop.f32.mrb[0].mxu0
      %v2405 = vadd.f32 0.0, %v2404
      %v2406 = vpop.f32.mrb[0].mxu0
      %v2407 = vpop.f32.mrb[0].mxu0
      %v2408 = vadd.f32 0.0, %v2407
      %v2409 = vpop.f32.mrb[0].mxu0
      %2410 = vdwg.mxu0
      %v2411 = vadd.f32 %v2210, %v2285
      %v2412 = vadd.f32 %v2211, %v2288
      %v2413 = vadd.f32 %v2212, %v2293
      %v2414 = vadd.f32 %v2213, %v2296
      %v2415 = vadd.f32 %v2214, %v2301
      %v2416 = vadd.f32 %v2215, %v2304
      %v2417 = vadd.f32 %v2216, %v2309
      %v2418 = vadd.f32 %v2217, %v2312
      %v2419 = vadd.f32 %v2218, %v2317
      %v2420 = vadd.f32 %v2219, %v2320
      %v2421 = vadd.f32 %v2220, %v2325
      %v2422 = vadd.f32 %v2221, %v2328
      %v2423 = vadd.f32 %v2222, %v2333
      %v2424 = vadd.f32 %v2223, %v2336
      %v2425 = vadd.f32 %v2224, %v2341
      %v2426 = vadd.f32 %v2225, %v2344
      %v2427 = vadd.f32 %v2226, %v2349
      %v2428 = vadd.f32 %v2227, %v2352
      %v2429 = vadd.f32 %v2228, %v2357
      %v2430 = vadd.f32 %v2229, %v2360
      %v2431 = vadd.f32 %v2230, %v2365
      %v2432 = vadd.f32 %v2231, %v2368
      %v2433 = vadd.f32 %v2232, %v2373
      %v2434 = vadd.f32 %v2233, %v2376
      %v2435 = vadd.f32 %v2234, %v2381
      %v2436 = vadd.f32 %v2235, %v2384
      %v2437 = vadd.f32 %v2236, %v2389
      %v2438 = vadd.f32 %v2237, %v2392
      %v2439 = vadd.f32 %v2238, %v2397
      %v2440 = vadd.f32 %v2239, %v2400
      %v2441 = vadd.f32 %v2240, %v2405
      %v2442 = vadd.f32 %v2241, %v2408
      %s2443 = scalar_lea.vmem %s4, 12
      %v2444 = vld [vmem:[%s2443] sm:$0x3]
      %v2446 = vsel %vm604, %v2444, 0
      %2448 = vmatprep.subr.bf16.mxu0 0
      %2449 = vmatpush1.bf16.msra.mxu0 %v2446
      %2450 = vmatprep.subr.bf16.mxu0 0
      %2451 = vmatpush1.bf16.msra.mxu0 0
      %2452 = vmatprep.subr.bf16.mxu0 0
      %2453 = vmatpush1.bf16.msra.mxu0 0
      %2454 = vmatprep.subr.bf16.mxu0 0
      %2455 = vmatpush1.bf16.msra.mxu0 0
      %2456 = vmatprep.subr.bf16.mxu0 0
      %2457 = vmatpush1.bf16.msra.mxu0 0
      %2458 = vmatprep.subr.bf16.mxu0 0
      %2459 = vmatpush1.bf16.msra.mxu0 0
      %2460 = vmatprep.subr.bf16.mxu0 0
      %2461 = vmatpush1.bf16.msra.mxu0 0
      %2462 = vmatprep.subr.bf16.mxu0 0
      %2463 = vmatpush1.bf16.msra.mxu0 0
      %2464 = vmatprep.subr.bf16.mxu0 0
      %2465 = vmatpush1.bf16.msra.mxu0 0
      %2466 = vmatprep.subr.bf16.mxu0 0
      %2467 = vmatpush1.bf16.msra.mxu0 0
      %2468 = vmatprep.subr.bf16.mxu0 0
      %2469 = vmatpush1.bf16.msra.mxu0 0
      %2470 = vmatprep.subr.bf16.mxu0 0
      %2471 = vmatpush1.bf16.msra.mxu0 0
      %2472 = vmatprep.subr.bf16.mxu0 0
      %2473 = vmatpush1.bf16.msra.mxu0 0
      %2474 = vmatprep.subr.bf16.mxu0 0
      %2475 = vmatpush1.bf16.msra.mxu0 0
      %2476 = vmatprep.subr.bf16.mxu0 0
      %2477 = vmatpush1.bf16.msra.mxu0 0
      %2478 = vmatprep.subr.bf16.mxu0 0
      %2479 = vmatpush1.bf16.msra.mxu0 0
      %2480 = vmatprep.mubr.bf16.mxu0 0
      %2481 = vmatmul.mubr.bf16.gmra.mrb[0].mxu0 %v1389
      %v2482 = vpop.f32.mrb[0].mxu0
      %v2483 = vadd.f32 0.0, %v2482
      %v2484 = vpop.f32.mrb[0].mxu0
      %v2485 = vpop.f32.mrb[0].mxu0
      %v2486 = vadd.f32 0.0, %v2485
      %v2487 = vpop.f32.mrb[0].mxu0
      %2488 = vmatprep.mubr.bf16.mxu0 0
      %2489 = vmatmul.mubr.bf16.gmra.mrb[0].mxu0 %v1392
      %v2490 = vpop.f32.mrb[0].mxu0
      %v2491 = vadd.f32 0.0, %v2490
      %v2492 = vpop.f32.mrb[0].mxu0
      %v2493 = vpop.f32.mrb[0].mxu0
      %v2494 = vadd.f32 0.0, %v2493
      %v2495 = vpop.f32.mrb[0].mxu0
      %2496 = vmatprep.mubr.bf16.mxu0 0
      %2497 = vmatmul.mubr.bf16.gmra.mrb[0].mxu0 %v1395
      %v2498 = vpop.f32.mrb[0].mxu0
      %v2499 = vadd.f32 0.0, %v2498
      %v2500 = vpop.f32.mrb[0].mxu0
      %v2501 = vpop.f32.mrb[0].mxu0
      %v2502 = vadd.f32 0.0, %v2501
      %v2503 = vpop.f32.mrb[0].mxu0
      %2504 = vmatprep.mubr.bf16.mxu0 0
      %2505 = vmatmul.mubr.bf16.gmra.mrb[0].mxu0 %v1398
      %v2506 = vpop.f32.mrb[0].mxu0
      %v2507 = vadd.f32 0.0, %v2506
      %v2508 = vpop.f32.mrb[0].mxu0
      %v2509 = vpop.f32.mrb[0].mxu0
      %v2510 = vadd.f32 0.0, %v2509
      %v2511 = vpop.f32.mrb[0].mxu0
      %2512 = vmatprep.mubr.bf16.mxu0 0
      %2513 = vmatmul.mubr.bf16.gmra.mrb[0].mxu0 %v1401
      %v2514 = vpop.f32.mrb[0].mxu0
      %v2515 = vadd.f32 0.0, %v2514
      %v2516 = vpop.f32.mrb[0].mxu0
      %v2517 = vpop.f32.mrb[0].mxu0
      %v2518 = vadd.f32 0.0, %v2517
      %v2519 = vpop.f32.mrb[0].mxu0
      %2520 = vmatprep.mubr.bf16.mxu0 0
      %2521 = vmatmul.mubr.bf16.gmra.mrb[0].mxu0 %v1404
      %v2522 = vpop.f32.mrb[0].mxu0
      %v2523 = vadd.f32 0.0, %v2522
      %v2524 = vpop.f32.mrb[0].mxu0
      %v2525 = vpop.f32.mrb[0].mxu0
      %v2526 = vadd.f32 0.0, %v2525
      %v2527 = vpop.f32.mrb[0].mxu0
      %2528 = vmatprep.mubr.bf16.mxu0 0
      %2529 = vmatmul.mubr.bf16.gmra.mrb[0].mxu0 %v1407
      %v2530 = vpop.f32.mrb[0].mxu0
      %v2531 = vadd.f32 0.0, %v2530
      %v2532 = vpop.f32.mrb[0].mxu0
      %v2533 = vpop.f32.mrb[0].mxu0
      %v2534 = vadd.f32 0.0, %v2533
      %v2535 = vpop.f32.mrb[0].mxu0
      %2536 = vmatprep.mubr.bf16.mxu0 0
      %2537 = vmatmul.mubr.bf16.gmra.mrb[0].mxu0 %v1410
      %v2538 = vpop.f32.mrb[0].mxu0
      %v2539 = vadd.f32 0.0, %v2538
      %v2540 = vpop.f32.mrb[0].mxu0
      %v2541 = vpop.f32.mrb[0].mxu0
      %v2542 = vadd.f32 0.0, %v2541
      %v2543 = vpop.f32.mrb[0].mxu0
      %2544 = vmatprep.mubr.bf16.mxu0 0
      %2545 = vmatmul.mubr.bf16.gmra.mrb[0].mxu0 %v1413
      %v2546 = vpop.f32.mrb[0].mxu0
      %v2547 = vadd.f32 0.0, %v2546
      %v2548 = vpop.f32.mrb[0].mxu0
      %v2549 = vpop.f32.mrb[0].mxu0
      %v2550 = vadd.f32 0.0, %v2549
      %v2551 = vpop.f32.mrb[0].mxu0
      %2552 = vmatprep.mubr.bf16.mxu0 0
      %2553 = vmatmul.mubr.bf16.gmra.mrb[0].mxu0 %v1416
      %v2554 = vpop.f32.mrb[0].mxu0
      %v2555 = vadd.f32 0.0, %v2554
      %v2556 = vpop.f32.mrb[0].mxu0
      %v2557 = vpop.f32.mrb[0].mxu0
      %v2558 = vadd.f32 0.0, %v2557
      %v2559 = vpop.f32.mrb[0].mxu0
      %2560 = vmatprep.mubr.bf16.mxu0 0
      %2561 = vmatmul.mubr.bf16.gmra.mrb[0].mxu0 %v1419
      %v2562 = vpop.f32.mrb[0].mxu0
      %v2563 = vadd.f32 0.0, %v2562
      %v2564 = vpop.f32.mrb[0].mxu0
      %v2565 = vpop.f32.mrb[0].mxu0
      %v2566 = vadd.f32 0.0, %v2565
      %v2567 = vpop.f32.mrb[0].mxu0
      %2568 = vmatprep.mubr.bf16.mxu0 0
      %2569 = vmatmul.mubr.bf16.gmra.mrb[0].mxu0 %v1422
      %v2570 = vpop.f32.mrb[0].mxu0
      %v2571 = vadd.f32 0.0, %v2570
      %v2572 = vpop.f32.mrb[0].mxu0
      %v2573 = vpop.f32.mrb[0].mxu0
      %v2574 = vadd.f32 0.0, %v2573
      %v2575 = vpop.f32.mrb[0].mxu0
      %2576 = vmatprep.mubr.bf16.mxu0 0
      %2577 = vmatmul.mubr.bf16.gmra.mrb[0].mxu0 %v1425
      %v2578 = vpop.f32.mrb[0].mxu0
      %v2579 = vadd.f32 0.0, %v2578
      %v2580 = vpop.f32.mrb[0].mxu0
      %v2581 = vpop.f32.mrb[0].mxu0
      %v2582 = vadd.f32 0.0, %v2581
      %v2583 = vpop.f32.mrb[0].mxu0
      %2584 = vmatprep.mubr.bf16.mxu0 0
      %2585 = vmatmul.mubr.bf16.gmra.mrb[0].mxu0 %v1428
      %v2586 = vpop.f32.mrb[0].mxu0
      %v2587 = vadd.f32 0.0, %v2586
      %v2588 = vpop.f32.mrb[0].mxu0
      %v2589 = vpop.f32.mrb[0].mxu0
      %v2590 = vadd.f32 0.0, %v2589
      %v2591 = vpop.f32.mrb[0].mxu0
      %2592 = vmatprep.mubr.bf16.mxu0 0
      %2593 = vmatmul.mubr.bf16.gmra.mrb[0].mxu0 %v1843
      %v2594 = vpop.f32.mrb[0].mxu0
      %v2595 = vadd.f32 0.0, %v2594
      %v2596 = vpop.f32.mrb[0].mxu0
      %v2597 = vpop.f32.mrb[0].mxu0
      %v2598 = vadd.f32 0.0, %v2597
      %v2599 = vpop.f32.mrb[0].mxu0
      %2600 = vmatprep.mubr.bf16.mxu0 0
      %2601 = vmatmul.mubr.bf16.gmra.mrb[0].mxu0 %v1383
      %v2602 = vpop.f32.mrb[0].mxu0
      %v2603 = vadd.f32 0.0, %v2602
      %v2604 = vpop.f32.mrb[0].mxu0
      %v2605 = vpop.f32.mrb[0].mxu0
      %v2606 = vadd.f32 0.0, %v2605
      %v2607 = vpop.f32.mrb[0].mxu0
      %2608 = vdwg.mxu0
      %v2609 = vadd.f32 %v2411, %v2483
      %v2610 = vadd.f32 %v2412, %v2486
      %v2611 = vadd.f32 %v2413, %v2491
      %v2612 = vadd.f32 %v2414, %v2494
      %v2613 = vadd.f32 %v2415, %v2499
      %v2614 = vadd.f32 %v2416, %v2502
      %v2615 = vadd.f32 %v2417, %v2507
      %v2616 = vadd.f32 %v2418, %v2510
      %v2617 = vadd.f32 %v2419, %v2515
      %v2618 = vadd.f32 %v2420, %v2518
      %v2619 = vadd.f32 %v2421, %v2523
      %v2620 = vadd.f32 %v2422, %v2526
      %v2621 = vadd.f32 %v2423, %v2531
      %v2622 = vadd.f32 %v2424, %v2534
      %v2623 = vadd.f32 %v2425, %v2539
      %v2624 = vadd.f32 %v2426, %v2542
      %v2625 = vadd.f32 %v2427, %v2547
      %v2626 = vadd.f32 %v2428, %v2550
      %v2627 = vadd.f32 %v2429, %v2555
      %v2628 = vadd.f32 %v2430, %v2558
      %v2629 = vadd.f32 %v2431, %v2563
      %v2630 = vadd.f32 %v2432, %v2566
      %v2631 = vadd.f32 %v2433, %v2571
      %v2632 = vadd.f32 %v2434, %v2574
      %v2633 = vadd.f32 %v2435, %v2579
      %v2634 = vadd.f32 %v2436, %v2582
      %v2635 = vadd.f32 %v2437, %v2587
      %v2636 = vadd.f32 %v2438, %v2590
      %v2637 = vadd.f32 %v2439, %v2595
      %v2638 = vadd.f32 %v2440, %v2598
      %v2639 = vadd.f32 %v2441, %v2603
      %v2640 = vadd.f32 %v2442, %v2606
      %s2641 = scalar_lea.vmem %s4, 14
      %v2642 = vld [vmem:[%s2641] sm:$0x3]
      %v2644 = vsel %vm604, %v2642, 0
      %2646 = vmatprep.subr.bf16.mxu0 0
      %2647 = vmatpush1.bf16.msra.mxu0 %v2644
      %2648 = vmatprep.subr.bf16.mxu0 0
      %2649 = vmatpush1.bf16.msra.mxu0 0
      %2650 = vmatprep.subr.bf16.mxu0 0
      %2651 = vmatpush1.bf16.msra.mxu0 0
      %2652 = vmatprep.subr.bf16.mxu0 0
      %2653 = vmatpush1.bf16.msra.mxu0 0
      %2654 = vmatprep.subr.bf16.mxu0 0
      %2655 = vmatpush1.bf16.msra.mxu0 0
      %2656 = vmatprep.subr.bf16.mxu0 0
      %2657 = vmatpush1.bf16.msra.mxu0 0
      %2658 = vmatprep.subr.bf16.mxu0 0
      %2659 = vmatpush1.bf16.msra.mxu0 0
      %2660 = vmatprep.subr.bf16.mxu0 0
      %2661 = vmatpush1.bf16.msra.mxu0 0
      %2662 = vmatprep.subr.bf16.mxu0 0
      %2663 = vmatpush1.bf16.msra.mxu0 0
      %2664 = vmatprep.subr.bf16.mxu0 0
      %2665 = vmatpush1.bf16.msra.mxu0 0
      %2666 = vmatprep.subr.bf16.mxu0 0
      %2667 = vmatpush1.bf16.msra.mxu0 0
      %2668 = vmatprep.subr.bf16.mxu0 0
      %2669 = vmatpush1.bf16.msra.mxu0 0
      %2670 = vmatprep.subr.bf16.mxu0 0
      %2671 = vmatpush1.bf16.msra.mxu0 0
      %2672 = vmatprep.subr.bf16.mxu0 0
      %2673 = vmatpush1.bf16.msra.mxu0 0
      %2674 = vmatprep.subr.bf16.mxu0 0
      %2675 = vmatpush1.bf16.msra.mxu0 0
      %2676 = vmatprep.subr.bf16.mxu0 0
      %2677 = vmatpush1.bf16.msra.mxu0 0
      %2678 = vmatprep.mubr.bf16.mxu0 0
      %2679 = vmatmul.mubr.bf16.gmra.mrb[0].mxu0 %v1177
      %v2680 = vpop.f32.mrb[0].mxu0
      %v2681 = vadd.f32 0.0, %v2680
      %v2682 = vpop.f32.mrb[0].mxu0
      %v2683 = vpop.f32.mrb[0].mxu0
      %v2684 = vadd.f32 0.0, %v2683
      %v2685 = vpop.f32.mrb[0].mxu0
      %2686 = vmatprep.mubr.bf16.mxu0 0
      %2687 = vmatmul.mubr.bf16.gmra.mrb[0].mxu0 %v1180
      %v2688 = vpop.f32.mrb[0].mxu0
      %v2689 = vadd.f32 0.0, %v2688
      %v2690 = vpop.f32.mrb[0].mxu0
      %v2691 = vpop.f32.mrb[0].mxu0
      %v2692 = vadd.f32 0.0, %v2691
      %v2693 = vpop.f32.mrb[0].mxu0
      %2694 = vmatprep.mubr.bf16.mxu0 0
      %2695 = vmatmul.mubr.bf16.gmra.mrb[0].mxu0 %v1183
      %v2696 = vpop.f32.mrb[0].mxu0
      %v2697 = vadd.f32 0.0, %v2696
      %v2698 = vpop.f32.mrb[0].mxu0
      %v2699 = vpop.f32.mrb[0].mxu0
      %v2700 = vadd.f32 0.0, %v2699
      %v2701 = vpop.f32.mrb[0].mxu0
      %2702 = vmatprep.mubr.bf16.mxu0 0
      %2703 = vmatmul.mubr.bf16.gmra.mrb[0].mxu0 %v1186
      %v2704 = vpop.f32.mrb[0].mxu0
      %v2705 = vadd.f32 0.0, %v2704
      %v2706 = vpop.f32.mrb[0].mxu0
      %v2707 = vpop.f32.mrb[0].mxu0
      %v2708 = vadd.f32 0.0, %v2707
      %v2709 = vpop.f32.mrb[0].mxu0
      %2710 = vmatprep.mubr.bf16.mxu0 0
      %2711 = vmatmul.mubr.bf16.gmra.mrb[0].mxu0 %v1189
      %v2712 = vpop.f32.mrb[0].mxu0
      %v2713 = vadd.f32 0.0, %v2712
      %v2714 = vpop.f32.mrb[0].mxu0
      %v2715 = vpop.f32.mrb[0].mxu0
      %v2716 = vadd.f32 0.0, %v2715
      %v2717 = vpop.f32.mrb[0].mxu0
      %2718 = vmatprep.mubr.bf16.mxu0 0
      %2719 = vmatmul.mubr.bf16.gmra.mrb[0].mxu0 %v1192
      %v2720 = vpop.f32.mrb[0].mxu0
      %v2721 = vadd.f32 0.0, %v2720
      %v2722 = vpop.f32.mrb[0].mxu0
      %v2723 = vpop.f32.mrb[0].mxu0
      %v2724 = vadd.f32 0.0, %v2723
      %v2725 = vpop.f32.mrb[0].mxu0
      %2726 = vmatprep.mubr.bf16.mxu0 0
      %2727 = vmatmul.mubr.bf16.gmra.mrb[0].mxu0 %v1195
      %v2728 = vpop.f32.mrb[0].mxu0
      %v2729 = vadd.f32 0.0, %v2728
      %v2730 = vpop.f32.mrb[0].mxu0
      %v2731 = vpop.f32.mrb[0].mxu0
      %v2732 = vadd.f32 0.0, %v2731
      %v2733 = vpop.f32.mrb[0].mxu0
      %2734 = vmatprep.mubr.bf16.mxu0 0
      %2735 = vmatmul.mubr.bf16.gmra.mrb[0].mxu0 %v1198
      %v2736 = vpop.f32.mrb[0].mxu0
      %v2737 = vadd.f32 0.0, %v2736
      %v2738 = vpop.f32.mrb[0].mxu0
      %v2739 = vpop.f32.mrb[0].mxu0
      %v2740 = vadd.f32 0.0, %v2739
      %v2741 = vpop.f32.mrb[0].mxu0
      %2742 = vmatprep.mubr.bf16.mxu0 0
      %2743 = vmatmul.mubr.bf16.gmra.mrb[0].mxu0 %v1201
      %v2744 = vpop.f32.mrb[0].mxu0
      %v2745 = vadd.f32 0.0, %v2744
      %v2746 = vpop.f32.mrb[0].mxu0
      %v2747 = vpop.f32.mrb[0].mxu0
      %v2748 = vadd.f32 0.0, %v2747
      %v2749 = vpop.f32.mrb[0].mxu0
      %2750 = vmatprep.mubr.bf16.mxu0 0
      %2751 = vmatmul.mubr.bf16.gmra.mrb[0].mxu0 %v1204
      %v2752 = vpop.f32.mrb[0].mxu0
      %v2753 = vadd.f32 0.0, %v2752
      %v2754 = vpop.f32.mrb[0].mxu0
      %v2755 = vpop.f32.mrb[0].mxu0
      %v2756 = vadd.f32 0.0, %v2755
      %v2757 = vpop.f32.mrb[0].mxu0
      %2758 = vmatprep.mubr.bf16.mxu0 0
      %2759 = vmatmul.mubr.bf16.gmra.mrb[0].mxu0 %v1207
      %v2760 = vpop.f32.mrb[0].mxu0
      %v2761 = vadd.f32 0.0, %v2760
      %v2762 = vpop.f32.mrb[0].mxu0
      %v2763 = vpop.f32.mrb[0].mxu0
      %v2764 = vadd.f32 0.0, %v2763
      %v2765 = vpop.f32.mrb[0].mxu0
      %2766 = vmatprep.mubr.bf16.mxu0 0
      %2767 = vmatmul.mubr.bf16.gmra.mrb[0].mxu0 %v1210
      %v2768 = vpop.f32.mrb[0].mxu0
      %v2769 = vadd.f32 0.0, %v2768
      %v2770 = vpop.f32.mrb[0].mxu0
      %v2771 = vpop.f32.mrb[0].mxu0
      %v2772 = vadd.f32 0.0, %v2771
      %v2773 = vpop.f32.mrb[0].mxu0
      %2774 = vmatprep.mubr.bf16.mxu0 0
      %2775 = vmatmul.mubr.bf16.gmra.mrb[0].mxu0 %v1213
      %v2776 = vpop.f32.mrb[0].mxu0
      %v2777 = vadd.f32 0.0, %v2776
      %v2778 = vpop.f32.mrb[0].mxu0
      %v2779 = vpop.f32.mrb[0].mxu0
      %v2780 = vadd.f32 0.0, %v2779
      %v2781 = vpop.f32.mrb[0].mxu0
      %2782 = vmatprep.mubr.bf16.mxu0 0
      %2783 = vmatmul.mubr.bf16.gmra.mrb[0].mxu0 %v1216
      %v2784 = vpop.f32.mrb[0].mxu0
      %v2785 = vadd.f32 0.0, %v2784
      %v2786 = vpop.f32.mrb[0].mxu0
      %v2787 = vpop.f32.mrb[0].mxu0
      %v2788 = vadd.f32 0.0, %v2787
      %v2789 = vpop.f32.mrb[0].mxu0
      %2790 = vmatprep.mubr.bf16.mxu0 0
      %2791 = vmatmul.mubr.bf16.gmra.mrb[0].mxu0 %v2044
      %v2792 = vpop.f32.mrb[0].mxu0
      %v2793 = vadd.f32 0.0, %v2792
      %v2794 = vpop.f32.mrb[0].mxu0
      %v2795 = vpop.f32.mrb[0].mxu0
      %v2796 = vadd.f32 0.0, %v2795
      %v2797 = vpop.f32.mrb[0].mxu0
      %2798 = vmatprep.mubr.bf16.mxu0 0
      %2799 = vmatmul.mubr.bf16.gmra.mrb[0].mxu0 %v1171
      %v2800 = vpop.f32.mrb[0].mxu0
      %v2801 = vadd.f32 0.0, %v2800
      %v2802 = vpop.f32.mrb[0].mxu0
      %v2803 = vpop.f32.mrb[0].mxu0
      %v2804 = vadd.f32 0.0, %v2803
      %v2805 = vpop.f32.mrb[0].mxu0
      %2806 = vdwg.mxu0
      %v2807 = vadd.f32 %v2609, %v2681
      %v2808 = vadd.f32 %v2610, %v2684
      %v2809 = vadd.f32 %v2611, %v2689
      %v2810 = vadd.f32 %v2612, %v2692
      %v2811 = vadd.f32 %v2613, %v2697
      %v2812 = vadd.f32 %v2614, %v2700
      %v2813 = vadd.f32 %v2615, %v2705
      %v2814 = vadd.f32 %v2616, %v2708
      %v2815 = vadd.f32 %v2617, %v2713
      %v2816 = vadd.f32 %v2618, %v2716
      %v2817 = vadd.f32 %v2619, %v2721
      %v2818 = vadd.f32 %v2620, %v2724
      %v2819 = vadd.f32 %v2621, %v2729
      %v2820 = vadd.f32 %v2622, %v2732
      %v2821 = vadd.f32 %v2623, %v2737
      %v2822 = vadd.f32 %v2624, %v2740
      %v2823 = vadd.f32 %v2625, %v2745
      %v2824 = vadd.f32 %v2626, %v2748
      %v2825 = vadd.f32 %v2627, %v2753
      %v2826 = vadd.f32 %v2628, %v2756
      %v2827 = vadd.f32 %v2629, %v2761
      %v2828 = vadd.f32 %v2630, %v2764
      %v2829 = vadd.f32 %v2631, %v2769
      %v2830 = vadd.f32 %v2632, %v2772
      %v2831 = vadd.f32 %v2633, %v2777
      %v2832 = vadd.f32 %v2634, %v2780
      %v2833 = vadd.f32 %v2635, %v2785
      %v2834 = vadd.f32 %v2636, %v2788
      %v2835 = vadd.f32 %v2637, %v2793
      %v2836 = vadd.f32 %v2638, %v2796
      %v2837 = vadd.f32 %v2639, %v2801
      %v2838 = vadd.f32 %v2640, %v2804
      %s2839 = scalar_lea.vmem %s4, 16
      %v2840 = vld [vmem:[%s2839] sm:$0x3]
      %v2842 = vsel %vm604, %v2840, 0
      %2844 = vmatprep.subr.bf16.mxu0 0
      %2845 = vmatpush1.bf16.msra.mxu0 %v2842
      %2846 = vmatprep.subr.bf16.mxu0 0
      %2847 = vmatpush1.bf16.msra.mxu0 0
      %2848 = vmatprep.subr.bf16.mxu0 0
      %2849 = vmatpush1.bf16.msra.mxu0 0
      %2850 = vmatprep.subr.bf16.mxu0 0
      %2851 = vmatpush1.bf16.msra.mxu0 0
      %2852 = vmatprep.subr.bf16.mxu0 0
      %2853 = vmatpush1.bf16.msra.mxu0 0
      %2854 = vmatprep.subr.bf16.mxu0 0
      %2855 = vmatpush1.bf16.msra.mxu0 0
      %2856 = vmatprep.subr.bf16.mxu0 0
      %2857 = vmatpush1.bf16.msra.mxu0 0
      %2858 = vmatprep.subr.bf16.mxu0 0
      %2859 = vmatpush1.bf16.msra.mxu0 0
      %2860 = vmatprep.subr.bf16.mxu0 0
      %2861 = vmatpush1.bf16.msra.mxu0 0
      %2862 = vmatprep.subr.bf16.mxu0 0
      %2863 = vmatpush1.bf16.msra.mxu0 0
      %2864 = vmatprep.subr.bf16.mxu0 0
      %2865 = vmatpush1.bf16.msra.mxu0 0
      %2866 = vmatprep.subr.bf16.mxu0 0
      %2867 = vmatpush1.bf16.msra.mxu0 0
      %2868 = vmatprep.subr.bf16.mxu0 0
      %2869 = vmatpush1.bf16.msra.mxu0 0
      %2870 = vmatprep.subr.bf16.mxu0 0
      %2871 = vmatpush1.bf16.msra.mxu0 0
      %2872 = vmatprep.subr.bf16.mxu0 0
      %2873 = vmatpush1.bf16.msra.mxu0 0
      %2874 = vmatprep.subr.bf16.mxu0 0
      %2875 = vmatpush1.bf16.msra.mxu0 0
      %2876 = vmatprep.mubr.bf16.mxu0 0
      %2877 = vmatmul.mubr.bf16.gmra.mrb[0].mxu0 %v1603
      %v2878 = vpop.f32.mrb[0].mxu0
      %v2879 = vadd.f32 0.0, %v2878
      %v2880 = vpop.f32.mrb[0].mxu0
      %v2881 = vpop.f32.mrb[0].mxu0
      %v2882 = vadd.f32 0.0, %v2881
      %v2883 = vpop.f32.mrb[0].mxu0
      %2884 = vmatprep.mubr.bf16.mxu0 0
      %2885 = vmatmul.mubr.bf16.gmra.mrb[0].mxu0 %v1606
      %v2886 = vpop.f32.mrb[0].mxu0
      %v2887 = vadd.f32 0.0, %v2886
      %v2888 = vpop.f32.mrb[0].mxu0
      %v2889 = vpop.f32.mrb[0].mxu0
      %v2890 = vadd.f32 0.0, %v2889
      %v2891 = vpop.f32.mrb[0].mxu0
      %2892 = vmatprep.mubr.bf16.mxu0 0
      %2893 = vmatmul.mubr.bf16.gmra.mrb[0].mxu0 %v1609
      %v2894 = vpop.f32.mrb[0].mxu0
      %v2895 = vadd.f32 0.0, %v2894
      %v2896 = vpop.f32.mrb[0].mxu0
      %v2897 = vpop.f32.mrb[0].mxu0
      %v2898 = vadd.f32 0.0, %v2897
      %v2899 = vpop.f32.mrb[0].mxu0
      %2900 = vmatprep.mubr.bf16.mxu0 0
      %2901 = vmatmul.mubr.bf16.gmra.mrb[0].mxu0 %v1612
      %v2902 = vpop.f32.mrb[0].mxu0
      %v2903 = vadd.f32 0.0, %v2902
      %v2904 = vpop.f32.mrb[0].mxu0
      %v2905 = vpop.f32.mrb[0].mxu0
      %v2906 = vadd.f32 0.0, %v2905
      %v2907 = vpop.f32.mrb[0].mxu0
      %2908 = vmatprep.mubr.bf16.mxu0 0
      %2909 = vmatmul.mubr.bf16.gmra.mrb[0].mxu0 %v1615
      %v2910 = vpop.f32.mrb[0].mxu0
      %v2911 = vadd.f32 0.0, %v2910
      %v2912 = vpop.f32.mrb[0].mxu0
      %v2913 = vpop.f32.mrb[0].mxu0
      %v2914 = vadd.f32 0.0, %v2913
      %v2915 = vpop.f32.mrb[0].mxu0
      %2916 = vmatprep.mubr.bf16.mxu0 0
      %2917 = vmatmul.mubr.bf16.gmra.mrb[0].mxu0 %v1618
      %v2918 = vpop.f32.mrb[0].mxu0
      %v2919 = vadd.f32 0.0, %v2918
      %v2920 = vpop.f32.mrb[0].mxu0
      %v2921 = vpop.f32.mrb[0].mxu0
      %v2922 = vadd.f32 0.0, %v2921
      %v2923 = vpop.f32.mrb[0].mxu0
      %2924 = vmatprep.mubr.bf16.mxu0 0
      %2925 = vmatmul.mubr.bf16.gmra.mrb[0].mxu0 %v1621
      %v2926 = vpop.f32.mrb[0].mxu0
      %v2927 = vadd.f32 0.0, %v2926
      %v2928 = vpop.f32.mrb[0].mxu0
      %v2929 = vpop.f32.mrb[0].mxu0
      %v2930 = vadd.f32 0.0, %v2929
      %v2931 = vpop.f32.mrb[0].mxu0
      %2932 = vmatprep.mubr.bf16.mxu0 0
      %2933 = vmatmul.mubr.bf16.gmra.mrb[0].mxu0 %v1624
      %v2934 = vpop.f32.mrb[0].mxu0
      %v2935 = vadd.f32 0.0, %v2934
      %v2936 = vpop.f32.mrb[0].mxu0
      %v2937 = vpop.f32.mrb[0].mxu0
      %v2938 = vadd.f32 0.0, %v2937
      %v2939 = vpop.f32.mrb[0].mxu0
      %2940 = vmatprep.mubr.bf16.mxu0 0
      %2941 = vmatmul.mubr.bf16.gmra.mrb[0].mxu0 %v1627
      %v2942 = vpop.f32.mrb[0].mxu0
      %v2943 = vadd.f32 0.0, %v2942
      %v2944 = vpop.f32.mrb[0].mxu0
      %v2945 = vpop.f32.mrb[0].mxu0
      %v2946 = vadd.f32 0.0, %v2945
      %v2947 = vpop.f32.mrb[0].mxu0
      %2948 = vmatprep.mubr.bf16.mxu0 0
      %2949 = vmatmul.mubr.bf16.gmra.mrb[0].mxu0 %v1630
      %v2950 = vpop.f32.mrb[0].mxu0
      %v2951 = vadd.f32 0.0, %v2950
      %v2952 = vpop.f32.mrb[0].mxu0
      %v2953 = vpop.f32.mrb[0].mxu0
      %v2954 = vadd.f32 0.0, %v2953
      %v2955 = vpop.f32.mrb[0].mxu0
      %2956 = vmatprep.mubr.bf16.mxu0 0
      %2957 = vmatmul.mubr.bf16.gmra.mrb[0].mxu0 %v1633
      %v2958 = vpop.f32.mrb[0].mxu0
      %v2959 = vadd.f32 0.0, %v2958
      %v2960 = vpop.f32.mrb[0].mxu0
      %v2961 = vpop.f32.mrb[0].mxu0
      %v2962 = vadd.f32 0.0, %v2961
      %v2963 = vpop.f32.mrb[0].mxu0
      %2964 = vmatprep.mubr.bf16.mxu0 0
      %2965 = vmatmul.mubr.bf16.gmra.mrb[0].mxu0 %v1636
      %v2966 = vpop.f32.mrb[0].mxu0
      %v2967 = vadd.f32 0.0, %v2966
      %v2968 = vpop.f32.mrb[0].mxu0
      %v2969 = vpop.f32.mrb[0].mxu0
      %v2970 = vadd.f32 0.0, %v2969
      %v2971 = vpop.f32.mrb[0].mxu0
      %2972 = vmatprep.mubr.bf16.mxu0 0
      %2973 = vmatmul.mubr.bf16.gmra.mrb[0].mxu0 %v1639
      %v2974 = vpop.f32.mrb[0].mxu0
      %v2975 = vadd.f32 0.0, %v2974
      %v2976 = vpop.f32.mrb[0].mxu0
      %v2977 = vpop.f32.mrb[0].mxu0
      %v2978 = vadd.f32 0.0, %v2977
      %v2979 = vpop.f32.mrb[0].mxu0
      %2980 = vmatprep.mubr.bf16.mxu0 0
      %2981 = vmatmul.mubr.bf16.gmra.mrb[0].mxu0 %v1642
      %v2982 = vpop.f32.mrb[0].mxu0
      %v2983 = vadd.f32 0.0, %v2982
      %v2984 = vpop.f32.mrb[0].mxu0
      %v2985 = vpop.f32.mrb[0].mxu0
      %v2986 = vadd.f32 0.0, %v2985
      %v2987 = vpop.f32.mrb[0].mxu0
      %2988 = vmatprep.mubr.bf16.mxu0 0
      %2989 = vmatmul.mubr.bf16.gmra.mrb[0].mxu0 %v2245
      %v2990 = vpop.f32.mrb[0].mxu0
      %v2991 = vadd.f32 0.0, %v2990
      %v2992 = vpop.f32.mrb[0].mxu0
      %v2993 = vpop.f32.mrb[0].mxu0
      %v2994 = vadd.f32 0.0, %v2993
      %v2995 = vpop.f32.mrb[0].mxu0
      %2996 = vmatprep.mubr.bf16.mxu0 0
      %2997 = vmatmul.mubr.bf16.gmra.mrb[0].mxu0 %v1597
      %v2998 = vpop.f32.mrb[0].mxu0
      %v2999 = vadd.f32 0.0, %v2998
      %v3000 = vpop.f32.mrb[0].mxu0
      %v3001 = vpop.f32.mrb[0].mxu0
      %v3002 = vadd.f32 0.0, %v3001
      %v3003 = vpop.f32.mrb[0].mxu0
      %3004 = vdwg.mxu0
      %v3005 = vadd.f32 %v2807, %v2879
      %v3006 = vadd.f32 %v2808, %v2882
      %v3007 = vadd.f32 %v2809, %v2887
      %v3008 = vadd.f32 %v2810, %v2890
      %v3009 = vadd.f32 %v2811, %v2895
      %v3010 = vadd.f32 %v2812, %v2898
      %v3011 = vadd.f32 %v2813, %v2903
      %v3012 = vadd.f32 %v2814, %v2906
      %v3013 = vadd.f32 %v2815, %v2911
      %v3014 = vadd.f32 %v2816, %v2914
      %v3015 = vadd.f32 %v2817, %v2919
      %v3016 = vadd.f32 %v2818, %v2922
      %v3017 = vadd.f32 %v2819, %v2927
      %v3018 = vadd.f32 %v2820, %v2930
      %v3019 = vadd.f32 %v2821, %v2935
      %v3020 = vadd.f32 %v2822, %v2938
      %v3021 = vadd.f32 %v2823, %v2943
      %v3022 = vadd.f32 %v2824, %v2946
      %v3023 = vadd.f32 %v2825, %v2951
      %v3024 = vadd.f32 %v2826, %v2954
      %v3025 = vadd.f32 %v2827, %v2959
      %v3026 = vadd.f32 %v2828, %v2962
      %v3027 = vadd.f32 %v2829, %v2967
      %v3028 = vadd.f32 %v2830, %v2970
      %v3029 = vadd.f32 %v2831, %v2975
      %v3030 = vadd.f32 %v2832, %v2978
      %v3031 = vadd.f32 %v2833, %v2983
      %v3032 = vadd.f32 %v2834, %v2986
      %v3033 = vadd.f32 %v2835, %v2991
      %v3034 = vadd.f32 %v2836, %v2994
      %v3035 = vadd.f32 %v2837, %v2999
      %v3036 = vadd.f32 %v2838, %v3002
      %v3037 = vld [vmem:[%s5] sm:$0x1]
      %v3039 = vlaneseq
      %v3040 = vshrl.u32 %v3039, 7
      %v3041 = vsub.s32 0, %v3040
      %v3042 = vrot.slane %v3037, %v3041
      %v3044 = vmul.f32 %v3005, %v3042
      %v3045 = vmul.f32 %v3006, %v3042
      %v3046 = vmul.f32 %v3007, %v3042
      %v3047 = vmul.f32 %v3008, %v3042
      %v3048 = vmul.f32 %v3009, %v3042
      %v3049 = vmul.f32 %v3010, %v3042
      %v3050 = vmul.f32 %v3011, %v3042
      %v3051 = vmul.f32 %v3012, %v3042
      %v3052 = vmul.f32 %v3013, %v3042
      %v3053 = vmul.f32 %v3014, %v3042
      %v3054 = vmul.f32 %v3015, %v3042
      %v3055 = vmul.f32 %v3016, %v3042
      %v3056 = vmul.f32 %v3017, %v3042
      %v3057 = vmul.f32 %v3018, %v3042
      %v3058 = vmul.f32 %v3019, %v3042
      %v3059 = vmul.f32 %v3020, %v3042
      %v3060 = vmul.f32 %v3021, %v3042
      %v3061 = vmul.f32 %v3022, %v3042
      %v3062 = vmul.f32 %v3023, %v3042
      %v3063 = vmul.f32 %v3024, %v3042
      %v3064 = vmul.f32 %v3025, %v3042
      %v3065 = vmul.f32 %v3026, %v3042
      %v3066 = vmul.f32 %v3027, %v3042
      %v3067 = vmul.f32 %v3028, %v3042
      %v3068 = vmul.f32 %v3029, %v3042
      %v3069 = vmul.f32 %v3030, %v3042
      %v3070 = vmul.f32 %v3031, %v3042
      %v3071 = vmul.f32 %v3032, %v3042
      %v3072 = vmul.f32 %v3033, %v3042
      %v3073 = vmul.f32 %v3034, %v3042
      %v3074 = vmul.f32 %v3035, %v3042
      %v3075 = vmul.f32 %v3036, %v3042
      %v3076 = vld [vmem:[%s6] sm:$0x1]
      %v3078 = vlaneseq
      %v3079 = vshrl.u32 %v3078, 7
      %v3080 = vsub.s32 0, %v3079
      %v3081 = vrot.slane %v3076, %v3080
      %v3083 = vadd.f32 %v3044, %v3081
      %v3084 = vadd.f32 %v3045, %v3081
      %v3085 = vadd.f32 %v3046, %v3081
      %v3086 = vadd.f32 %v3047, %v3081
      %v3087 = vadd.f32 %v3048, %v3081
      %v3088 = vadd.f32 %v3049, %v3081
      %v3089 = vadd.f32 %v3050, %v3081
      %v3090 = vadd.f32 %v3051, %v3081
      %v3091 = vadd.f32 %v3052, %v3081
      %v3092 = vadd.f32 %v3053, %v3081
      %v3093 = vadd.f32 %v3054, %v3081
      %v3094 = vadd.f32 %v3055, %v3081
      %v3095 = vadd.f32 %v3056, %v3081
      %v3096 = vadd.f32 %v3057, %v3081
      %v3097 = vadd.f32 %v3058, %v3081
      %v3098 = vadd.f32 %v3059, %v3081
      %v3099 = vadd.f32 %v3060, %v3081
      %v3100 = vadd.f32 %v3061, %v3081
      %v3101 = vadd.f32 %v3062, %v3081
      %v3102 = vadd.f32 %v3063, %v3081
      %v3103 = vadd.f32 %v3064, %v3081
      %v3104 = vadd.f32 %v3065, %v3081
      %v3105 = vadd.f32 %v3066, %v3081
      %v3106 = vadd.f32 %v3067, %v3081
      %v3107 = vadd.f32 %v3068, %v3081
      %v3108 = vadd.f32 %v3069, %v3081
      %v3109 = vadd.f32 %v3070, %v3081
      %v3110 = vadd.f32 %v3071, %v3081
      %v3111 = vadd.f32 %v3072, %v3081
      %v3112 = vadd.f32 %v3073, %v3081
      %v3113 = vadd.f32 %v3074, %v3081
      %v3114 = vadd.f32 %v3075, %v3081
      %v3115 = vmax.f32 %v3083, 0.0
      %v3116 = vmax.f32 %v3084, 0.0
      %v3117 = vmax.f32 %v3085, 0.0
      %v3118 = vmax.f32 %v3086, 0.0
      %v3119 = vmax.f32 %v3087, 0.0
      %v3120 = vmax.f32 %v3088, 0.0
      %v3121 = vmax.f32 %v3089, 0.0
      %v3122 = vmax.f32 %v3090, 0.0
      %v3123 = vmax.f32 %v3091, 0.0
      %v3124 = vmax.f32 %v3092, 0.0
      %v3125 = vmax.f32 %v3093, 0.0
      %v3126 = vmax.f32 %v3094, 0.0
      %v3127 = vmax.f32 %v3095, 0.0
      %v3128 = vmax.f32 %v3096, 0.0
      %v3129 = vmax.f32 %v3097, 0.0
      %v3130 = vmax.f32 %v3098, 0.0
      %v3131 = vmax.f32 %v3099, 0.0
      %v3132 = vmax.f32 %v3100, 0.0
      %v3133 = vmax.f32 %v3101, 0.0
      %v3134 = vmax.f32 %v3102, 0.0
      %v3135 = vmax.f32 %v3103, 0.0
      %v3136 = vmax.f32 %v3104, 0.0
      %v3137 = vmax.f32 %v3105, 0.0
      %v3138 = vmax.f32 %v3106, 0.0
      %v3139 = vmax.f32 %v3107, 0.0
      %v3140 = vmax.f32 %v3108, 0.0
      %v3141 = vmax.f32 %v3109, 0.0
      %v3142 = vmax.f32 %v3110, 0.0
      %v3143 = vmax.f32 %v3111, 0.0
      %v3144 = vmax.f32 %v3112, 0.0
      %v3145 = vmax.f32 %v3113, 0.0
      %v3146 = vmax.f32 %v3114, 0.0
      %v3147 = vpack.c.bf16 %v3116, %v3115
      %v3148 = vpack.c.bf16 %v3118, %v3117
      %v3149 = vpack.c.bf16 %v3120, %v3119
      %v3150 = vpack.c.bf16 %v3122, %v3121
      %v3151 = vpack.c.bf16 %v3124, %v3123
      %v3152 = vpack.c.bf16 %v3126, %v3125
      %v3153 = vpack.c.bf16 %v3128, %v3127
      %v3154 = vpack.c.bf16 %v3130, %v3129
      %v3155 = vpack.c.bf16 %v3132, %v3131
      %v3156 = vpack.c.bf16 %v3134, %v3133
      %v3157 = vpack.c.bf16 %v3136, %v3135
      %v3158 = vpack.c.bf16 %v3138, %v3137
      %v3159 = vpack.c.bf16 %v3140, %v3139
      %v3160 = vpack.c.bf16 %v3142, %v3141
      %v3161 = vpack.c.bf16 %v3144, %v3143
      %v3162 = vpack.c.bf16 %v3146, %v3145
      %v3163 = vld [vmem:[%s7] sm:$0x3]
      %v3165 = vsel %vm555, %v3147, 0
      %v3168 = vsel %vm555, %v3148, 0
      %v3171 = vsel %vm555, %v3149, 0
      %v3174 = vsel %vm555, %v3150, 0
      %v3177 = vsel %vm555, %v3151, 0
      %v3180 = vsel %vm555, %v3152, 0
      %v3183 = vsel %vm555, %v3153, 0
      %v3186 = vsel %vm555, %v3154, 0
      %v3189 = vsel %vm555, %v3155, 0
      %v3192 = vsel %vm555, %v3156, 0
      %v3195 = vsel %vm555, %v3157, 0
      %v3198 = vsel %vm555, %v3158, 0
      %v3201 = vsel %vm555, %v3159, 0
      %v3204 = vsel %vm555, %v3160, 0
      %v3207 = vsel %vm555, %v3161, 0
      %v3210 = vsel %vm555, %v3162, 0
      %v3213 = vsel %vm604, %v3163, 0
      %3215 = vmatprep.subr.bf16.mxu0 0
      %3216 = vmatpush1.bf16.msra.mxu0 %v3213
      %3217 = vmatprep.subr.bf16.mxu0 0
      %3218 = vmatpush1.bf16.msra.mxu0 0
      %3219 = vmatprep.subr.bf16.mxu0 0
      %3220 = vmatpush1.bf16.msra.mxu0 0
      %3221 = vmatprep.subr.bf16.mxu0 0
      %3222 = vmatpush1.bf16.msra.mxu0 0
      %3223 = vmatprep.subr.bf16.mxu0 0
      %3224 = vmatpush1.bf16.msra.mxu0 0
      %3225 = vmatprep.subr.bf16.mxu0 0
      %3226 = vmatpush1.bf16.msra.mxu0 0
      %3227 = vmatprep.subr.bf16.mxu0 0
      %3228 = vmatpush1.bf16.msra.mxu0 0
      %3229 = vmatprep.subr.bf16.mxu0 0
      %3230 = vmatpush1.bf16.msra.mxu0 0
      %3231 = vmatprep.subr.bf16.mxu0 0
      %3232 = vmatpush1.bf16.msra.mxu0 0
      %3233 = vmatprep.subr.bf16.mxu0 0
      %3234 = vmatpush1.bf16.msra.mxu0 0
      %3235 = vmatprep.subr.bf16.mxu0 0
      %3236 = vmatpush1.bf16.msra.mxu0 0
      %3237 = vmatprep.subr.bf16.mxu0 0
      %3238 = vmatpush1.bf16.msra.mxu0 0
      %3239 = vmatprep.subr.bf16.mxu0 0
      %3240 = vmatpush1.bf16.msra.mxu0 0
      %3241 = vmatprep.subr.bf16.mxu0 0
      %3242 = vmatpush1.bf16.msra.mxu0 0
      %3243 = vmatprep.subr.bf16.mxu0 0
      %3244 = vmatpush1.bf16.msra.mxu0 0
      %3245 = vmatprep.subr.bf16.mxu0 0
      %3246 = vmatpush1.bf16.msra.mxu0 0
      %3247 = vmatprep.mubr.bf16.mxu0 0
      %3248 = vmatmul.mubr.bf16.gmra.mrb[0].mxu0 %v3165
      %v3249 = vpop.f32.mrb[0].mxu0
      %v3250 = vadd.f32 0.0, %v3249
      %v3251 = vpop.f32.mrb[0].mxu0
      %v3252 = vpop.f32.mrb[0].mxu0
      %v3253 = vadd.f32 0.0, %v3252
      %v3254 = vpop.f32.mrb[0].mxu0
      %3255 = vmatprep.mubr.bf16.mxu0 0
      %3256 = vmatmul.mubr.bf16.gmra.mrb[0].mxu0 %v3168
      %v3257 = vpop.f32.mrb[0].mxu0
      %v3258 = vadd.f32 0.0, %v3257
      %v3259 = vpop.f32.mrb[0].mxu0
      %v3260 = vpop.f32.mrb[0].mxu0
      %v3261 = vadd.f32 0.0, %v3260
      %v3262 = vpop.f32.mrb[0].mxu0
      %3263 = vmatprep.mubr.bf16.mxu0 0
      %3264 = vmatmul.mubr.bf16.gmra.mrb[0].mxu0 %v3171
      %v3265 = vpop.f32.mrb[0].mxu0
      %v3266 = vadd.f32 0.0, %v3265
      %v3267 = vpop.f32.mrb[0].mxu0
      %v3268 = vpop.f32.mrb[0].mxu0
      %v3269 = vadd.f32 0.0, %v3268
      %v3270 = vpop.f32.mrb[0].mxu0
      %3271 = vmatprep.mubr.bf16.mxu0 0
      %3272 = vmatmul.mubr.bf16.gmra.mrb[0].mxu0 %v3174
      %v3273 = vpop.f32.mrb[0].mxu0
      %v3274 = vadd.f32 0.0, %v3273
      %v3275 = vpop.f32.mrb[0].mxu0
      %v3276 = vpop.f32.mrb[0].mxu0
      %v3277 = vadd.f32 0.0, %v3276
      %v3278 = vpop.f32.mrb[0].mxu0
      %3279 = vmatprep.mubr.bf16.mxu0 0
      %3280 = vmatmul.mubr.bf16.gmra.mrb[0].mxu0 %v3177
      %v3281 = vpop.f32.mrb[0].mxu0
      %v3282 = vadd.f32 0.0, %v3281
      %v3283 = vpop.f32.mrb[0].mxu0
      %v3284 = vpop.f32.mrb[0].mxu0
      %v3285 = vadd.f32 0.0, %v3284
      %v3286 = vpop.f32.mrb[0].mxu0
      %3287 = vmatprep.mubr.bf16.mxu0 0
      %3288 = vmatmul.mubr.bf16.gmra.mrb[0].mxu0 %v3180
      %v3289 = vpop.f32.mrb[0].mxu0
      %v3290 = vadd.f32 0.0, %v3289
      %v3291 = vpop.f32.mrb[0].mxu0
      %v3292 = vpop.f32.mrb[0].mxu0
      %v3293 = vadd.f32 0.0, %v3292
      %v3294 = vpop.f32.mrb[0].mxu0
      %3295 = vmatprep.mubr.bf16.mxu0 0
      %3296 = vmatmul.mubr.bf16.gmra.mrb[0].mxu0 %v3183
      %v3297 = vpop.f32.mrb[0].mxu0
      %v3298 = vadd.f32 0.0, %v3297
      %v3299 = vpop.f32.mrb[0].mxu0
      %v3300 = vpop.f32.mrb[0].mxu0
      %v3301 = vadd.f32 0.0, %v3300
      %v3302 = vpop.f32.mrb[0].mxu0
      %3303 = vmatprep.mubr.bf16.mxu0 0
      %3304 = vmatmul.mubr.bf16.gmra.mrb[0].mxu0 %v3186
      %v3305 = vpop.f32.mrb[0].mxu0
      %v3306 = vadd.f32 0.0, %v3305
      %v3307 = vpop.f32.mrb[0].mxu0
      %v3308 = vpop.f32.mrb[0].mxu0
      %v3309 = vadd.f32 0.0, %v3308
      %v3310 = vpop.f32.mrb[0].mxu0
      %3311 = vmatprep.mubr.bf16.mxu0 0
      %3312 = vmatmul.mubr.bf16.gmra.mrb[0].mxu0 %v3189
      %v3313 = vpop.f32.mrb[0].mxu0
      %v3314 = vadd.f32 0.0, %v3313
      %v3315 = vpop.f32.mrb[0].mxu0
      %v3316 = vpop.f32.mrb[0].mxu0
      %v3317 = vadd.f32 0.0, %v3316
      %v3318 = vpop.f32.mrb[0].mxu0
      %3319 = vmatprep.mubr.bf16.mxu0 0
      %3320 = vmatmul.mubr.bf16.gmra.mrb[0].mxu0 %v3192
      %v3321 = vpop.f32.mrb[0].mxu0
      %v3322 = vadd.f32 0.0, %v3321
      %v3323 = vpop.f32.mrb[0].mxu0
      %v3324 = vpop.f32.mrb[0].mxu0
      %v3325 = vadd.f32 0.0, %v3324
      %v3326 = vpop.f32.mrb[0].mxu0
      %3327 = vmatprep.mubr.bf16.mxu0 0
      %3328 = vmatmul.mubr.bf16.gmra.mrb[0].mxu0 %v3195
      %v3329 = vpop.f32.mrb[0].mxu0
      %v3330 = vadd.f32 0.0, %v3329
      %v3331 = vpop.f32.mrb[0].mxu0
      %v3332 = vpop.f32.mrb[0].mxu0
      %v3333 = vadd.f32 0.0, %v3332
      %v3334 = vpop.f32.mrb[0].mxu0
      %3335 = vmatprep.mubr.bf16.mxu0 0
      %3336 = vmatmul.mubr.bf16.gmra.mrb[0].mxu0 %v3198
      %v3337 = vpop.f32.mrb[0].mxu0
      %v3338 = vadd.f32 0.0, %v3337
      %v3339 = vpop.f32.mrb[0].mxu0
      %v3340 = vpop.f32.mrb[0].mxu0
      %v3341 = vadd.f32 0.0, %v3340
      %v3342 = vpop.f32.mrb[0].mxu0
      %3343 = vmatprep.mubr.bf16.mxu0 0
      %3344 = vmatmul.mubr.bf16.gmra.mrb[0].mxu0 %v3201
      %v3345 = vpop.f32.mrb[0].mxu0
      %v3346 = vadd.f32 0.0, %v3345
      %v3347 = vpop.f32.mrb[0].mxu0
      %v3348 = vpop.f32.mrb[0].mxu0
      %v3349 = vadd.f32 0.0, %v3348
      %v3350 = vpop.f32.mrb[0].mxu0
      %3351 = vmatprep.mubr.bf16.mxu0 0
      %3352 = vmatmul.mubr.bf16.gmra.mrb[0].mxu0 %v3204
      %v3353 = vpop.f32.mrb[0].mxu0
      %v3354 = vadd.f32 0.0, %v3353
      %v3355 = vpop.f32.mrb[0].mxu0
      %v3356 = vpop.f32.mrb[0].mxu0
      %v3357 = vadd.f32 0.0, %v3356
      %v3358 = vpop.f32.mrb[0].mxu0
      %3359 = vmatprep.mubr.bf16.mxu0 0
      %3360 = vmatmul.mubr.bf16.gmra.mrb[0].mxu0 %v3207
      %v3361 = vpop.f32.mrb[0].mxu0
      %v3362 = vadd.f32 0.0, %v3361
      %v3363 = vpop.f32.mrb[0].mxu0
      %v3364 = vpop.f32.mrb[0].mxu0
      %v3365 = vadd.f32 0.0, %v3364
      %v3366 = vpop.f32.mrb[0].mxu0
      %3367 = vmatprep.mubr.bf16.mxu0 0
      %3368 = vmatmul.mubr.bf16.gmra.mrb[0].mxu0 %v3210
      %v3369 = vpop.f32.mrb[0].mxu0
      %v3370 = vadd.f32 0.0, %v3369
      %v3371 = vpop.f32.mrb[0].mxu0
      %v3372 = vpop.f32.mrb[0].mxu0
      %v3373 = vadd.f32 0.0, %v3372
      %v3374 = vpop.f32.mrb[0].mxu0
      %3375 = vdwg.mxu0
      %v3376 = vld [vmem:[%s8] sm:$0x1]
      %v3378 = vlaneseq
      %v3379 = vshrl.u32 %v3378, 7
      %v3380 = vsub.s32 0, %v3379
      %v3381 = vrot.slane %v3376, %v3380
      %v3383 = vmul.f32 %v3250, %v3381
      %v3384 = vmul.f32 %v3253, %v3381
      %v3385 = vmul.f32 %v3258, %v3381
      %v3386 = vmul.f32 %v3261, %v3381
      %v3387 = vmul.f32 %v3266, %v3381
      %v3388 = vmul.f32 %v3269, %v3381
      %v3389 = vmul.f32 %v3274, %v3381
      %v3390 = vmul.f32 %v3277, %v3381
      %v3391 = vmul.f32 %v3282, %v3381
      %v3392 = vmul.f32 %v3285, %v3381
      %v3393 = vmul.f32 %v3290, %v3381
      %v3394 = vmul.f32 %v3293, %v3381
      %v3395 = vmul.f32 %v3298, %v3381
      %v3396 = vmul.f32 %v3301, %v3381
      %v3397 = vmul.f32 %v3306, %v3381
      %v3398 = vmul.f32 %v3309, %v3381
      %v3399 = vmul.f32 %v3314, %v3381
      %v3400 = vmul.f32 %v3317, %v3381
      %v3401 = vmul.f32 %v3322, %v3381
      %v3402 = vmul.f32 %v3325, %v3381
      %v3403 = vmul.f32 %v3330, %v3381
      %v3404 = vmul.f32 %v3333, %v3381
      %v3405 = vmul.f32 %v3338, %v3381
      %v3406 = vmul.f32 %v3341, %v3381
      %v3407 = vmul.f32 %v3346, %v3381
      %v3408 = vmul.f32 %v3349, %v3381
      %v3409 = vmul.f32 %v3354, %v3381
      %v3410 = vmul.f32 %v3357, %v3381
      %v3411 = vmul.f32 %v3362, %v3381
      %v3412 = vmul.f32 %v3365, %v3381
      %v3413 = vmul.f32 %v3370, %v3381
      %v3414 = vmul.f32 %v3373, %v3381
      %v3415 = vld [vmem:[%s9] sm:$0x1]
      %v3417 = vlaneseq
      %v3418 = vshrl.u32 %v3417, 7
      %v3419 = vsub.s32 0, %v3418
      %v3420 = vrot.slane %v3415, %v3419
      %v3422 = vadd.f32 %v3383, %v3420
      %v3423 = vadd.f32 %v3384, %v3420
      %v3424 = vadd.f32 %v3385, %v3420
      %v3425 = vadd.f32 %v3386, %v3420
      %v3426 = vadd.f32 %v3387, %v3420
      %v3427 = vadd.f32 %v3388, %v3420
      %v3428 = vadd.f32 %v3389, %v3420
      %v3429 = vadd.f32 %v3390, %v3420
      %v3430 = vadd.f32 %v3391, %v3420
      %v3431 = vadd.f32 %v3392, %v3420
      %v3432 = vadd.f32 %v3393, %v3420
      %v3433 = vadd.f32 %v3394, %v3420
      %v3434 = vadd.f32 %v3395, %v3420
      %v3435 = vadd.f32 %v3396, %v3420
      %v3436 = vadd.f32 %v3397, %v3420
      %v3437 = vadd.f32 %v3398, %v3420
      %v3438 = vadd.f32 %v3399, %v3420
      %v3439 = vadd.f32 %v3400, %v3420
      %v3440 = vadd.f32 %v3401, %v3420
      %v3441 = vadd.f32 %v3402, %v3420
      %v3442 = vadd.f32 %v3403, %v3420
      %v3443 = vadd.f32 %v3404, %v3420
      %v3444 = vadd.f32 %v3405, %v3420
      %v3445 = vadd.f32 %v3406, %v3420
      %v3446 = vadd.f32 %v3407, %v3420
      %v3447 = vadd.f32 %v3408, %v3420
      %v3448 = vadd.f32 %v3409, %v3420
      %v3449 = vadd.f32 %v3410, %v3420
      %v3450 = vadd.f32 %v3411, %v3420
      %v3451 = vadd.f32 %v3412, %v3420
      %v3452 = vadd.f32 %v3413, %v3420
      %v3453 = vadd.f32 %v3414, %v3420
      %v3454 = vld [vmem:[%s10] sm:$0x3]
      %v3456 = vsel %vm604, %v3454, 0
      %3458 = vmatprep.subr.bf16.mxu0 0
      %3459 = vmatpush1.bf16.msra.mxu0 %v3456
      %3460 = vmatprep.subr.bf16.mxu0 0
      %3461 = vmatpush1.bf16.msra.mxu0 0
      %3462 = vmatprep.subr.bf16.mxu0 0
      %3463 = vmatpush1.bf16.msra.mxu0 0
      %3464 = vmatprep.subr.bf16.mxu0 0
      %3465 = vmatpush1.bf16.msra.mxu0 0
      %3466 = vmatprep.subr.bf16.mxu0 0
      %3467 = vmatpush1.bf16.msra.mxu0 0
      %3468 = vmatprep.subr.bf16.mxu0 0
      %3469 = vmatpush1.bf16.msra.mxu0 0
      %3470 = vmatprep.subr.bf16.mxu0 0
      %3471 = vmatpush1.bf16.msra.mxu0 0
      %3472 = vmatprep.subr.bf16.mxu0 0
      %3473 = vmatpush1.bf16.msra.mxu0 0
      %3474 = vmatprep.subr.bf16.mxu0 0
      %3475 = vmatpush1.bf16.msra.mxu0 0
      %3476 = vmatprep.subr.bf16.mxu0 0
      %3477 = vmatpush1.bf16.msra.mxu0 0
      %3478 = vmatprep.subr.bf16.mxu0 0
      %3479 = vmatpush1.bf16.msra.mxu0 0
      %3480 = vmatprep.subr.bf16.mxu0 0
      %3481 = vmatpush1.bf16.msra.mxu0 0
      %3482 = vmatprep.subr.bf16.mxu0 0
      %3483 = vmatpush1.bf16.msra.mxu0 0
      %3484 = vmatprep.subr.bf16.mxu0 0
      %3485 = vmatpush1.bf16.msra.mxu0 0
      %3486 = vmatprep.subr.bf16.mxu0 0
      %3487 = vmatpush1.bf16.msra.mxu0 0
      %3488 = vmatprep.subr.bf16.mxu0 0
      %3489 = vmatpush1.bf16.msra.mxu0 0
      %3490 = vmatprep.mubr.bf16.mxu0 0
      %3491 = vmatmul.mubr.bf16.gmra.mrb[0].mxu0 %v557
      %v3492 = vpop.f32.mrb[0].mxu0
      %v3493 = vadd.f32 0.0, %v3492
      %v3494 = vpop.f32.mrb[0].mxu0
      %v3495 = vpop.f32.mrb[0].mxu0
      %v3496 = vadd.f32 0.0, %v3495
      %v3497 = vpop.f32.mrb[0].mxu0
      %3498 = vmatprep.mubr.bf16.mxu0 0
      %3499 = vmatmul.mubr.bf16.gmra.mrb[0].mxu0 %v560
      %v3500 = vpop.f32.mrb[0].mxu0
      %v3501 = vadd.f32 0.0, %v3500
      %v3502 = vpop.f32.mrb[0].mxu0
      %v3503 = vpop.f32.mrb[0].mxu0
      %v3504 = vadd.f32 0.0, %v3503
      %v3505 = vpop.f32.mrb[0].mxu0
      %3506 = vmatprep.mubr.bf16.mxu0 0
      %3507 = vmatmul.mubr.bf16.gmra.mrb[0].mxu0 %v563
      %v3508 = vpop.f32.mrb[0].mxu0
      %v3509 = vadd.f32 0.0, %v3508
      %v3510 = vpop.f32.mrb[0].mxu0
      %v3511 = vpop.f32.mrb[0].mxu0
      %v3512 = vadd.f32 0.0, %v3511
      %v3513 = vpop.f32.mrb[0].mxu0
      %3514 = vmatprep.mubr.bf16.mxu0 0
      %3515 = vmatmul.mubr.bf16.gmra.mrb[0].mxu0 %v566
      %v3516 = vpop.f32.mrb[0].mxu0
      %v3517 = vadd.f32 0.0, %v3516
      %v3518 = vpop.f32.mrb[0].mxu0
      %v3519 = vpop.f32.mrb[0].mxu0
      %v3520 = vadd.f32 0.0, %v3519
      %v3521 = vpop.f32.mrb[0].mxu0
      %3522 = vmatprep.mubr.bf16.mxu0 0
      %3523 = vmatmul.mubr.bf16.gmra.mrb[0].mxu0 %v569
      %v3524 = vpop.f32.mrb[0].mxu0
      %v3525 = vadd.f32 0.0, %v3524
      %v3526 = vpop.f32.mrb[0].mxu0
      %v3527 = vpop.f32.mrb[0].mxu0
      %v3528 = vadd.f32 0.0, %v3527
      %v3529 = vpop.f32.mrb[0].mxu0
      %3530 = vmatprep.mubr.bf16.mxu0 0
      %3531 = vmatmul.mubr.bf16.gmra.mrb[0].mxu0 %v572
      %v3532 = vpop.f32.mrb[0].mxu0
      %v3533 = vadd.f32 0.0, %v3532
      %v3534 = vpop.f32.mrb[0].mxu0
      %v3535 = vpop.f32.mrb[0].mxu0
      %v3536 = vadd.f32 0.0, %v3535
      %v3537 = vpop.f32.mrb[0].mxu0
      %3538 = vmatprep.mubr.bf16.mxu0 0
      %3539 = vmatmul.mubr.bf16.gmra.mrb[0].mxu0 %v575
      %v3540 = vpop.f32.mrb[0].mxu0
      %v3541 = vadd.f32 0.0, %v3540
      %v3542 = vpop.f32.mrb[0].mxu0
      %v3543 = vpop.f32.mrb[0].mxu0
      %v3544 = vadd.f32 0.0, %v3543
      %v3545 = vpop.f32.mrb[0].mxu0
      %3546 = vmatprep.mubr.bf16.mxu0 0
      %3547 = vmatmul.mubr.bf16.gmra.mrb[0].mxu0 %v578
      %v3548 = vpop.f32.mrb[0].mxu0
      %v3549 = vadd.f32 0.0, %v3548
      %v3550 = vpop.f32.mrb[0].mxu0
      %v3551 = vpop.f32.mrb[0].mxu0
      %v3552 = vadd.f32 0.0, %v3551
      %v3553 = vpop.f32.mrb[0].mxu0
      %3554 = vmatprep.mubr.bf16.mxu0 0
      %3555 = vmatmul.mubr.bf16.gmra.mrb[0].mxu0 %v581
      %v3556 = vpop.f32.mrb[0].mxu0
      %v3557 = vadd.f32 0.0, %v3556
      %v3558 = vpop.f32.mrb[0].mxu0
      %v3559 = vpop.f32.mrb[0].mxu0
      %v3560 = vadd.f32 0.0, %v3559
      %v3561 = vpop.f32.mrb[0].mxu0
      %3562 = vmatprep.mubr.bf16.mxu0 0
      %3563 = vmatmul.mubr.bf16.gmra.mrb[0].mxu0 %v584
      %v3564 = vpop.f32.mrb[0].mxu0
      %v3565 = vadd.f32 0.0, %v3564
      %v3566 = vpop.f32.mrb[0].mxu0
      %v3567 = vpop.f32.mrb[0].mxu0
      %v3568 = vadd.f32 0.0, %v3567
      %v3569 = vpop.f32.mrb[0].mxu0
      %3570 = vmatprep.mubr.bf16.mxu0 0
      %3571 = vmatmul.mubr.bf16.gmra.mrb[0].mxu0 %v587
      %v3572 = vpop.f32.mrb[0].mxu0
      %v3573 = vadd.f32 0.0, %v3572
      %v3574 = vpop.f32.mrb[0].mxu0
      %v3575 = vpop.f32.mrb[0].mxu0
      %v3576 = vadd.f32 0.0, %v3575
      %v3577 = vpop.f32.mrb[0].mxu0
      %3578 = vmatprep.mubr.bf16.mxu0 0
      %3579 = vmatmul.mubr.bf16.gmra.mrb[0].mxu0 %v590
      %v3580 = vpop.f32.mrb[0].mxu0
      %v3581 = vadd.f32 0.0, %v3580
      %v3582 = vpop.f32.mrb[0].mxu0
      %v3583 = vpop.f32.mrb[0].mxu0
      %v3584 = vadd.f32 0.0, %v3583
      %v3585 = vpop.f32.mrb[0].mxu0
      %3586 = vmatprep.mubr.bf16.mxu0 0
      %3587 = vmatmul.mubr.bf16.gmra.mrb[0].mxu0 %v593
      %v3588 = vpop.f32.mrb[0].mxu0
      %v3589 = vadd.f32 0.0, %v3588
      %v3590 = vpop.f32.mrb[0].mxu0
      %v3591 = vpop.f32.mrb[0].mxu0
      %v3592 = vadd.f32 0.0, %v3591
      %v3593 = vpop.f32.mrb[0].mxu0
      %3594 = vmatprep.mubr.bf16.mxu0 0
      %3595 = vmatmul.mubr.bf16.gmra.mrb[0].mxu0 %v596
      %v3596 = vpop.f32.mrb[0].mxu0
      %v3597 = vadd.f32 0.0, %v3596
      %v3598 = vpop.f32.mrb[0].mxu0
      %v3599 = vpop.f32.mrb[0].mxu0
      %v3600 = vadd.f32 0.0, %v3599
      %v3601 = vpop.f32.mrb[0].mxu0
      %3602 = vmatprep.mubr.bf16.mxu0 0
      %3603 = vmatmul.mubr.bf16.gmra.mrb[0].mxu0 %v599
      %v3604 = vpop.f32.mrb[0].mxu0
      %v3605 = vadd.f32 0.0, %v3604
      %v3606 = vpop.f32.mrb[0].mxu0
      %v3607 = vpop.f32.mrb[0].mxu0
      %v3608 = vadd.f32 0.0, %v3607
      %v3609 = vpop.f32.mrb[0].mxu0
      %3610 = vmatprep.mubr.bf16.mxu0 0
      %3611 = vmatmul.mubr.bf16.gmra.mrb[0].mxu0 %v602
      %v3612 = vpop.f32.mrb[0].mxu0
      %v3613 = vadd.f32 0.0, %v3612
      %v3614 = vpop.f32.mrb[0].mxu0
      %v3615 = vpop.f32.mrb[0].mxu0
      %v3616 = vadd.f32 0.0, %v3615
      %v3617 = vpop.f32.mrb[0].mxu0
      %3618 = vdwg.mxu0
      %v3619 = vld [vmem:[%s11] sm:$0x1]
      %v3621 = vlaneseq
      %v3622 = vshrl.u32 %v3621, 7
      %v3623 = vsub.s32 0, %v3622
      %v3624 = vrot.slane %v3619, %v3623
      %v3626 = vmul.f32 %v3493, %v3624
      %v3627 = vmul.f32 %v3496, %v3624
      %v3628 = vmul.f32 %v3501, %v3624
      %v3629 = vmul.f32 %v3504, %v3624
      %v3630 = vmul.f32 %v3509, %v3624
      %v3631 = vmul.f32 %v3512, %v3624
      %v3632 = vmul.f32 %v3517, %v3624
      %v3633 = vmul.f32 %v3520, %v3624
      %v3634 = vmul.f32 %v3525, %v3624
      %v3635 = vmul.f32 %v3528, %v3624
      %v3636 = vmul.f32 %v3533, %v3624
      %v3637 = vmul.f32 %v3536, %v3624
      %v3638 = vmul.f32 %v3541, %v3624
      %v3639 = vmul.f32 %v3544, %v3624
      %v3640 = vmul.f32 %v3549, %v3624
      %v3641 = vmul.f32 %v3552, %v3624
      %v3642 = vmul.f32 %v3557, %v3624
      %v3643 = vmul.f32 %v3560, %v3624
      %v3644 = vmul.f32 %v3565, %v3624
      %v3645 = vmul.f32 %v3568, %v3624
      %v3646 = vmul.f32 %v3573, %v3624
      %v3647 = vmul.f32 %v3576, %v3624
      %v3648 = vmul.f32 %v3581, %v3624
      %v3649 = vmul.f32 %v3584, %v3624
      %v3650 = vmul.f32 %v3589, %v3624
      %v3651 = vmul.f32 %v3592, %v3624
      %v3652 = vmul.f32 %v3597, %v3624
      %v3653 = vmul.f32 %v3600, %v3624
      %v3654 = vmul.f32 %v3605, %v3624
      %v3655 = vmul.f32 %v3608, %v3624
      %v3656 = vmul.f32 %v3613, %v3624
      %v3657 = vmul.f32 %v3616, %v3624
      %v3658 = vld [vmem:[%s12] sm:$0x1]
      %v3660 = vlaneseq
      %v3661 = vshrl.u32 %v3660, 7
      %v3662 = vsub.s32 0, %v3661
      %v3663 = vrot.slane %v3658, %v3662
      %v3665 = vadd.f32 %v3626, %v3663
      %v3666 = vadd.f32 %v3627, %v3663
      %v3667 = vadd.f32 %v3628, %v3663
      %v3668 = vadd.f32 %v3629, %v3663
      %v3669 = vadd.f32 %v3630, %v3663
      %v3670 = vadd.f32 %v3631, %v3663
      %v3671 = vadd.f32 %v3632, %v3663
      %v3672 = vadd.f32 %v3633, %v3663
      %v3673 = vadd.f32 %v3634, %v3663
      %v3674 = vadd.f32 %v3635, %v3663
      %v3675 = vadd.f32 %v3636, %v3663
      %v3676 = vadd.f32 %v3637, %v3663
      %v3677 = vadd.f32 %v3638, %v3663
      %v3678 = vadd.f32 %v3639, %v3663
      %v3679 = vadd.f32 %v3640, %v3663
      %v3680 = vadd.f32 %v3641, %v3663
      %v3681 = vadd.f32 %v3642, %v3663
      %v3682 = vadd.f32 %v3643, %v3663
      %v3683 = vadd.f32 %v3644, %v3663
      %v3684 = vadd.f32 %v3645, %v3663
      %v3685 = vadd.f32 %v3646, %v3663
      %v3686 = vadd.f32 %v3647, %v3663
      %v3687 = vadd.f32 %v3648, %v3663
      %v3688 = vadd.f32 %v3649, %v3663
      %v3689 = vadd.f32 %v3650, %v3663
      %v3690 = vadd.f32 %v3651, %v3663
      %v3691 = vadd.f32 %v3652, %v3663
      %v3692 = vadd.f32 %v3653, %v3663
      %v3693 = vadd.f32 %v3654, %v3663
      %v3694 = vadd.f32 %v3655, %v3663
      %v3695 = vadd.f32 %v3656, %v3663
      %v3696 = vadd.f32 %v3657, %v3663
      %v3697 = vadd.f32 %v3422, %v3665
      %v3698 = vadd.f32 %v3423, %v3666
      %v3699 = vadd.f32 %v3424, %v3667
      %v3700 = vadd.f32 %v3425, %v3668
      %v3701 = vadd.f32 %v3426, %v3669
      %v3702 = vadd.f32 %v3427, %v3670
      %v3703 = vadd.f32 %v3428, %v3671
      %v3704 = vadd.f32 %v3429, %v3672
      %v3705 = vadd.f32 %v3430, %v3673
      %v3706 = vadd.f32 %v3431, %v3674
      %v3707 = vadd.f32 %v3432, %v3675
      %v3708 = vadd.f32 %v3433, %v3676
      %v3709 = vadd.f32 %v3434, %v3677
      %v3710 = vadd.f32 %v3435, %v3678
      %v3711 = vadd.f32 %v3436, %v3679
      %v3712 = vadd.f32 %v3437, %v3680
      %v3713 = vadd.f32 %v3438, %v3681
      %v3714 = vadd.f32 %v3439, %v3682
      %v3715 = vadd.f32 %v3440, %v3683
      %v3716 = vadd.f32 %v3441, %v3684
      %v3717 = vadd.f32 %v3442, %v3685
      %v3718 = vadd.f32 %v3443, %v3686
      %v3719 = vadd.f32 %v3444, %v3687
      %v3720 = vadd.f32 %v3445, %v3688
      %v3721 = vadd.f32 %v3446, %v3689
      %v3722 = vadd.f32 %v3447, %v3690
      %v3723 = vadd.f32 %v3448, %v3691
      %v3724 = vadd.f32 %v3449, %v3692
      %v3725 = vadd.f32 %v3450, %v3693
      %v3726 = vadd.f32 %v3451, %v3694
      %v3727 = vadd.f32 %v3452, %v3695
      %v3728 = vadd.f32 %v3453, %v3696
      %v3729 = vmax.f32 %v3697, 0.0
      %v3730 = vmax.f32 %v3698, 0.0
      %v3731 = vmax.f32 %v3699, 0.0
      %v3732 = vmax.f32 %v3700, 0.0
      %v3733 = vmax.f32 %v3701, 0.0
      %v3734 = vmax.f32 %v3702, 0.0
      %v3735 = vmax.f32 %v3703, 0.0
      %v3736 = vmax.f32 %v3704, 0.0
      %v3737 = vmax.f32 %v3705, 0.0
      %v3738 = vmax.f32 %v3706, 0.0
      %v3739 = vmax.f32 %v3707, 0.0
      %v3740 = vmax.f32 %v3708, 0.0
      %v3741 = vmax.f32 %v3709, 0.0
      %v3742 = vmax.f32 %v3710, 0.0
      %v3743 = vmax.f32 %v3711, 0.0
      %v3744 = vmax.f32 %v3712, 0.0
      %v3745 = vmax.f32 %v3713, 0.0
      %v3746 = vmax.f32 %v3714, 0.0
      %v3747 = vmax.f32 %v3715, 0.0
      %v3748 = vmax.f32 %v3716, 0.0
      %v3749 = vmax.f32 %v3717, 0.0
      %v3750 = vmax.f32 %v3718, 0.0
      %v3751 = vmax.f32 %v3719, 0.0
      %v3752 = vmax.f32 %v3720, 0.0
      %v3753 = vmax.f32 %v3721, 0.0
      %v3754 = vmax.f32 %v3722, 0.0
      %v3755 = vmax.f32 %v3723, 0.0
      %v3756 = vmax.f32 %v3724, 0.0
      %v3757 = vmax.f32 %v3725, 0.0
      %v3758 = vmax.f32 %v3726, 0.0
      %v3759 = vmax.f32 %v3727, 0.0
      %v3760 = vmax.f32 %v3728, 0.0
      %vm3761 = vcmask 130048
      %3762 = vst.msk [vmem:[%s440] sm:$0xff] %vm3761, %v3729
      %3763 = vst.msk [vmem:[%s440 + $0x8] sm:$0xff] %vm3761, %v3730
      %3764 = vst.msk [vmem:[%s440 + $0x10] sm:$0xff] %vm3761, %v3731
      %3765 = vst.msk [vmem:[%s440 + $0x18] sm:$0xff] %vm3761, %v3732
      %3766 = vst.msk [vmem:[%s440 + $0x20] sm:$0xff] %vm3761, %v3733
      %3767 = vst.msk [vmem:[%s440 + $0x28] sm:$0xff] %vm3761, %v3734
      %3768 = vst.msk [vmem:[%s440 + $0x30] sm:$0xff] %vm3761, %v3735
      %3769 = vst.msk [vmem:[%s440 + $0x38] sm:$0xff] %vm3761, %v3736
      %3770 = vst.msk [vmem:[%s440 + $0x40] sm:$0xff] %vm3761, %v3737
      %3771 = vst.msk [vmem:[%s440 + $0x48] sm:$0xff] %vm3761, %v3738
      %3772 = vst.msk [vmem:[%s440 + $0x50] sm:$0xff] %vm3761, %v3739
      %3773 = vst.msk [vmem:[%s440 + $0x58] sm:$0xff] %vm3761, %v3740
      %3774 = vst.msk [vmem:[%s440 + $0x60] sm:$0xff] %vm3761, %v3741
      %3775 = vst.msk [vmem:[%s440 + $0x68] sm:$0xff] %vm3761, %v3742
      %3776 = vst.msk [vmem:[%s440 + $0x70] sm:$0xff] %vm3761, %v3743
      %3777 = vst.msk [vmem:[%s440 + $0x78] sm:$0xff] %vm3761, %v3744
      %3778 = vst.msk [vmem:[%s440 + $0x80] sm:$0xff] %vm3761, %v3745
      %3779 = vst.msk [vmem:[%s440 + $0x88] sm:$0xff] %vm3761, %v3746
      %3780 = vst.msk [vmem:[%s440 + $0x90] sm:$0xff] %vm3761, %v3747
      %3781 = vst.msk [vmem:[%s440 + $0x98] sm:$0xff] %vm3761, %v3748
      %3782 = vst.msk [vmem:[%s440 + $0xa0] sm:$0xff] %vm3761, %v3749
      %3783 = vst.msk [vmem:[%s440 + $0xa8] sm:$0xff] %vm3761, %v3750
      %3784 = vst.msk [vmem:[%s440 + $0xb0] sm:$0xff] %vm3761, %v3751
      %3785 = vst.msk [vmem:[%s440 + $0xb8] sm:$0xff] %vm3761, %v3752
      %3786 = vst.msk [vmem:[%s440 + $0xc0] sm:$0xff] %vm3761, %v3753
      %3787 = vst.msk [vmem:[%s440 + $0xc8] sm:$0xff] %vm3761, %v3754
      %3788 = vst.msk [vmem:[%s440 + $0xd0] sm:$0xff] %vm3761, %v3755
      %3789 = vst.msk [vmem:[%s440 + $0xd8] sm:$0xff] %vm3761, %v3756
      %3790 = vst.msk [vmem:[%s440 + $0xe0] sm:$0xff] %vm3761, %v3757
      %3791 = vst.msk [vmem:[%s440 + $0xe8] sm:$0xff] %vm3761, %v3758
      %3792 = vst.msk [vmem:[%s440 + $0xf0] sm:$0xff] %vm3761, %v3759
      %3793 = vst.msk [vmem:[%s440 + $0xf8] sm:$0xff] %vm3761, %v3760
      %p3794 = scmp.lt.s32.totalorder %s24, 1
      %s3795 = scalar_select %p3794, %s24, 1
      %s3796 = smul.addr %s3795, 32
      %s3797 = smul.addr %s3796, 8
      %s3798 = scalar_lea.vmem %s13, %s3797
      // Predicated region
      $region73: #{tpu_custom_call.1} parent=71 // pred_check
        %p3799 = pneg %p320
      $region74: #{tpu_custom_call.1} parent=71 // pred_check_branch
        %3801 = sbr.rel (%p3799) target = $region76
      $region75: #{tpu_custom_call.1} parent=71 // pred_region
        _
      $region76: #{tpu_custom_call.1} parent=71 // pred_fallthru
        _
    $region72: #{tpu_custom_call.1} parent=5 // pred_fallthru
      _
    %p3802 = scmp.le.s32.totalorder 2, %s19
    // Predicated region
    $region77: #{tpu_custom_call.1} parent=5 // pred_check
      %p3803 = pneg %p3802
    $region78: #{tpu_custom_call.1} parent=5 // pred_check_branch
      %3805 = sbr.rel (%p3803) target = $region80
    $region79: #{tpu_custom_call.1} parent=5 // pred_region
      %s3806 = ssub.s32 %s19, 2
      // Predicated region
      $region81: #{tpu_custom_call.1} parent=79 // pred_check
        %p3807 = pneg %p326
      $region82: #{tpu_custom_call.1} parent=79 // pred_check_branch
        %3809 = sbr.rel (%p3807) target = $region84
      $region83: #{tpu_custom_call.1} parent=79 // pred_region
        %p3810 = scmp.lt.s32.totalorder %s25, 1
        %s3811 = scalar_select %p3810, %s25, 1
        %s3812 = smul.addr %s3811, 32
        %s3813 = smul.addr %s3812, 8
        %s3814 = scalar_lea.vmem %s13, %s3813
      $region84: #{tpu_custom_call.1} parent=79 // pred_fallthru
        _
    $region80: #{tpu_custom_call.1} parent=5 // pred_fallthru
      _
  $region6: #{tpu_custom_call.1} parent=0 // loop_footer
    %s23 = sadd.s32 1, %s19
  $region7: #{tpu_custom_call.1} parent=0 // loop_footer_branch
    %18 = sbr.rel target = $region3
  $region8: #{tpu_custom_call.1} parent=0 // loop_exit
    _

</llo_original>
